<compile_context>
chip_gen: v6e
topology: v6e:2x2x1
jax: 0.10.0
libtpu: 0.0.40
codegen_flags: <defaults>
</compile_context>

<pallas_src>
import functools

import jax
import jax.numpy as jnp
from jax import lax
from jax.experimental import pallas as pl
from jax.experimental.pallas import tpu as pltpu


# ------------------------------ Pallas kernel -------------------------------

def _conv_bn_kernel(x_ref, w_ref, scale_ref, shift_ref, o_ref, *,
                    K, stride, dilation, TH, OW):
    """Fused KxK conv (K*K shifted matmuls, f32 accumulation) + BatchNorm scale/shift.

    x_ref:     (TH_in, Wp, Cin)  padded input row-tile incl. halo rows
    w_ref:     (K*K, Cin, Cout)  conv weights (VMEM-resident across the grid)
    scale_ref: (1, Cout)         gamma / sqrt(running_var + eps)
    shift_ref: (1, Cout)         beta - running_mean * scale
    o_ref:     (TH, OW, Cout)    output row-tile (NHWC)
    """
    cin = x_ref.shape[-1]
    cout = o_ref.shape[-1]
    acc = jnp.zeros((TH * OW, cout), jnp.float32)
    for ki in range(K):                       # static unroll over the K*K taps
        for kj in range(K):
            r0 = ki * dilation
            c0 = kj * dilation
            if stride == 1:
                xs = x_ref[r0:r0 + TH, c0:c0 + OW, :]
            else:
                xs = x_ref[pl.ds(r0, TH, stride), pl.ds(c0, OW, stride), :]
            acc = acc + jnp.dot(xs.reshape(TH * OW, cin), w_ref[ki * K + kj],
                                preferred_element_type=jnp.float32)
    y = acc * scale_ref[...] + shift_ref[...]          # fused BatchNorm (eval mode)
    o_ref[...] = y.reshape(TH, OW, cout).astype(o_ref.dtype)


# ------------------------------- forward pass -------------------------------

def basic_conv2d_forward(x, params, *, stride=1, padding=0, dilation=1,
                         row_tile_bytes=4 << 20):
    """BasicConv2d.forward: BatchNorm2d(Conv2d(x, bias=False)).  x is NCHW."""
    w = params["conv_w"]                               # (Cout, Cin, K, K), torch layout
    Cout, Cin, K, _ = w.shape
    B, Cx, H, W = x.shape
    assert Cx == Cin, (Cx, Cin)

    # Fold BatchNorm (eval-mode, running stats) into a per-channel scale/shift.
    eps = params.get("bn_eps", 1e-5)
    inv_std = lax.rsqrt(params["bn_var"].astype(jnp.float32) + eps)
    scale = (params["bn_gamma"].astype(jnp.float32) * inv_std).reshape(1, Cout)
    shift = (params["bn_beta"].astype(jnp.float32)
             - params["bn_mean"].astype(jnp.float32) * scale[0]).reshape(1, Cout)

    OH = (H + 2 * padding - dilation * (K - 1) - 1) // stride + 1
    OW = (W + 2 * padding - dilation * (K - 1) - 1) // stride + 1

    # --- plain-JAX glue: layout + spatial zero padding (pure data movement) ---
    x_nhwc = x.transpose(0, 2, 3, 1)                   # channels on the lane dim
    xpad = jnp.pad(x_nhwc, ((0, 0), (padding, padding), (padding, padding), (0, 0)))
    Wp = W + 2 * padding

    # Row-tile size: keep double-buffered (input + output) blocks well under VMEM.
    itemsize = x.dtype.itemsize
    per_out_row = OW * Cout * itemsize
    per_in_row = Wp * Cin * itemsize * stride
    TH = int(max(1, min(OH, row_tile_bytes // max(1, 2 * (per_in_row + per_out_row)))))
    nt = pl.cdiv(OH, TH)
    OHp = nt * TH
    TH_in = (TH - 1) * stride + dilation * (K - 1) + 1

    # Overlapping halo row-tiles -> each grid step is a self-contained input block.
    need_rows = (nt - 1) * TH * stride + TH_in
    if need_rows > xpad.shape[1]:
        xpad = jnp.pad(xpad, ((0, 0), (0, need_rows - xpad.shape[1]), (0, 0), (0, 0)))
    x_tiles = jnp.stack([xpad[:, i * TH * stride:i * TH * stride + TH_in]
                         for i in range(nt)], axis=1)  # (B, nt, TH_in, Wp, Cin)

    # (Cout, Cin, K, K) -> (K*K, Cin, Cout): one (Cin, Cout) matmul per conv tap.
    w_taps = w.transpose(2, 3, 1, 0).reshape(K * K, Cin, Cout).astype(x.dtype)

    # Explicit VMEM budget (double-buffered in/out blocks + resident weights + slack).
    block_bytes = (TH_in * Wp * Cin + TH * OW * Cout) * itemsize
    vmem_limit = int(min(64 << 20,
                         max(16 << 20, 4 * block_bytes + w_taps.size * itemsize)))

    out_nhwc = pl.pallas_call(
        functools.partial(_conv_bn_kernel, K=K, stride=stride, dilation=dilation,
                          TH=TH, OW=OW),
        out_shape=jax.ShapeDtypeStruct((B, OHp, OW, Cout), x.dtype),
        grid=(B, nt),
        in_specs=[
            pl.BlockSpec((None, None, TH_in, Wp, Cin), lambda b, i: (b, i, 0, 0, 0)),
            pl.BlockSpec((K * K, Cin, Cout), lambda b, i: (0, 0, 0)),  # resident
            pl.BlockSpec((1, Cout), lambda b, i: (0, 0)),              # resident
            pl.BlockSpec((1, Cout), lambda b, i: (0, 0)),              # resident
        ],
        out_specs=pl.BlockSpec((None, TH, OW, Cout), lambda b, i: (b, i, 0, 0)),
        compiler_params=pltpu.CompilerParams(
            dimension_semantics=("parallel", "parallel"),
            vmem_limit_bytes=vmem_limit),
    )(x_tiles, w_taps, scale, shift)

    # Drop row padding, back to NCHW like the PyTorch module.
    return out_nhwc[:, :OH].transpose(0, 3, 1, 2)


# TODO(synk): training-mode BatchNorm (batch statistics over B*H*W) is not implemented;
# eval-mode running-stats semantics are fused into the conv epilogue instead.
# Note: the module defines self.relu but forward() does not apply it, so neither do we.


# ------------------------------ parameter setup -----------------------------

def init_params(key, in_planes, out_planes, kernel_size):
    k1, k2, k3, k4, k5 = jax.random.split(key, 5)
    fan_in = in_planes * kernel_size * kernel_size
    w = jax.random.normal(k1, (out_planes, in_planes, kernel_size, kernel_size),
                          jnp.float32) * (1.0 / fan_in) ** 0.5
    return dict(
        conv_w=w,
        bn_gamma=1.0 + 0.1 * jax.random.normal(k2, (out_planes,), jnp.float32),
        bn_beta=0.1 * jax.random.normal(k3, (out_planes,), jnp.float32),
        bn_mean=0.1 * jax.random.normal(k4, (out_planes,), jnp.float32),
        bn_var=jax.random.uniform(k5, (out_planes,), jnp.float32,
                                  minval=0.5, maxval=1.5),
        bn_eps=1e-5,
    )


def _reference(x, params, *, stride, padding, dilation):
    """Pure-JAX reference: Conv2d(bias=False) + eval-mode BatchNorm2d."""
    conv = lax.conv_general_dilated(
        x, params["conv_w"], window_strides=(stride, stride),
        padding=[(padding, padding), (padding, padding)],
        rhs_dilation=(dilation, dilation),
        dimension_numbers=("NCHW", "OIHW", "NCHW"),
        precision=lax.Precision.HIGHEST)
    inv_std = lax.rsqrt(params["bn_var"] + params["bn_eps"])
    scale = (params["bn_gamma"] * inv_std)[None, :, None, None]
    shift = (params["bn_beta"]
             - params["bn_mean"] * params["bn_gamma"] * inv_std)[None, :, None, None]
    return conv * scale + shift


if __name__ == "__main__":
    key = jax.random.PRNGKey(0)
    kx, kp = jax.random.split(key, 2)

    # Small shapes consistent with the module: kernel_size=3, stride=1, padding=1.
    B, Cin, H, W = 2, 16, 16, 16
    Cout, K, S, P, D = 32, 3, 1, 1, 1

    x = jax.random.normal(kx, (B, Cin, H, W), jnp.float32)
    params = init_params(kp, Cin, Cout, K)

    fwd = jax.jit(functools.partial(basic_conv2d_forward,
                                    stride=S, padding=P, dilation=D))
    out = fwd(x, params)
    out = jax.block_until_ready(out)

    assert out.shape == (B, Cout, H, W), out.shape
    ref = _reference(x, params, stride=S, padding=P, dilation=D)
    err = float(jnp.max(jnp.abs(out - ref)))
    assert err < 5e-2, f"max abs error vs reference: {err}"

    print("KERNEL_OK")
</pallas_src>

<mosaic_0001>
module attributes {stable_mosaic.version = 11 : i64} {
  func.func @_conv_bn_kernel(%arg0: i32, %arg1: i32, %arg2: memref<1x1x18x18x16xf32, #tpu.memory_space<vmem>>, %arg3: memref<9x16x32xf32, #tpu.memory_space<vmem>>, %arg4: memref<1x32xf32, #tpu.memory_space<vmem>>, %arg5: memref<1x32xf32, #tpu.memory_space<vmem>>, %arg6: memref<1x16x16x32xf32, #tpu.memory_space<vmem>>) attributes {dimension_semantics = [#tpu.dimension_semantics<parallel>, #tpu.dimension_semantics<parallel>], iteration_bounds = array<i64: 2, 1>, scalar_prefetch = 0 : i64, scratch_operands = 0 : i64, tpu.core_type = #tpu.core_type<tc>, window_params = [{transform_indices = @transform_0, window_bounds = array<i64: 1, 1, 18, 18, 16>}, {pipeline_mode = #tpu.pipeline_mode<synchronous>, transform_indices = @transform_1, window_bounds = array<i64: 9, 16, 32>}, {pipeline_mode = #tpu.pipeline_mode<synchronous>, transform_indices = @transform_2, window_bounds = array<i64: 1, 32>}, {pipeline_mode = #tpu.pipeline_mode<synchronous>, transform_indices = @transform_3, window_bounds = array<i64: 1, 32>}, {transform_indices = @transform_4, window_bounds = array<i64: 1, 16, 16, 32>}]} {
    %cst = arith.constant 0.000000e+00 : f32
    %0 = vector.broadcast %cst : f32 to vector<256x32xf32>
    %c0 = arith.constant 0 : index
    %c0_0 = arith.constant 0 : index
    %c0_1 = arith.constant 0 : index
    %c0_2 = arith.constant 0 : index
    %c0_3 = arith.constant 0 : index
    %1 = vector.load %arg2[%c0, %c0_0, %c0_1, %c0_2, %c0_3] : memref<1x1x18x18x16xf32, #tpu.memory_space<vmem>>, vector<1x1x16x16x16xf32>
    %2 = vector.shape_cast %1 : vector<1x1x16x16x16xf32> to vector<16x16x16xf32>
    %3 = vector.shape_cast %2 : vector<16x16x16xf32> to vector<256x16xf32>
    %c0_4 = arith.constant 0 : index
    %c0_5 = arith.constant 0 : index
    %c0_6 = arith.constant 0 : index
    %4 = vector.load %arg3[%c0_4, %c0_5, %c0_6] : memref<9x16x32xf32, #tpu.memory_space<vmem>>, vector<1x16x32xf32>
    %5 = vector.shape_cast %4 : vector<1x16x32xf32> to vector<16x32xf32>
    %cst_7 = arith.constant dense<0.000000e+00> : vector<256x32xf32>
    %6 = tpu.matmul %3, %5, %cst_7 {dimension_numbers = #tpu.dot_dimension_numbers<[1], [0], [0], [1], [0, 0, 1, 1], [], []>} : vector<256x16xf32>, vector<16x32xf32>, vector<256x32xf32> -> vector<256x32xf32>
    %7 = arith.addf %0, %6 : vector<256x32xf32>
    %c0_8 = arith.constant 0 : index
    %c0_9 = arith.constant 0 : index
    %c0_10 = arith.constant 0 : index
    %c1 = arith.constant 1 : index
    %c0_11 = arith.constant 0 : index
    %8 = vector.load %arg2[%c0_8, %c0_9, %c0_10, %c1, %c0_11] : memref<1x1x18x18x16xf32, #tpu.memory_space<vmem>>, vector<1x1x16x16x16xf32>
    %9 = vector.shape_cast %8 : vector<1x1x16x16x16xf32> to vector<16x16x16xf32>
    %10 = vector.shape_cast %9 : vector<16x16x16xf32> to vector<256x16xf32>
    %c1_12 = arith.constant 1 : index
    %c0_13 = arith.constant 0 : index
    %c0_14 = arith.constant 0 : index
    %11 = vector.load %arg3[%c1_12, %c0_13, %c0_14] : memref<9x16x32xf32, #tpu.memory_space<vmem>>, vector<1x16x32xf32>
    %12 = vector.shape_cast %11 : vector<1x16x32xf32> to vector<16x32xf32>
    %cst_15 = arith.constant dense<0.000000e+00> : vector<256x32xf32>
    %13 = tpu.matmul %10, %12, %cst_15 {dimension_numbers = #tpu.dot_dimension_numbers<[1], [0], [0], [1], [0, 0, 1, 1], [], []>} : vector<256x16xf32>, vector<16x32xf32>, vector<256x32xf32> -> vector<256x32xf32>
    %14 = arith.addf %7, %13 : vector<256x32xf32>
    %c0_16 = arith.constant 0 : index
    %c0_17 = arith.constant 0 : index
    %c0_18 = arith.constant 0 : index
    %c2 = arith.constant 2 : index
    %c0_19 = arith.constant 0 : index
    %15 = vector.load %arg2[%c0_16, %c0_17, %c0_18, %c2, %c0_19] : memref<1x1x18x18x16xf32, #tpu.memory_space<vmem>>, vector<1x1x16x16x16xf32>
    %16 = vector.shape_cast %15 : vector<1x1x16x16x16xf32> to vector<16x16x16xf32>
    %17 = vector.shape_cast %16 : vector<16x16x16xf32> to vector<256x16xf32>
    %c2_20 = arith.constant 2 : index
    %c0_21 = arith.constant 0 : index
    %c0_22 = arith.constant 0 : index
    %18 = vector.load %arg3[%c2_20, %c0_21, %c0_22] : memref<9x16x32xf32, #tpu.memory_space<vmem>>, vector<1x16x32xf32>
    %19 = vector.shape_cast %18 : vector<1x16x32xf32> to vector<16x32xf32>
    %cst_23 = arith.constant dense<0.000000e+00> : vector<256x32xf32>
    %20 = tpu.matmul %17, %19, %cst_23 {dimension_numbers = #tpu.dot_dimension_numbers<[1], [0], [0], [1], [0, 0, 1, 1], [], []>} : vector<256x16xf32>, vector<16x32xf32>, vector<256x32xf32> -> vector<256x32xf32>
    %21 = arith.addf %14, %20 : vector<256x32xf32>
    %c0_24 = arith.constant 0 : index
    %c0_25 = arith.constant 0 : index
    %c1_26 = arith.constant 1 : index
    %c0_27 = arith.constant 0 : index
    %c0_28 = arith.constant 0 : index
    %22 = vector.load %arg2[%c0_24, %c0_25, %c1_26, %c0_27, %c0_28] : memref<1x1x18x18x16xf32, #tpu.memory_space<vmem>>, vector<1x1x16x16x16xf32>
    %23 = vector.shape_cast %22 : vector<1x1x16x16x16xf32> to vector<16x16x16xf32>
    %24 = vector.shape_cast %23 : vector<16x16x16xf32> to vector<256x16xf32>
    %c3 = arith.constant 3 : index
    %c0_29 = arith.constant 0 : index
    %c0_30 = arith.constant 0 : index
    %25 = vector.load %arg3[%c3, %c0_29, %c0_30] : memref<9x16x32xf32, #tpu.memory_space<vmem>>, vector<1x16x32xf32>
    %26 = vector.shape_cast %25 : vector<1x16x32xf32> to vector<16x32xf32>
    %cst_31 = arith.constant dense<0.000000e+00> : vector<256x32xf32>
    %27 = tpu.matmul %24, %26, %cst_31 {dimension_numbers = #tpu.dot_dimension_numbers<[1], [0], [0], [1], [0, 0, 1, 1], [], []>} : vector<256x16xf32>, vector<16x32xf32>, vector<256x32xf32> -> vector<256x32xf32>
    %28 = arith.addf %21, %27 : vector<256x32xf32>
    %c0_32 = arith.constant 0 : index
    %c0_33 = arith.constant 0 : index
    %c1_34 = arith.constant 1 : index
    %c1_35 = arith.constant 1 : index
    %c0_36 = arith.constant 0 : index
    %29 = vector.load %arg2[%c0_32, %c0_33, %c1_34, %c1_35, %c0_36] : memref<1x1x18x18x16xf32, #tpu.memory_space<vmem>>, vector<1x1x16x16x16xf32>
    %30 = vector.shape_cast %29 : vector<1x1x16x16x16xf32> to vector<16x16x16xf32>
    %31 = vector.shape_cast %30 : vector<16x16x16xf32> to vector<256x16xf32>
    %c4 = arith.constant 4 : index
    %c0_37 = arith.constant 0 : index
    %c0_38 = arith.constant 0 : index
    %32 = vector.load %arg3[%c4, %c0_37, %c0_38] : memref<9x16x32xf32, #tpu.memory_space<vmem>>, vector<1x16x32xf32>
    %33 = vector.shape_cast %32 : vector<1x16x32xf32> to vector<16x32xf32>
    %cst_39 = arith.constant dense<0.000000e+00> : vector<256x32xf32>
    %34 = tpu.matmul %31, %33, %cst_39 {dimension_numbers = #tpu.dot_dimension_numbers<[1], [0], [0], [1], [0, 0, 1, 1], [], []>} : vector<256x16xf32>, vector<16x32xf32>, vector<256x32xf32> -> vector<256x32xf32>
    %35 = arith.addf %28, %34 : vector<256x32xf32>
    %c0_40 = arith.constant 0 : index
    %c0_41 = arith.constant 0 : index
    %c1_42 = arith.constant 1 : index
    %c2_43 = arith.constant 2 : index
    %c0_44 = arith.constant 0 : index
    %36 = vector.load %arg2[%c0_40, %c0_41, %c1_42, %c2_43, %c0_44] : memref<1x1x18x18x16xf32, #tpu.memory_space<vmem>>, vector<1x1x16x16x16xf32>
    %37 = vector.shape_cast %36 : vector<1x1x16x16x16xf32> to vector<16x16x16xf32>
    %38 = vector.shape_cast %37 : vector<16x16x16xf32> to vector<256x16xf32>
    %c5 = arith.constant 5 : index
    %c0_45 = arith.constant 0 : index
    %c0_46 = arith.constant 0 : index
    %39 = vector.load %arg3[%c5, %c0_45, %c0_46] : memref<9x16x32xf32, #tpu.memory_space<vmem>>, vector<1x16x32xf32>
    %40 = vector.shape_cast %39 : vector<1x16x32xf32> to vector<16x32xf32>
    %cst_47 = arith.constant dense<0.000000e+00> : vector<256x32xf32>
    %41 = tpu.matmul %38, %40, %cst_47 {dimension_numbers = #tpu.dot_dimension_numbers<[1], [0], [0], [1], [0, 0, 1, 1], [], []>} : vector<256x16xf32>, vector<16x32xf32>, vector<256x32xf32> -> vector<256x32xf32>
    %42 = arith.addf %35, %41 : vector<256x32xf32>
    %c0_48 = arith.constant 0 : index
    %c0_49 = arith.constant 0 : index
    %c2_50 = arith.constant 2 : index
    %c0_51 = arith.constant 0 : index
    %c0_52 = arith.constant 0 : index
    %43 = vector.load %arg2[%c0_48, %c0_49, %c2_50, %c0_51, %c0_52] : memref<1x1x18x18x16xf32, #tpu.memory_space<vmem>>, vector<1x1x16x16x16xf32>
    %44 = vector.shape_cast %43 : vector<1x1x16x16x16xf32> to vector<16x16x16xf32>
    %45 = vector.shape_cast %44 : vector<16x16x16xf32> to vector<256x16xf32>
    %c6 = arith.constant 6 : index
    %c0_53 = arith.constant 0 : index
    %c0_54 = arith.constant 0 : index
    %46 = vector.load %arg3[%c6, %c0_53, %c0_54] : memref<9x16x32xf32, #tpu.memory_space<vmem>>, vector<1x16x32xf32>
    %47 = vector.shape_cast %46 : vector<1x16x32xf32> to vector<16x32xf32>
    %cst_55 = arith.constant dense<0.000000e+00> : vector<256x32xf32>
    %48 = tpu.matmul %45, %47, %cst_55 {dimension_numbers = #tpu.dot_dimension_numbers<[1], [0], [0], [1], [0, 0, 1, 1], [], []>} : vector<256x16xf32>, vector<16x32xf32>, vector<256x32xf32> -> vector<256x32xf32>
    %49 = arith.addf %42, %48 : vector<256x32xf32>
    %c0_56 = arith.constant 0 : index
    %c0_57 = arith.constant 0 : index
    %c2_58 = arith.constant 2 : index
    %c1_59 = arith.constant 1 : index
    %c0_60 = arith.constant 0 : index
    %50 = vector.load %arg2[%c0_56, %c0_57, %c2_58, %c1_59, %c0_60] : memref<1x1x18x18x16xf32, #tpu.memory_space<vmem>>, vector<1x1x16x16x16xf32>
    %51 = vector.shape_cast %50 : vector<1x1x16x16x16xf32> to vector<16x16x16xf32>
    %52 = vector.shape_cast %51 : vector<16x16x16xf32> to vector<256x16xf32>
    %c7 = arith.constant 7 : index
    %c0_61 = arith.constant 0 : index
    %c0_62 = arith.constant 0 : index
    %53 = vector.load %arg3[%c7, %c0_61, %c0_62] : memref<9x16x32xf32, #tpu.memory_space<vmem>>, vector<1x16x32xf32>
    %54 = vector.shape_cast %53 : vector<1x16x32xf32> to vector<16x32xf32>
    %cst_63 = arith.constant dense<0.000000e+00> : vector<256x32xf32>
    %55 = tpu.matmul %52, %54, %cst_63 {dimension_numbers = #tpu.dot_dimension_numbers<[1], [0], [0], [1], [0, 0, 1, 1], [], []>} : vector<256x16xf32>, vector<16x32xf32>, vector<256x32xf32> -> vector<256x32xf32>
    %56 = arith.addf %49, %55 : vector<256x32xf32>
    %c0_64 = arith.constant 0 : index
    %c0_65 = arith.constant 0 : index
    %c2_66 = arith.constant 2 : index
    %c2_67 = arith.constant 2 : index
    %c0_68 = arith.constant 0 : index
    %57 = vector.load %arg2[%c0_64, %c0_65, %c2_66, %c2_67, %c0_68] : memref<1x1x18x18x16xf32, #tpu.memory_space<vmem>>, vector<1x1x16x16x16xf32>
    %58 = vector.shape_cast %57 : vector<1x1x16x16x16xf32> to vector<16x16x16xf32>
    %59 = vector.shape_cast %58 : vector<16x16x16xf32> to vector<256x16xf32>
    %c8 = arith.constant 8 : index
    %c0_69 = arith.constant 0 : index
    %c0_70 = arith.constant 0 : index
    %60 = vector.load %arg3[%c8, %c0_69, %c0_70] : memref<9x16x32xf32, #tpu.memory_space<vmem>>, vector<1x16x32xf32>
    %61 = vector.shape_cast %60 : vector<1x16x32xf32> to vector<16x32xf32>
    %cst_71 = arith.constant dense<0.000000e+00> : vector<256x32xf32>
    %62 = tpu.matmul %59, %61, %cst_71 {dimension_numbers = #tpu.dot_dimension_numbers<[1], [0], [0], [1], [0, 0, 1, 1], [], []>} : vector<256x16xf32>, vector<16x32xf32>, vector<256x32xf32> -> vector<256x32xf32>
    %63 = arith.addf %56, %62 : vector<256x32xf32>
    %c0_72 = arith.constant 0 : index
    %c0_73 = arith.constant 0 : index
    %64 = vector.load %arg4[%c0_72, %c0_73] : memref<1x32xf32, #tpu.memory_space<vmem>>, vector<1x32xf32>
    %65 = vector.broadcast %64 : vector<1x32xf32> to vector<256x32xf32>
    %66 = arith.mulf %63, %65 : vector<256x32xf32>
    %c0_74 = arith.constant 0 : index
    %c0_75 = arith.constant 0 : index
    %67 = vector.load %arg5[%c0_74, %c0_75] : memref<1x32xf32, #tpu.memory_space<vmem>>, vector<1x32xf32>
    %68 = vector.broadcast %67 : vector<1x32xf32> to vector<256x32xf32>
    %69 = arith.addf %66, %68 : vector<256x32xf32>
    %70 = vector.shape_cast %69 : vector<256x32xf32> to vector<16x16x32xf32>
    %c0_76 = arith.constant 0 : index
    %c0_77 = arith.constant 0 : index
    %c0_78 = arith.constant 0 : index
    %c0_79 = arith.constant 0 : index
    %71 = vector.load %arg6[%c0_76, %c0_77, %c0_78, %c0_79] : memref<1x16x16x32xf32, #tpu.memory_space<vmem>>, vector<1x16x16x32xf32>
    %72 = vector.shape_cast %71 : vector<1x16x16x32xf32> to vector<16x16x32xf32>
    %73 = vector.shape_cast %70 : vector<16x16x32xf32> to vector<1x16x16x32xf32>
    tpu.vector_store %arg6[%c0_76, %c0_77, %c0_78, %c0_79], %73 {strides = array<i32>} : memref<1x16x16x32xf32, #tpu.memory_space<vmem>>, vector<1x16x16x32xf32>,
    return
  }
  func.func @transform_0(%arg0: i32, %arg1: i32) -> (i32, i32, i32, i32, i32) {
    %c0_i32 = arith.constant 0 : i32
    %c0_i32_0 = arith.constant 0 : i32
    %c0_i32_1 = arith.constant 0 : i32
    %c0_i32_2 = arith.constant 0 : i32
    return %arg0, %arg1, %c0_i32, %c0_i32_0, %c0_i32_1 : i32, i32, i32, i32, i32
  }
  func.func @transform_1(%arg0: i32, %arg1: i32) -> (i32, i32, i32) {
    %c0_i32 = arith.constant 0 : i32
    %c0_i32_0 = arith.constant 0 : i32
    %c0_i32_1 = arith.constant 0 : i32
    %c0_i32_2 = arith.constant 0 : i32
    return %c0_i32, %c0_i32_0, %c0_i32_1 : i32, i32, i32
  }
  func.func @transform_2(%arg0: i32, %arg1: i32) -> (i32, i32) {
    %c0_i32 = arith.constant 0 : i32
    %c0_i32_0 = arith.constant 0 : i32
    %c0_i32_1 = arith.constant 0 : i32
    return %c0_i32, %c0_i32_0 : i32, i32
  }
  func.func @transform_3(%arg0: i32, %arg1: i32) -> (i32, i32) {
    %c0_i32 = arith.constant 0 : i32
    %c0_i32_0 = arith.constant 0 : i32
    %c0_i32_1 = arith.constant 0 : i32
    return %c0_i32, %c0_i32_0 : i32, i32
  }
  func.func @transform_4(%arg0: i32, %arg1: i32) -> (i32, i32, i32, i32) {
    %c0_i32 = arith.constant 0 : i32
    %c0_i32_0 = arith.constant 0 : i32
    %c0_i32_1 = arith.constant 0 : i32
    return %arg0, %arg1, %c0_i32, %c0_i32_0 : i32, i32, i32, i32
  }
}

</mosaic_0001>

<llo_original>
// kernel: basic_conv2d_forward.1
$region0: #{basic_conv2d_forward.1}
  #allocation0 [shape = 'u32[]', space=smem, size = 0x4, offset = 0x4, fixed_abs, tag = 'smem constant byte address 0x4 - core index']
  #allocation1 [shape = 'u32[144,128]{1,0:T(1,128)}', space=vmem, size = 0x12000, scoped, tag = 'internal scratch']
  %s0 = inlined_call_operand.vmem [shape: f32[2,1,18,18,16], index: 0, kind: input, shape index: {}]
  %s1 = inlined_call_operand.vmem [shape: f32[9,16,32], index: 1, kind: input, shape index: {}]
  %s2 = inlined_call_operand.vmem [shape: f32[1,32], index: 2, kind: input, shape index: {}]
  %s3 = inlined_call_operand.vmem [shape: f32[1,32], index: 3, kind: input, shape index: {}]
  %s4 = inlined_call_operand.hbm [shape: f32[2,16,16,32], index: 4, kind: output, shape index: {}]
  %s5 = sld [smem:[#allocation0]]
  $region49: #{basic_conv2d_forward.1} parent=0
    _
  %s7 = ssub.s32 1, %s5
  %s8 = scalar_select 0, %s7, %s5
  $region1: #{basic_conv2d_forward.1} parent=0
    #allocation2 [shape = 'u8[262144]{0}', space=vmem, size = 0x40000, scoped, tag = 'output window, operand 0']
    #allocation3 [shape = 's32[2]{0}', space=sflag, size = 0x8, scoped, tag = 'scoped memory for basic_conv2d_forward.1']
    %9 = vsyncpa [#allocation3], 0
    %s10 = scalar_lea.sflag [#allocation3], 1
    %11 = vsyncpa %s10, 0
    loop: start=0, step=1, limit=4
    $region2: #{basic_conv2d_forward.1} parent=1 // loop_pre_header
      _
    $region3: #{basic_conv2d_forward.1} parent=1 // loop_header
      %s13 = sphi 0, %s17
      %p14 = scmp.ge.s32.totalorder %s13, 4
      %s20 = sphi 0, %s32
      %s21 = sphi 0, %s28
      %s22 = sphi 0, %s20
      %s23 = sphi 0, %s21
      %s24 = sphi 0, %s22
      %s25 = sphi 0, %s23
      %s37 = sphi 0, %s39
      %s40 = sphi 0, %s37
      %s41 = sphi 0, %s40
      %s57 = sphi 0, %s41
      %s61 = sphi 0, %s61
      %s63 = sphi 0, %s61
      %s64 = sphi 0, %s63
      %s78 = sphi 0, %s64
      %s82 = sphi 0, %s82
      %s84 = sphi 0, %s82
      %s85 = sphi 0, %s84
      %s99 = sphi 0, %s85
      %s103 = sphi 0, %s103
      %s105 = sphi 0, %s103
      %s106 = sphi 0, %s105
      %s120 = sphi 0, %s106
      %s128 = sphi 0, %s130
      %s131 = sphi 0, %s128
      %s132 = sphi 0, %s131
      %s148 = sphi 0, %s132
    $region4: #{basic_conv2d_forward.1} parent=1 // loop_header_branch
      %16 = sbr.rel (%p14) target = $region8
    $region5: #{basic_conv2d_forward.1} parent=1 // loop_body
      %s18 = ssub.s32 %s13, 1
      %s19 = ssub.s32 %s13, 2
      %s26 = sadd.s32 1, %s21
      %p27 = scmp.ge.s32.totalorder %s26, 1
      %s28 = scalar_select %p27, 0, %s26
      %s29 = sadd.s32 1, %s20
      %s30 = scalar_select %p27, %s29, %s20
      %p31 = scmp.ge.s32.totalorder %s30, 2
      %s32 = scalar_select %p31, 0, %s30
      %s33 = ssub.s32 %s20, %s32
      %s34 = ssub.s32 %s21, %s28
      %s35 = sor.u32 %s33, %s34
      %p36 = scmp.eq.s32.totalorder %s35, 0
      %s38 = sadd.s32 %s37, 1
      %s39 = scalar_select %p36, %s37, %s38
      %p42 = pneg %p36
      %p43 = scmp.eq.s32.totalorder %s13, 1
      %p44 = por %p42, %p43
      %p45 = scmp.ne.s32.totalorder %s37, %s40
      %p46 = scmp.eq.s32.totalorder %s13, 0
      %p47 = por %p45, %p46
      %p48 = scmp.ne.s32.totalorder %s37, %s40
      %p49 = scmp.eq.s32.totalorder %s18, 1
      %p50 = por %p48, %p49
      %p51 = scmp.ne.s32.totalorder %s40, %s41
      %p52 = scmp.eq.s32.totalorder %s18, 0
      %p53 = por %p51, %p52
      %p54 = scmp.ne.s32.totalorder %s40, %s41
      %p55 = scmp.eq.s32.totalorder %s19, 1
      %p56 = por %p54, %p55
      %p58 = scmp.ne.s32.totalorder %s41, %s57
      %p59 = scmp.eq.s32.totalorder %s19, 0
      %p60 = por %p58, %p59
      %s62 = sadd.s32 %s61, 1
      %p65 = scmp.eq.s32.totalorder %s13, 1
      %p66 = scmp.ne.s32.totalorder %s61, %s63
      %p67 = scmp.eq.s32.totalorder %s13, 0
      %p68 = por %p66, %p67
      %p69 = scmp.ne.s32.totalorder %s61, %s63
      %p70 = scmp.eq.s32.totalorder %s18, 1
      %p71 = por %p69, %p70
      %p72 = scmp.ne.s32.totalorder %s63, %s64
      %p73 = scmp.eq.s32.totalorder %s18, 0
      %p74 = por %p72, %p73
      %p75 = scmp.ne.s32.totalorder %s63, %s64
      %p76 = scmp.eq.s32.totalorder %s19, 1
      %p77 = por %p75, %p76
      %p79 = scmp.ne.s32.totalorder %s64, %s78
      %p80 = scmp.eq.s32.totalorder %s19, 0
      %p81 = por %p79, %p80
      %s83 = sadd.s32 %s82, 1
      %p86 = scmp.eq.s32.totalorder %s13, 1
      %p87 = scmp.ne.s32.totalorder %s82, %s84
      %p88 = scmp.eq.s32.totalorder %s13, 0
      %p89 = por %p87, %p88
      %p90 = scmp.ne.s32.totalorder %s82, %s84
      %p91 = scmp.eq.s32.totalorder %s18, 1
      %p92 = por %p90, %p91
      %p93 = scmp.ne.s32.totalorder %s84, %s85
      %p94 = scmp.eq.s32.totalorder %s18, 0
      %p95 = por %p93, %p94
      %p96 = scmp.ne.s32.totalorder %s84, %s85
      %p97 = scmp.eq.s32.totalorder %s19, 1
      %p98 = por %p96, %p97
      %p100 = scmp.ne.s32.totalorder %s85, %s99
      %p101 = scmp.eq.s32.totalorder %s19, 0
      %p102 = por %p100, %p101
      %s104 = sadd.s32 %s103, 1
      %p107 = scmp.eq.s32.totalorder %s13, 1
      %p108 = scmp.ne.s32.totalorder %s103, %s105
      %p109 = scmp.eq.s32.totalorder %s13, 0
      %p110 = por %p108, %p109
      %p111 = scmp.ne.s32.totalorder %s103, %s105
      %p112 = scmp.eq.s32.totalorder %s18, 1
      %p113 = por %p111, %p112
      %p114 = scmp.ne.s32.totalorder %s105, %s106
      %p115 = scmp.eq.s32.totalorder %s18, 0
      %p116 = por %p114, %p115
      %p117 = scmp.ne.s32.totalorder %s105, %s106
      %p118 = scmp.eq.s32.totalorder %s19, 1
      %p119 = por %p117, %p118
      %p121 = scmp.ne.s32.totalorder %s106, %s120
      %p122 = scmp.eq.s32.totalorder %s19, 0
      %p123 = por %p121, %p122
      %s124 = ssub.s32 %s20, %s32
      %s125 = ssub.s32 %s21, %s28
      %s126 = sor.u32 %s124, %s125
      %p127 = scmp.eq.s32.totalorder %s126, 0
      %s129 = sadd.s32 %s128, 1
      %s130 = scalar_select %p127, %s128, %s129
      %p133 = pneg %p127
      %p134 = scmp.eq.s32.totalorder %s13, 1
      %p135 = por %p133, %p134
      %p136 = scmp.ne.s32.totalorder %s128, %s131
      %p137 = scmp.eq.s32.totalorder %s13, 0
      %p138 = por %p136, %p137
      %p139 = scmp.ne.s32.totalorder %s128, %s131
      %p140 = scmp.eq.s32.totalorder %s18, 1
      %p141 = por %p139, %p140
      %p142 = scmp.ne.s32.totalorder %s131, %s132
      %p143 = scmp.eq.s32.totalorder %s18, 0
      %p144 = por %p142, %p143
      %p145 = scmp.ne.s32.totalorder %s131, %s132
      %p146 = scmp.eq.s32.totalorder %s19, 1
      %p147 = por %p145, %p146
      %p149 = scmp.ne.s32.totalorder %s132, %s148
      %p150 = scmp.eq.s32.totalorder %s19, 0
      %p151 = por %p149, %p150
      %p152 = scmp.le.s32.totalorder 1, %s13
      %p153 = scmp.lt.s32.totalorder %s13, 3
      %p154 = pnand %p152, %p153
      %p155 = pneg %p154
      // Predicated region
      $region9: #{basic_conv2d_forward.1} parent=5 // pred_check
        _
      $region10: #{basic_conv2d_forward.1} parent=5 // pred_check_branch
        %157 = sbr.rel (%p154) target = $region12
      $region11: #{basic_conv2d_forward.1} parent=5 // pred_region
        %s158 = ssub.s32 %s13, 1
        // Predicated region
        $region13: #{basic_conv2d_forward.1} parent=11 // pred_check
          %p159 = pneg %p74
        $region14: #{basic_conv2d_forward.1} parent=11 // pred_check_branch
          %161 = sbr.rel (%p159) target = $region16
        $region15: #{basic_conv2d_forward.1} parent=11 // pred_region
          _
        $region16: #{basic_conv2d_forward.1} parent=11 // pred_fallthru
          _
        // Predicated region
        $region17: #{basic_conv2d_forward.1} parent=11 // pred_check
          %p162 = pneg %p95
        $region18: #{basic_conv2d_forward.1} parent=11 // pred_check_branch
          %164 = sbr.rel (%p162) target = $region20
        $region19: #{basic_conv2d_forward.1} parent=11 // pred_region
          _
        $region20: #{basic_conv2d_forward.1} parent=11 // pred_fallthru
          _
        // Predicated region
        $region21: #{basic_conv2d_forward.1} parent=11 // pred_check
          %p165 = pneg %p116
        $region22: #{basic_conv2d_forward.1} parent=11 // pred_check_branch
          %167 = sbr.rel (%p165) target = $region24
        $region23: #{basic_conv2d_forward.1} parent=11 // pred_region
          _
        $region24: #{basic_conv2d_forward.1} parent=11 // pred_fallthru
          _
      $region12: #{basic_conv2d_forward.1} parent=5 // pred_fallthru
        _
      %p168 = scmp.lt.s32.totalorder %s13, 2
      // Predicated region
      $region25: #{basic_conv2d_forward.1} parent=5 // pred_check
        %p169 = pneg %p168
      $region26: #{basic_conv2d_forward.1} parent=5 // pred_check_branch
        %171 = sbr.rel (%p169) target = $region28
      $region27: #{basic_conv2d_forward.1} parent=5 // pred_region
        // Predicated region
        $region29: #{basic_conv2d_forward.1} parent=27 // pred_check
          %p172 = pneg %p47
        $region30: #{basic_conv2d_forward.1} parent=27 // pred_check_branch
          %174 = sbr.rel (%p172) target = $region32
        $region31: #{basic_conv2d_forward.1} parent=27 // pred_region
          %p175 = scmp.lt.s32.totalorder %s20, 1
          %s176 = scalar_select %p175, %s20, 1
          %p177 = scmp.lt.s32.totalorder %s21, 0
          %s178 = scalar_select %p177, %s21, 0
          %s179 = smul.addr %s178, 54
          %s180 = smul.addr %s176, 54
          %s181 = sadd.s32 %s179, %s180
          %s182 = smul.addr %s181, 8
          %s183 = scalar_lea.vmem %s0, %s182
        $region32: #{basic_conv2d_forward.1} parent=27 // pred_fallthru
          _
      $region28: #{basic_conv2d_forward.1} parent=5 // pred_fallthru
        _
      %p184 = scmp.le.s32.totalorder 1, %s13
      %p185 = scmp.lt.s32.totalorder %s13, 3
      %p186 = pnand %p184, %p185
      %p187 = pneg %p186
      // Predicated region
      $region33: #{basic_conv2d_forward.1} parent=5 // pred_check
        _
      $region34: #{basic_conv2d_forward.1} parent=5 // pred_check_branch
        %189 = sbr.rel (%p186) target = $region36
      $region35: #{basic_conv2d_forward.1} parent=5 // pred_region
        %s190 = ssub.s32 %s13, 1
        %p191 = scmp.lt.s32.totalorder %s22, 1
        %s192 = scalar_select %p191, %s22, 1
        %p193 = scmp.lt.s32.totalorder %s23, 0
        %s194 = scalar_select %p193, %s23, 0
        %s195 = smul.addr %s194, 54
        %s196 = smul.addr %s192, 54
        %s197 = sadd.s32 %s195, %s196
        %s198 = smul.addr %s197, 8
        %s199 = scalar_lea.vmem %s0, %s198
        %p200 = pneg %p53
        %p201 = pneg %p50
        %p202 = pneg %p74
        %p203 = pneg %p71
        %p204 = pneg %p95
        %p205 = pneg %p92
        %p206 = pneg %p116
        %p207 = pneg %p113
        %p208 = pneg %p144
        %p209 = pneg %p141
        %s210 = sand.u32 %s131, 1
        %s211 = scalar_lea.sflag [#allocation3], %s210
        %s212 = sand.u32 %s131, 1
        %s213 = smul.addr %s212, 256
        %s214 = scalar_lea.vmem [#allocation2], %s213
        %p215 = scmp.lt.s32.totalorder %s22, 1
        %s216 = scalar_select %p215, %s22, 1
        %p217 = scmp.lt.s32.totalorder %s23, 0
        %s218 = scalar_select %p217, %s23, 0
        %s219 = smul.addr %s218, 54
        %s220 = smul.addr %s216, 54
        %s221 = sadd.s32 %s219, %s220
        %s222 = smul.addr %s221, 8
        %s223 = scalar_lea.vmem %s0, %s222
        %s224 = smul.u32 16, %s23
        %v225 = vld [vmem:[%s223] sm:$0xff]
        %v226 = vld [vmem:[%s223 + $0x8] sm:$0xff]
        %v227 = vld [vmem:[%s223 + $0x18] sm:$0xff]
        %v228 = vld [vmem:[%s223 + $0x20] sm:$0xff]
        %v229 = vld [vmem:[%s223 + $0x30] sm:$0xff]
        %v230 = vld [vmem:[%s223 + $0x38] sm:$0xff]
        %v231 = vld [vmem:[%s223 + $0x48] sm:$0xff]
        %v232 = vld [vmem:[%s223 + $0x50] sm:$0xff]
        %v233 = vld [vmem:[%s223 + $0x60] sm:$0xff]
        %v234 = vld [vmem:[%s223 + $0x68] sm:$0xff]
        %v235 = vld [vmem:[%s223 + $0x78] sm:$0xff]
        %v236 = vld [vmem:[%s223 + $0x80] sm:$0xff]
        %v237 = vld [vmem:[%s223 + $0x90] sm:$0xff]
        %v238 = vld [vmem:[%s223 + $0x98] sm:$0xff]
        %v239 = vld [vmem:[%s223 + $0xa8] sm:$0xff]
        %v240 = vld [vmem:[%s223 + $0xb0] sm:$0xff]
        %v241 = vld [vmem:[%s223 + $0xc0] sm:$0xff]
        %v242 = vld [vmem:[%s223 + $0xc8] sm:$0xff]
        %v243 = vld [vmem:[%s223 + $0xd8] sm:$0xff]
        %v244 = vld [vmem:[%s223 + $0xe0] sm:$0xff]
        %v245 = vld [vmem:[%s223 + $0xf0] sm:$0xff]
        %v246 = vld [vmem:[%s223 + $0xf8] sm:$0xff]
        %v247 = vld [vmem:[%s223 + $0x108] sm:$0xff]
        %v248 = vld [vmem:[%s223 + $0x110] sm:$0xff]
        %v249 = vld [vmem:[%s223 + $0x120] sm:$0xff]
        %v250 = vld [vmem:[%s223 + $0x128] sm:$0xff]
        %v251 = vld [vmem:[%s223 + $0x138] sm:$0xff]
        %v252 = vld [vmem:[%s223 + $0x140] sm:$0xff]
        %v253 = vld [vmem:[%s223 + $0x150] sm:$0xff]
        %v254 = vld [vmem:[%s223 + $0x158] sm:$0xff]
        %v255 = vld [vmem:[%s223 + $0x168] sm:$0xff]
        %v256 = vld [vmem:[%s223 + $0x170] sm:$0xff]
        %v257 = vld [vmem:[%s1] sm:$0xff]
        %v258 = vld [vmem:[%s1 + $0x8] sm:$0xff]
        %v259 = vld [vmem:[%s223 + $0x1] sm:$0xff]
        %v260 = vld [vmem:[%s223 + $0x9] sm:$0xff]
        %v261 = vld [vmem:[%s223 + $0x19] sm:$0xff]
        %v262 = vld [vmem:[%s223 + $0x21] sm:$0xff]
        %v263 = vld [vmem:[%s223 + $0x31] sm:$0xff]
        %v264 = vld [vmem:[%s223 + $0x39] sm:$0xff]
        %v265 = vld [vmem:[%s223 + $0x49] sm:$0xff]
        %v266 = vld [vmem:[%s223 + $0x51] sm:$0xff]
        %v267 = vld [vmem:[%s223 + $0x61] sm:$0xff]
        %v268 = vld [vmem:[%s223 + $0x69] sm:$0xff]
        %v269 = vld [vmem:[%s223 + $0x79] sm:$0xff]
        %v270 = vld [vmem:[%s223 + $0x81] sm:$0xff]
        %v271 = vld [vmem:[%s223 + $0x91] sm:$0xff]
        %v272 = vld [vmem:[%s223 + $0x99] sm:$0xff]
        %v273 = vld [vmem:[%s223 + $0xa9] sm:$0xff]
        %v274 = vld [vmem:[%s223 + $0xb1] sm:$0xff]
        %v275 = vld [vmem:[%s223 + $0xc1] sm:$0xff]
        %v276 = vld [vmem:[%s223 + $0xc9] sm:$0xff]
        %v277 = vld [vmem:[%s223 + $0xd9] sm:$0xff]
        %v278 = vld [vmem:[%s223 + $0xe1] sm:$0xff]
        %v279 = vld [vmem:[%s223 + $0xf1] sm:$0xff]
        %v280 = vld [vmem:[%s223 + $0xf9] sm:$0xff]
        %v281 = vld [vmem:[%s223 + $0x109] sm:$0xff]
        %v282 = vld [vmem:[%s223 + $0x111] sm:$0xff]
        %v283 = vld [vmem:[%s223 + $0x121] sm:$0xff]
        %v284 = vld [vmem:[%s223 + $0x129] sm:$0xff]
        %v285 = vld [vmem:[%s223 + $0x139] sm:$0xff]
        %v286 = vld [vmem:[%s223 + $0x141] sm:$0xff]
        %v287 = vld [vmem:[%s223 + $0x151] sm:$0xff]
        %v288 = vld [vmem:[%s223 + $0x159] sm:$0xff]
        %v289 = vld [vmem:[%s223 + $0x169] sm:$0xff]
        %v290 = vld [vmem:[%s223 + $0x171] sm:$0xff]
        %s291 = scalar_lea.vmem %s1, 16
        %v292 = vld [vmem:[%s291] sm:$0xff]
        %v293 = vld [vmem:[%s291 + $0x8] sm:$0xff]
        %vm294 = vcmask 130048
        %v296 = vsel %vm294, %v259, 0
        %v299 = vsel %vm294, %v260, 0
        %v302 = vsel %vm294, %v261, 0
        %v305 = vsel %vm294, %v262, 0
        %v308 = vsel %vm294, %v263, 0
        %v311 = vsel %vm294, %v264, 0
        %v314 = vsel %vm294, %v265, 0
        %v317 = vsel %vm294, %v266, 0
        %v320 = vsel %vm294, %v267, 0
        %v323 = vsel %vm294, %v268, 0
        %v326 = vsel %vm294, %v269, 0
        %v329 = vsel %vm294, %v270, 0
        %v332 = vsel %vm294, %v271, 0
        %v335 = vsel %vm294, %v272, 0
        %v338 = vsel %vm294, %v273, 0
        %v341 = vsel %vm294, %v274, 0
        %v344 = vsel %vm294, %v275, 0
        %v347 = vsel %vm294, %v276, 0
        %v350 = vsel %vm294, %v277, 0
        %v353 = vsel %vm294, %v278, 0
        %v356 = vsel %vm294, %v279, 0
        %v359 = vsel %vm294, %v280, 0
        %v362 = vsel %vm294, %v281, 0
        %v365 = vsel %vm294, %v282, 0
        %v368 = vsel %vm294, %v283, 0
        %v371 = vsel %vm294, %v284, 0
        %v374 = vsel %vm294, %v285, 0
        %v377 = vsel %vm294, %v286, 0
        %v380 = vsel %vm294, %v287, 0
        %v383 = vsel %vm294, %v288, 0
        %v386 = vsel %vm294, %v289, 0
        %v389 = vsel %vm294, %v290, 0
        %391 = vmatprep.subr.mxu0 0.0
        %392 = vmatpush1.msra.mxu0 0.0
        %393 = vmatprep.subr.mxu0 0.0
        %394 = vmatpush1.msra.mxu0 0.0
        %395 = vmatprep.subr.mxu0 0.0
        %396 = vmatpush1.msra.mxu0 0.0
        %397 = vmatprep.subr.mxu0 0.0
        %398 = vmatpush1.msra.mxu0 0.0
        %399 = vmatprep.subr.mxu0 0.0
        %400 = vmatpush1.msra.mxu0 0.0
        %401 = vmatprep.subr.mxu0 0.0
        %402 = vmatpush1.msra.mxu0 0.0
        %403 = vmatprep.subr.mxu0 0.0
        %404 = vmatpush1.msra.mxu0 0.0
        %405 = vmatprep.subr.mxu0 0.0
        %406 = vmatpush1.msra.mxu0 0.0
        %407 = vmatprep.subr.mxu0 0.0
        %408 = vmatpush1.msra.mxu0 0.0
        %409 = vmatprep.subr.mxu0 0.0
        %410 = vmatpush1.msra.mxu0 0.0
        %411 = vmatprep.subr.mxu0 0.0
        %412 = vmatpush1.msra.mxu0 0.0
        %413 = vmatprep.subr.mxu0 0.0
        %414 = vmatpush1.msra.mxu0 0.0
        %415 = vmatprep.subr.mxu0 0.0
        %416 = vmatpush1.msra.mxu0 0.0
        %417 = vmatprep.subr.mxu0 0.0
        %418 = vmatpush1.msra.mxu0 0.0
        %419 = vmatprep.subr.mxu0 0.0
        %420 = vmatpush1.msra.mxu0 %v293
        %421 = vmatprep.subr.mxu0 0.0
        %422 = vmatpush1.msra.mxu0 %v292
        %423 = vmatprep.subr.mxu0 0.0
        %424 = vmatpush2.msra.mxu0 0.0
        %425 = vmatprep.subr.mxu0 0.0
        %426 = vmatpush2.msra.mxu0 0.0
        %427 = vmatprep.subr.mxu0 0.0
        %428 = vmatpush2.msra.mxu0 0.0
        %429 = vmatprep.subr.mxu0 0.0
        %430 = vmatpush2.msra.mxu0 0.0
        %431 = vmatprep.subr.mxu0 0.0
        %432 = vmatpush2.msra.mxu0 0.0
        %433 = vmatprep.subr.mxu0 0.0
        %434 = vmatpush2.msra.mxu0 0.0
        %435 = vmatprep.subr.mxu0 0.0
        %436 = vmatpush2.msra.mxu0 0.0
        %437 = vmatprep.subr.mxu0 0.0
        %438 = vmatpush2.msra.mxu0 0.0
        %439 = vmatprep.subr.mxu0 0.0
        %440 = vmatpush2.msra.mxu0 0.0
        %441 = vmatprep.subr.mxu0 0.0
        %442 = vmatpush2.msra.mxu0 0.0
        %443 = vmatprep.subr.mxu0 0.0
        %444 = vmatpush2.msra.mxu0 0.0
        %445 = vmatprep.subr.mxu0 0.0
        %446 = vmatpush2.msra.mxu0 0.0
        %447 = vmatprep.subr.mxu0 0.0
        %448 = vmatpush2.msra.mxu0 0.0
        %449 = vmatprep.subr.mxu0 0.0
        %450 = vmatpush2.msra.mxu0 0.0
        %451 = vmatprep.subr.mxu0 0.0
        %452 = vmatpush2.msra.mxu0 0.0
        %453 = vmatprep.subr.mxu0 0.0
        %454 = vmatpush2.msra.mxu0 0.0
        %455 = vmatprep.mubr.f32.mxu0 0.0
        %456 = vmatmul.mubr.f32.gmra.mxu0 %v296
        %v457 = vpop.f32.mrf.mxu0
        %v458 = vadd.f32 0.0, %v457
        %v459 = vpop.f32.mrf.mxu0
        %460 = vmatprep.mubr.f32.mxu0 0.0
        %461 = vmatmul.mubr.f32.gmra.mxu0 %v299
        %v462 = vpop.f32.mrf.mxu0
        %v463 = vadd.f32 0.0, %v462
        %v464 = vpop.f32.mrf.mxu0
        %465 = vmatprep.mubr.f32.mxu0 0.0
        %466 = vmatmul.mubr.f32.gmra.mxu0 %v302
        %v467 = vpop.f32.mrf.mxu0
        %v468 = vadd.f32 0.0, %v467
        %v469 = vpop.f32.mrf.mxu0
        %470 = vmatprep.mubr.f32.mxu0 0.0
        %471 = vmatmul.mubr.f32.gmra.mxu0 %v305
        %v472 = vpop.f32.mrf.mxu0
        %v473 = vadd.f32 0.0, %v472
        %v474 = vpop.f32.mrf.mxu0
        %475 = vmatprep.mubr.f32.mxu0 0.0
        %476 = vmatmul.mubr.f32.gmra.mxu0 %v308
        %v477 = vpop.f32.mrf.mxu0
        %v478 = vadd.f32 0.0, %v477
        %v479 = vpop.f32.mrf.mxu0
        %480 = vmatprep.mubr.f32.mxu0 0.0
        %481 = vmatmul.mubr.f32.gmra.mxu0 %v311
        %v482 = vpop.f32.mrf.mxu0
        %v483 = vadd.f32 0.0, %v482
        %v484 = vpop.f32.mrf.mxu0
        %485 = vmatprep.mubr.f32.mxu0 0.0
        %486 = vmatmul.mubr.f32.gmra.mxu0 %v314
        %v487 = vpop.f32.mrf.mxu0
        %v488 = vadd.f32 0.0, %v487
        %v489 = vpop.f32.mrf.mxu0
        %490 = vmatprep.mubr.f32.mxu0 0.0
        %491 = vmatmul.mubr.f32.gmra.mxu0 %v317
        %v492 = vpop.f32.mrf.mxu0
        %v493 = vadd.f32 0.0, %v492
        %v494 = vpop.f32.mrf.mxu0
        %495 = vmatprep.mubr.f32.mxu0 0.0
        %496 = vmatmul.mubr.f32.gmra.mxu0 %v320
        %v497 = vpop.f32.mrf.mxu0
        %v498 = vadd.f32 0.0, %v497
        %v499 = vpop.f32.mrf.mxu0
        %500 = vmatprep.mubr.f32.mxu0 0.0
        %501 = vmatmul.mubr.f32.gmra.mxu0 %v323
        %v502 = vpop.f32.mrf.mxu0
        %v503 = vadd.f32 0.0, %v502
        %v504 = vpop.f32.mrf.mxu0
        %505 = vmatprep.mubr.f32.mxu0 0.0
        %506 = vmatmul.mubr.f32.gmra.mxu0 %v326
        %v507 = vpop.f32.mrf.mxu0
        %v508 = vadd.f32 0.0, %v507
        %v509 = vpop.f32.mrf.mxu0
        %510 = vmatprep.mubr.f32.mxu0 0.0
        %511 = vmatmul.mubr.f32.gmra.mxu0 %v329
        %v512 = vpop.f32.mrf.mxu0
        %v513 = vadd.f32 0.0, %v512
        %v514 = vpop.f32.mrf.mxu0
        %515 = vmatprep.mubr.f32.mxu0 0.0
        %516 = vmatmul.mubr.f32.gmra.mxu0 %v332
        %v517 = vpop.f32.mrf.mxu0
        %v518 = vadd.f32 0.0, %v517
        %v519 = vpop.f32.mrf.mxu0
        %520 = vmatprep.mubr.f32.mxu0 0.0
        %521 = vmatmul.mubr.f32.gmra.mxu0 %v335
        %v522 = vpop.f32.mrf.mxu0
        %v523 = vadd.f32 0.0, %v522
        %v524 = vpop.f32.mrf.mxu0
        %525 = vmatprep.mubr.f32.mxu0 0.0
        %526 = vmatmul.mubr.f32.gmra.mxu0 %v338
        %v527 = vpop.f32.mrf.mxu0
        %v528 = vadd.f32 0.0, %v527
        %v529 = vpop.f32.mrf.mxu0
        %530 = vmatprep.mubr.f32.mxu0 0.0
        %531 = vmatmul.mubr.f32.gmra.mxu0 %v341
        %v532 = vpop.f32.mrf.mxu0
        %v533 = vadd.f32 0.0, %v532
        %v534 = vpop.f32.mrf.mxu0
        %535 = vmatprep.mubr.f32.mxu0 0.0
        %536 = vmatmul.mubr.f32.gmra.mxu0 %v344
        %v537 = vpop.f32.mrf.mxu0
        %v538 = vadd.f32 0.0, %v537
        %v539 = vpop.f32.mrf.mxu0
        %540 = vmatprep.mubr.f32.mxu0 0.0
        %541 = vmatmul.mubr.f32.gmra.mxu0 %v347
        %v542 = vpop.f32.mrf.mxu0
        %v543 = vadd.f32 0.0, %v542
        %v544 = vpop.f32.mrf.mxu0
        %545 = vmatprep.mubr.f32.mxu0 0.0
        %546 = vmatmul.mubr.f32.gmra.mxu0 %v350
        %v547 = vpop.f32.mrf.mxu0
        %v548 = vadd.f32 0.0, %v547
        %v549 = vpop.f32.mrf.mxu0
        %550 = vmatprep.mubr.f32.mxu0 0.0
        %551 = vmatmul.mubr.f32.gmra.mxu0 %v353
        %v552 = vpop.f32.mrf.mxu0
        %v553 = vadd.f32 0.0, %v552
        %v554 = vpop.f32.mrf.mxu0
        %555 = vmatprep.mubr.f32.mxu0 0.0
        %556 = vmatmul.mubr.f32.gmra.mxu0 %v356
        %v557 = vpop.f32.mrf.mxu0
        %v558 = vadd.f32 0.0, %v557
        %v559 = vpop.f32.mrf.mxu0
        %560 = vmatprep.mubr.f32.mxu0 0.0
        %561 = vmatmul.mubr.f32.gmra.mxu0 %v359
        %v562 = vpop.f32.mrf.mxu0
        %v563 = vadd.f32 0.0, %v562
        %v564 = vpop.f32.mrf.mxu0
        %565 = vmatprep.mubr.f32.mxu0 0.0
        %566 = vmatmul.mubr.f32.gmra.mxu0 %v362
        %v567 = vpop.f32.mrf.mxu0
        %v568 = vadd.f32 0.0, %v567
        %v569 = vpop.f32.mrf.mxu0
        %570 = vmatprep.mubr.f32.mxu0 0.0
        %571 = vmatmul.mubr.f32.gmra.mxu0 %v365
        %v572 = vpop.f32.mrf.mxu0
        %v573 = vadd.f32 0.0, %v572
        %v574 = vpop.f32.mrf.mxu0
        %575 = vmatprep.mubr.f32.mxu0 0.0
        %576 = vmatmul.mubr.f32.gmra.mxu0 %v368
        %v577 = vpop.f32.mrf.mxu0
        %v578 = vadd.f32 0.0, %v577
        %v579 = vpop.f32.mrf.mxu0
        %580 = vmatprep.mubr.f32.mxu0 0.0
        %581 = vmatmul.mubr.f32.gmra.mxu0 %v371
        %v582 = vpop.f32.mrf.mxu0
        %v583 = vadd.f32 0.0, %v582
        %v584 = vpop.f32.mrf.mxu0
        %585 = vmatprep.mubr.f32.mxu0 0.0
        %586 = vmatmul.mubr.f32.gmra.mxu0 %v374
        %v587 = vpop.f32.mrf.mxu0
        %v588 = vadd.f32 0.0, %v587
        %v589 = vpop.f32.mrf.mxu0
        %590 = vmatprep.mubr.f32.mxu0 0.0
        %591 = vmatmul.mubr.f32.gmra.mxu0 %v377
        %v592 = vpop.f32.mrf.mxu0
        %v593 = vadd.f32 0.0, %v592
        %v594 = vpop.f32.mrf.mxu0
        %595 = vmatprep.mubr.f32.mxu0 0.0
        %596 = vmatmul.mubr.f32.gmra.mxu0 %v380
        %v597 = vpop.f32.mrf.mxu0
        %v598 = vadd.f32 0.0, %v597
        %v599 = vpop.f32.mrf.mxu0
        %600 = vmatprep.mubr.f32.mxu0 0.0
        %601 = vmatmul.mubr.f32.gmra.mxu0 %v383
        %v602 = vpop.f32.mrf.mxu0
        %v603 = vadd.f32 0.0, %v602
        %v604 = vpop.f32.mrf.mxu0
        %605 = vmatprep.mubr.f32.mxu0 0.0
        %606 = vmatmul.mubr.f32.gmra.mxu0 %v386
        %v607 = vpop.f32.mrf.mxu0
        %v608 = vadd.f32 0.0, %v607
        %v609 = vpop.f32.mrf.mxu0
        %610 = vmatprep.mubr.f32.mxu0 0.0
        %611 = vmatmul.mubr.f32.gmra.mxu0 %v389
        %v612 = vpop.f32.mrf.mxu0
        %v613 = vadd.f32 0.0, %v612
        %v614 = vpop.f32.mrf.mxu0
        %615 = vdwg.mxu0
        %v617 = vsel %vm294, %v225, 0
        %v620 = vsel %vm294, %v226, 0
        %v623 = vsel %vm294, %v227, 0
        %v626 = vsel %vm294, %v228, 0
        %v629 = vsel %vm294, %v229, 0
        %v632 = vsel %vm294, %v230, 0
        %v635 = vsel %vm294, %v231, 0
        %v638 = vsel %vm294, %v232, 0
        %v641 = vsel %vm294, %v233, 0
        %v644 = vsel %vm294, %v234, 0
        %v647 = vsel %vm294, %v235, 0
        %v650 = vsel %vm294, %v236, 0
        %v653 = vsel %vm294, %v237, 0
        %v656 = vsel %vm294, %v238, 0
        %v659 = vsel %vm294, %v239, 0
        %v662 = vsel %vm294, %v240, 0
        %v665 = vsel %vm294, %v241, 0
        %v668 = vsel %vm294, %v242, 0
        %v671 = vsel %vm294, %v243, 0
        %v674 = vsel %vm294, %v244, 0
        %v677 = vsel %vm294, %v245, 0
        %v680 = vsel %vm294, %v246, 0
        %v683 = vsel %vm294, %v247, 0
        %v686 = vsel %vm294, %v248, 0
        %v689 = vsel %vm294, %v249, 0
        %v692 = vsel %vm294, %v250, 0
        %v695 = vsel %vm294, %v251, 0
        %v698 = vsel %vm294, %v252, 0
        %v701 = vsel %vm294, %v253, 0
        %v704 = vsel %vm294, %v254, 0
        %v707 = vsel %vm294, %v255, 0
        %v710 = vsel %vm294, %v256, 0
        %712 = vmatprep.subr.mxu0 0.0
        %713 = vmatpush1.msra.mxu0 0.0
        %714 = vmatprep.subr.mxu0 0.0
        %715 = vmatpush1.msra.mxu0 0.0
        %716 = vmatprep.subr.mxu0 0.0
        %717 = vmatpush1.msra.mxu0 0.0
        %718 = vmatprep.subr.mxu0 0.0
        %719 = vmatpush1.msra.mxu0 0.0
        %720 = vmatprep.subr.mxu0 0.0
        %721 = vmatpush1.msra.mxu0 0.0
        %722 = vmatprep.subr.mxu0 0.0
        %723 = vmatpush1.msra.mxu0 0.0
        %724 = vmatprep.subr.mxu0 0.0
        %725 = vmatpush1.msra.mxu0 0.0
        %726 = vmatprep.subr.mxu0 0.0
        %727 = vmatpush1.msra.mxu0 0.0
        %728 = vmatprep.subr.mxu0 0.0
        %729 = vmatpush1.msra.mxu0 0.0
        %730 = vmatprep.subr.mxu0 0.0
        %731 = vmatpush1.msra.mxu0 0.0
        %732 = vmatprep.subr.mxu0 0.0
        %733 = vmatpush1.msra.mxu0 0.0
        %734 = vmatprep.subr.mxu0 0.0
        %735 = vmatpush1.msra.mxu0 0.0
        %736 = vmatprep.subr.mxu0 0.0
        %737 = vmatpush1.msra.mxu0 0.0
        %738 = vmatprep.subr.mxu0 0.0
        %739 = vmatpush1.msra.mxu0 0.0
        %740 = vmatprep.subr.mxu0 0.0
        %741 = vmatpush1.msra.mxu0 %v258
        %742 = vmatprep.subr.mxu0 0.0
        %743 = vmatpush1.msra.mxu0 %v257
        %744 = vmatprep.subr.mxu0 0.0
        %745 = vmatpush2.msra.mxu0 0.0
        %746 = vmatprep.subr.mxu0 0.0
        %747 = vmatpush2.msra.mxu0 0.0
        %748 = vmatprep.subr.mxu0 0.0
        %749 = vmatpush2.msra.mxu0 0.0
        %750 = vmatprep.subr.mxu0 0.0
        %751 = vmatpush2.msra.mxu0 0.0
        %752 = vmatprep.subr.mxu0 0.0
        %753 = vmatpush2.msra.mxu0 0.0
        %754 = vmatprep.subr.mxu0 0.0
        %755 = vmatpush2.msra.mxu0 0.0
        %756 = vmatprep.subr.mxu0 0.0
        %757 = vmatpush2.msra.mxu0 0.0
        %758 = vmatprep.subr.mxu0 0.0
        %759 = vmatpush2.msra.mxu0 0.0
        %760 = vmatprep.subr.mxu0 0.0
        %761 = vmatpush2.msra.mxu0 0.0
        %762 = vmatprep.subr.mxu0 0.0
        %763 = vmatpush2.msra.mxu0 0.0
        %764 = vmatprep.subr.mxu0 0.0
        %765 = vmatpush2.msra.mxu0 0.0
        %766 = vmatprep.subr.mxu0 0.0
        %767 = vmatpush2.msra.mxu0 0.0
        %768 = vmatprep.subr.mxu0 0.0
        %769 = vmatpush2.msra.mxu0 0.0
        %770 = vmatprep.subr.mxu0 0.0
        %771 = vmatpush2.msra.mxu0 0.0
        %772 = vmatprep.subr.mxu0 0.0
        %773 = vmatpush2.msra.mxu0 0.0
        %774 = vmatprep.subr.mxu0 0.0
        %775 = vmatpush2.msra.mxu0 0.0
        %776 = vmatprep.mubr.f32.mxu0 0.0
        %777 = vmatmul.mubr.f32.gmra.mxu0 %v617
        %v778 = vpop.f32.mrf.mxu0
        %v779 = vadd.f32 %v458, %v778
        %v780 = vpop.f32.mrf.mxu0
        %781 = vmatprep.mubr.f32.mxu0 0.0
        %782 = vmatmul.mubr.f32.gmra.mxu0 %v620
        %v783 = vpop.f32.mrf.mxu0
        %v784 = vadd.f32 %v463, %v783
        %v785 = vpop.f32.mrf.mxu0
        %786 = vmatprep.mubr.f32.mxu0 0.0
        %787 = vmatmul.mubr.f32.gmra.mxu0 %v623
        %v788 = vpop.f32.mrf.mxu0
        %v789 = vadd.f32 %v468, %v788
        %v790 = vpop.f32.mrf.mxu0
        %791 = vmatprep.mubr.f32.mxu0 0.0
        %792 = vmatmul.mubr.f32.gmra.mxu0 %v626
        %v793 = vpop.f32.mrf.mxu0
        %v794 = vadd.f32 %v473, %v793
        %v795 = vpop.f32.mrf.mxu0
        %796 = vmatprep.mubr.f32.mxu0 0.0
        %797 = vmatmul.mubr.f32.gmra.mxu0 %v629
        %v798 = vpop.f32.mrf.mxu0
        %v799 = vadd.f32 %v478, %v798
        %v800 = vpop.f32.mrf.mxu0
        %801 = vmatprep.mubr.f32.mxu0 0.0
        %802 = vmatmul.mubr.f32.gmra.mxu0 %v632
        %v803 = vpop.f32.mrf.mxu0
        %v804 = vadd.f32 %v483, %v803
        %v805 = vpop.f32.mrf.mxu0
        %806 = vmatprep.mubr.f32.mxu0 0.0
        %807 = vmatmul.mubr.f32.gmra.mxu0 %v635
        %v808 = vpop.f32.mrf.mxu0
        %v809 = vadd.f32 %v488, %v808
        %v810 = vpop.f32.mrf.mxu0
        %811 = vmatprep.mubr.f32.mxu0 0.0
        %812 = vmatmul.mubr.f32.gmra.mxu0 %v638
        %v813 = vpop.f32.mrf.mxu0
        %v814 = vadd.f32 %v493, %v813
        %v815 = vpop.f32.mrf.mxu0
        %816 = vmatprep.mubr.f32.mxu0 0.0
        %817 = vmatmul.mubr.f32.gmra.mxu0 %v641
        %v818 = vpop.f32.mrf.mxu0
        %v819 = vadd.f32 %v498, %v818
        %v820 = vpop.f32.mrf.mxu0
        %821 = vmatprep.mubr.f32.mxu0 0.0
        %822 = vmatmul.mubr.f32.gmra.mxu0 %v644
        %v823 = vpop.f32.mrf.mxu0
        %v824 = vadd.f32 %v503, %v823
        %v825 = vpop.f32.mrf.mxu0
        %826 = vmatprep.mubr.f32.mxu0 0.0
        %827 = vmatmul.mubr.f32.gmra.mxu0 %v647
        %v828 = vpop.f32.mrf.mxu0
        %v829 = vadd.f32 %v508, %v828
        %v830 = vpop.f32.mrf.mxu0
        %831 = vmatprep.mubr.f32.mxu0 0.0
        %832 = vmatmul.mubr.f32.gmra.mxu0 %v650
        %v833 = vpop.f32.mrf.mxu0
        %v834 = vadd.f32 %v513, %v833
        %v835 = vpop.f32.mrf.mxu0
        %836 = vmatprep.mubr.f32.mxu0 0.0
        %837 = vmatmul.mubr.f32.gmra.mxu0 %v653
        %v838 = vpop.f32.mrf.mxu0
        %v839 = vadd.f32 %v518, %v838
        %v840 = vpop.f32.mrf.mxu0
        %841 = vmatprep.mubr.f32.mxu0 0.0
        %842 = vmatmul.mubr.f32.gmra.mxu0 %v656
        %v843 = vpop.f32.mrf.mxu0
        %v844 = vadd.f32 %v523, %v843
        %v845 = vpop.f32.mrf.mxu0
        %846 = vmatprep.mubr.f32.mxu0 0.0
        %847 = vmatmul.mubr.f32.gmra.mxu0 %v659
        %v848 = vpop.f32.mrf.mxu0
        %v849 = vadd.f32 %v528, %v848
        %v850 = vpop.f32.mrf.mxu0
        %851 = vmatprep.mubr.f32.mxu0 0.0
        %852 = vmatmul.mubr.f32.gmra.mxu0 %v662
        %v853 = vpop.f32.mrf.mxu0
        %v854 = vadd.f32 %v533, %v853
        %v855 = vpop.f32.mrf.mxu0
        %856 = vmatprep.mubr.f32.mxu0 0.0
        %857 = vmatmul.mubr.f32.gmra.mxu0 %v665
        %v858 = vpop.f32.mrf.mxu0
        %v859 = vadd.f32 %v538, %v858
        %v860 = vpop.f32.mrf.mxu0
        %861 = vmatprep.mubr.f32.mxu0 0.0
        %862 = vmatmul.mubr.f32.gmra.mxu0 %v668
        %v863 = vpop.f32.mrf.mxu0
        %v864 = vadd.f32 %v543, %v863
        %v865 = vpop.f32.mrf.mxu0
        %866 = vmatprep.mubr.f32.mxu0 0.0
        %867 = vmatmul.mubr.f32.gmra.mxu0 %v671
        %v868 = vpop.f32.mrf.mxu0
        %v869 = vadd.f32 %v548, %v868
        %v870 = vpop.f32.mrf.mxu0
        %871 = vmatprep.mubr.f32.mxu0 0.0
        %872 = vmatmul.mubr.f32.gmra.mxu0 %v674
        %v873 = vpop.f32.mrf.mxu0
        %v874 = vadd.f32 %v553, %v873
        %v875 = vpop.f32.mrf.mxu0
        %876 = vmatprep.mubr.f32.mxu0 0.0
        %877 = vmatmul.mubr.f32.gmra.mxu0 %v677
        %v878 = vpop.f32.mrf.mxu0
        %v879 = vadd.f32 %v558, %v878
        %v880 = vpop.f32.mrf.mxu0
        %881 = vmatprep.mubr.f32.mxu0 0.0
        %882 = vmatmul.mubr.f32.gmra.mxu0 %v680
        %v883 = vpop.f32.mrf.mxu0
        %v884 = vadd.f32 %v563, %v883
        %v885 = vpop.f32.mrf.mxu0
        %886 = vmatprep.mubr.f32.mxu0 0.0
        %887 = vmatmul.mubr.f32.gmra.mxu0 %v683
        %v888 = vpop.f32.mrf.mxu0
        %v889 = vadd.f32 %v568, %v888
        %v890 = vpop.f32.mrf.mxu0
        %891 = vmatprep.mubr.f32.mxu0 0.0
        %892 = vmatmul.mubr.f32.gmra.mxu0 %v686
        %v893 = vpop.f32.mrf.mxu0
        %v894 = vadd.f32 %v573, %v893
        %v895 = vpop.f32.mrf.mxu0
        %896 = vmatprep.mubr.f32.mxu0 0.0
        %897 = vmatmul.mubr.f32.gmra.mxu0 %v689
        %v898 = vpop.f32.mrf.mxu0
        %v899 = vadd.f32 %v578, %v898
        %v900 = vpop.f32.mrf.mxu0
        %901 = vmatprep.mubr.f32.mxu0 0.0
        %902 = vmatmul.mubr.f32.gmra.mxu0 %v692
        %v903 = vpop.f32.mrf.mxu0
        %v904 = vadd.f32 %v583, %v903
        %v905 = vpop.f32.mrf.mxu0
        %906 = vmatprep.mubr.f32.mxu0 0.0
        %907 = vmatmul.mubr.f32.gmra.mxu0 %v695
        %v908 = vpop.f32.mrf.mxu0
        %v909 = vadd.f32 %v588, %v908
        %v910 = vpop.f32.mrf.mxu0
        %911 = vmatprep.mubr.f32.mxu0 0.0
        %912 = vmatmul.mubr.f32.gmra.mxu0 %v698
        %v913 = vpop.f32.mrf.mxu0
        %v914 = vadd.f32 %v593, %v913
        %v915 = vpop.f32.mrf.mxu0
        %916 = vmatprep.mubr.f32.mxu0 0.0
        %917 = vmatmul.mubr.f32.gmra.mxu0 %v701
        %v918 = vpop.f32.mrf.mxu0
        %v919 = vadd.f32 %v598, %v918
        %v920 = vpop.f32.mrf.mxu0
        %921 = vmatprep.mubr.f32.mxu0 0.0
        %922 = vmatmul.mubr.f32.gmra.mxu0 %v704
        %v923 = vpop.f32.mrf.mxu0
        %v924 = vadd.f32 %v603, %v923
        %v925 = vpop.f32.mrf.mxu0
        %926 = vmatprep.mubr.f32.mxu0 0.0
        %927 = vmatmul.mubr.f32.gmra.mxu0 %v707
        %v928 = vpop.f32.mrf.mxu0
        %v929 = vadd.f32 %v608, %v928
        %v930 = vpop.f32.mrf.mxu0
        %931 = vmatprep.mubr.f32.mxu0 0.0
        %932 = vmatmul.mubr.f32.gmra.mxu0 %v710
        %v933 = vpop.f32.mrf.mxu0
        %v934 = vadd.f32 %v613, %v933
        %v935 = vpop.f32.mrf.mxu0
        %936 = vdwg.mxu0
        %v937 = vld [vmem:[%s223 + $0x2] sm:$0xff]
        %v938 = vld [vmem:[%s223 + $0xa] sm:$0xff]
        %v939 = vld [vmem:[%s223 + $0x1a] sm:$0xff]
        %v940 = vld [vmem:[%s223 + $0x22] sm:$0xff]
        %v941 = vld [vmem:[%s223 + $0x32] sm:$0xff]
        %v942 = vld [vmem:[%s223 + $0x3a] sm:$0xff]
        %v943 = vld [vmem:[%s223 + $0x4a] sm:$0xff]
        %v944 = vld [vmem:[%s223 + $0x52] sm:$0xff]
        %v945 = vld [vmem:[%s223 + $0x62] sm:$0xff]
        %v946 = vld [vmem:[%s223 + $0x6a] sm:$0xff]
        %v947 = vld [vmem:[%s223 + $0x7a] sm:$0xff]
        %v948 = vld [vmem:[%s223 + $0x82] sm:$0xff]
        %v949 = vld [vmem:[%s223 + $0x92] sm:$0xff]
        %v950 = vld [vmem:[%s223 + $0x9a] sm:$0xff]
        %v951 = vld [vmem:[%s223 + $0xaa] sm:$0xff]
        %v952 = vld [vmem:[%s223 + $0xb2] sm:$0xff]
        %v953 = vld [vmem:[%s223 + $0xc2] sm:$0xff]
        %v954 = vld [vmem:[%s223 + $0xca] sm:$0xff]
        %v955 = vld [vmem:[%s223 + $0xda] sm:$0xff]
        %v956 = vld [vmem:[%s223 + $0xe2] sm:$0xff]
        %v957 = vld [vmem:[%s223 + $0xf2] sm:$0xff]
        %v958 = vld [vmem:[%s223 + $0xfa] sm:$0xff]
        %v959 = vld [vmem:[%s223 + $0x10a] sm:$0xff]
        %v960 = vld [vmem:[%s223 + $0x112] sm:$0xff]
        %v961 = vld [vmem:[%s223 + $0x122] sm:$0xff]
        %v962 = vld [vmem:[%s223 + $0x12a] sm:$0xff]
        %v963 = vld [vmem:[%s223 + $0x13a] sm:$0xff]
        %v964 = vld [vmem:[%s223 + $0x142] sm:$0xff]
        %v965 = vld [vmem:[%s223 + $0x152] sm:$0xff]
        %v966 = vld [vmem:[%s223 + $0x15a] sm:$0xff]
        %v967 = vld [vmem:[%s223 + $0x16a] sm:$0xff]
        %v968 = vld [vmem:[%s223 + $0x172] sm:$0xff]
        %s969 = scalar_lea.vmem %s1, 32
        %v970 = vld [vmem:[%s969] sm:$0xff]
        %v971 = vld [vmem:[%s969 + $0x8] sm:$0xff]
        %v973 = vsel %vm294, %v937, 0
        %v976 = vsel %vm294, %v938, 0
        %v979 = vsel %vm294, %v939, 0
        %v982 = vsel %vm294, %v940, 0
        %v985 = vsel %vm294, %v941, 0
        %v988 = vsel %vm294, %v942, 0
        %v991 = vsel %vm294, %v943, 0
        %v994 = vsel %vm294, %v944, 0
        %v997 = vsel %vm294, %v945, 0
        %v1000 = vsel %vm294, %v946, 0
        %v1003 = vsel %vm294, %v947, 0
        %v1006 = vsel %vm294, %v948, 0
        %v1009 = vsel %vm294, %v949, 0
        %v1012 = vsel %vm294, %v950, 0
        %v1015 = vsel %vm294, %v951, 0
        %v1018 = vsel %vm294, %v952, 0
        %v1021 = vsel %vm294, %v953, 0
        %v1024 = vsel %vm294, %v954, 0
        %v1027 = vsel %vm294, %v955, 0
        %v1030 = vsel %vm294, %v956, 0
        %v1033 = vsel %vm294, %v957, 0
        %v1036 = vsel %vm294, %v958, 0
        %v1039 = vsel %vm294, %v959, 0
        %v1042 = vsel %vm294, %v960, 0
        %v1045 = vsel %vm294, %v961, 0
        %v1048 = vsel %vm294, %v962, 0
        %v1051 = vsel %vm294, %v963, 0
        %v1054 = vsel %vm294, %v964, 0
        %v1057 = vsel %vm294, %v965, 0
        %v1060 = vsel %vm294, %v966, 0
        %v1063 = vsel %vm294, %v967, 0
        %v1066 = vsel %vm294, %v968, 0
        %1068 = vmatprep.subr.mxu0 0.0
        %1069 = vmatpush1.msra.mxu0 0.0
        %1070 = vmatprep.subr.mxu0 0.0
        %1071 = vmatpush1.msra.mxu0 0.0
        %1072 = vmatprep.subr.mxu0 0.0
        %1073 = vmatpush1.msra.mxu0 0.0
        %1074 = vmatprep.subr.mxu0 0.0
        %1075 = vmatpush1.msra.mxu0 0.0
        %1076 = vmatprep.subr.mxu0 0.0
        %1077 = vmatpush1.msra.mxu0 0.0
        %1078 = vmatprep.subr.mxu0 0.0
        %1079 = vmatpush1.msra.mxu0 0.0
        %1080 = vmatprep.subr.mxu0 0.0
        %1081 = vmatpush1.msra.mxu0 0.0
        %1082 = vmatprep.subr.mxu0 0.0
        %1083 = vmatpush1.msra.mxu0 0.0
        %1084 = vmatprep.subr.mxu0 0.0
        %1085 = vmatpush1.msra.mxu0 0.0
        %1086 = vmatprep.subr.mxu0 0.0
        %1087 = vmatpush1.msra.mxu0 0.0
        %1088 = vmatprep.subr.mxu0 0.0
        %1089 = vmatpush1.msra.mxu0 0.0
        %1090 = vmatprep.subr.mxu0 0.0
        %1091 = vmatpush1.msra.mxu0 0.0
        %1092 = vmatprep.subr.mxu0 0.0
        %1093 = vmatpush1.msra.mxu0 0.0
        %1094 = vmatprep.subr.mxu0 0.0
        %1095 = vmatpush1.msra.mxu0 0.0
        %1096 = vmatprep.subr.mxu0 0.0
        %1097 = vmatpush1.msra.mxu0 %v971
        %1098 = vmatprep.subr.mxu0 0.0
        %1099 = vmatpush1.msra.mxu0 %v970
        %1100 = vmatprep.subr.mxu0 0.0
        %1101 = vmatpush2.msra.mxu0 0.0
        %1102 = vmatprep.subr.mxu0 0.0
        %1103 = vmatpush2.msra.mxu0 0.0
        %1104 = vmatprep.subr.mxu0 0.0
        %1105 = vmatpush2.msra.mxu0 0.0
        %1106 = vmatprep.subr.mxu0 0.0
        %1107 = vmatpush2.msra.mxu0 0.0
        %1108 = vmatprep.subr.mxu0 0.0
        %1109 = vmatpush2.msra.mxu0 0.0
        %1110 = vmatprep.subr.mxu0 0.0
        %1111 = vmatpush2.msra.mxu0 0.0
        %1112 = vmatprep.subr.mxu0 0.0
        %1113 = vmatpush2.msra.mxu0 0.0
        %1114 = vmatprep.subr.mxu0 0.0
        %1115 = vmatpush2.msra.mxu0 0.0
        %1116 = vmatprep.subr.mxu0 0.0
        %1117 = vmatpush2.msra.mxu0 0.0
        %1118 = vmatprep.subr.mxu0 0.0
        %1119 = vmatpush2.msra.mxu0 0.0
        %1120 = vmatprep.subr.mxu0 0.0
        %1121 = vmatpush2.msra.mxu0 0.0
        %1122 = vmatprep.subr.mxu0 0.0
        %1123 = vmatpush2.msra.mxu0 0.0
        %1124 = vmatprep.subr.mxu0 0.0
        %1125 = vmatpush2.msra.mxu0 0.0
        %1126 = vmatprep.subr.mxu0 0.0
        %1127 = vmatpush2.msra.mxu0 0.0
        %1128 = vmatprep.subr.mxu0 0.0
        %1129 = vmatpush2.msra.mxu0 0.0
        %1130 = vmatprep.subr.mxu0 0.0
        %1131 = vmatpush2.msra.mxu0 0.0
        %1132 = vmatprep.mubr.f32.mxu0 0.0
        %1133 = vmatmul.mubr.f32.gmra.mxu0 %v973
        %v1134 = vpop.f32.mrf.mxu0
        %v1135 = vadd.f32 0.0, %v1134
        %v1136 = vpop.f32.mrf.mxu0
        %1137 = vmatprep.mubr.f32.mxu0 0.0
        %1138 = vmatmul.mubr.f32.gmra.mxu0 %v976
        %v1139 = vpop.f32.mrf.mxu0
        %v1140 = vadd.f32 0.0, %v1139
        %v1141 = vpop.f32.mrf.mxu0
        %1142 = vmatprep.mubr.f32.mxu0 0.0
        %1143 = vmatmul.mubr.f32.gmra.mxu0 %v979
        %v1144 = vpop.f32.mrf.mxu0
        %v1145 = vadd.f32 0.0, %v1144
        %v1146 = vpop.f32.mrf.mxu0
        %1147 = vmatprep.mubr.f32.mxu0 0.0
        %1148 = vmatmul.mubr.f32.gmra.mxu0 %v982
        %v1149 = vpop.f32.mrf.mxu0
        %v1150 = vadd.f32 0.0, %v1149
        %v1151 = vpop.f32.mrf.mxu0
        %1152 = vmatprep.mubr.f32.mxu0 0.0
        %1153 = vmatmul.mubr.f32.gmra.mxu0 %v985
        %v1154 = vpop.f32.mrf.mxu0
        %v1155 = vadd.f32 0.0, %v1154
        %v1156 = vpop.f32.mrf.mxu0
        %1157 = vmatprep.mubr.f32.mxu0 0.0
        %1158 = vmatmul.mubr.f32.gmra.mxu0 %v988
        %v1159 = vpop.f32.mrf.mxu0
        %v1160 = vadd.f32 0.0, %v1159
        %v1161 = vpop.f32.mrf.mxu0
        %1162 = vmatprep.mubr.f32.mxu0 0.0
        %1163 = vmatmul.mubr.f32.gmra.mxu0 %v991
        %v1164 = vpop.f32.mrf.mxu0
        %v1165 = vadd.f32 0.0, %v1164
        %v1166 = vpop.f32.mrf.mxu0
        %1167 = vmatprep.mubr.f32.mxu0 0.0
        %1168 = vmatmul.mubr.f32.gmra.mxu0 %v994
        %v1169 = vpop.f32.mrf.mxu0
        %v1170 = vadd.f32 0.0, %v1169
        %v1171 = vpop.f32.mrf.mxu0
        %1172 = vmatprep.mubr.f32.mxu0 0.0
        %1173 = vmatmul.mubr.f32.gmra.mxu0 %v997
        %v1174 = vpop.f32.mrf.mxu0
        %v1175 = vadd.f32 0.0, %v1174
        %v1176 = vpop.f32.mrf.mxu0
        %1177 = vmatprep.mubr.f32.mxu0 0.0
        %1178 = vmatmul.mubr.f32.gmra.mxu0 %v1000
        %v1179 = vpop.f32.mrf.mxu0
        %v1180 = vadd.f32 0.0, %v1179
        %v1181 = vpop.f32.mrf.mxu0
        %1182 = vmatprep.mubr.f32.mxu0 0.0
        %1183 = vmatmul.mubr.f32.gmra.mxu0 %v1003
        %v1184 = vpop.f32.mrf.mxu0
        %v1185 = vadd.f32 0.0, %v1184
        %v1186 = vpop.f32.mrf.mxu0
        %1187 = vmatprep.mubr.f32.mxu0 0.0
        %1188 = vmatmul.mubr.f32.gmra.mxu0 %v1006
        %v1189 = vpop.f32.mrf.mxu0
        %v1190 = vadd.f32 0.0, %v1189
        %v1191 = vpop.f32.mrf.mxu0
        %1192 = vmatprep.mubr.f32.mxu0 0.0
        %1193 = vmatmul.mubr.f32.gmra.mxu0 %v1009
        %v1194 = vpop.f32.mrf.mxu0
        %v1195 = vadd.f32 0.0, %v1194
        %v1196 = vpop.f32.mrf.mxu0
        %1197 = vmatprep.mubr.f32.mxu0 0.0
        %1198 = vmatmul.mubr.f32.gmra.mxu0 %v1012
        %v1199 = vpop.f32.mrf.mxu0
        %v1200 = vadd.f32 0.0, %v1199
        %v1201 = vpop.f32.mrf.mxu0
        %1202 = vmatprep.mubr.f32.mxu0 0.0
        %1203 = vmatmul.mubr.f32.gmra.mxu0 %v1015
        %v1204 = vpop.f32.mrf.mxu0
        %v1205 = vadd.f32 0.0, %v1204
        %v1206 = vpop.f32.mrf.mxu0
        %1207 = vmatprep.mubr.f32.mxu0 0.0
        %1208 = vmatmul.mubr.f32.gmra.mxu0 %v1018
        %v1209 = vpop.f32.mrf.mxu0
        %v1210 = vadd.f32 0.0, %v1209
        %v1211 = vpop.f32.mrf.mxu0
        %1212 = vmatprep.mubr.f32.mxu0 0.0
        %1213 = vmatmul.mubr.f32.gmra.mxu0 %v1021
        %v1214 = vpop.f32.mrf.mxu0
        %v1215 = vadd.f32 0.0, %v1214
        %v1216 = vpop.f32.mrf.mxu0
        %1217 = vmatprep.mubr.f32.mxu0 0.0
        %1218 = vmatmul.mubr.f32.gmra.mxu0 %v1024
        %v1219 = vpop.f32.mrf.mxu0
        %v1220 = vadd.f32 0.0, %v1219
        %v1221 = vpop.f32.mrf.mxu0
        %1222 = vmatprep.mubr.f32.mxu0 0.0
        %1223 = vmatmul.mubr.f32.gmra.mxu0 %v1027
        %v1224 = vpop.f32.mrf.mxu0
        %v1225 = vadd.f32 0.0, %v1224
        %v1226 = vpop.f32.mrf.mxu0
        %1227 = vmatprep.mubr.f32.mxu0 0.0
        %1228 = vmatmul.mubr.f32.gmra.mxu0 %v1030
        %v1229 = vpop.f32.mrf.mxu0
        %v1230 = vadd.f32 0.0, %v1229
        %v1231 = vpop.f32.mrf.mxu0
        %1232 = vmatprep.mubr.f32.mxu0 0.0
        %1233 = vmatmul.mubr.f32.gmra.mxu0 %v1033
        %v1234 = vpop.f32.mrf.mxu0
        %v1235 = vadd.f32 0.0, %v1234
        %v1236 = vpop.f32.mrf.mxu0
        %1237 = vmatprep.mubr.f32.mxu0 0.0
        %1238 = vmatmul.mubr.f32.gmra.mxu0 %v1036
        %v1239 = vpop.f32.mrf.mxu0
        %v1240 = vadd.f32 0.0, %v1239
        %v1241 = vpop.f32.mrf.mxu0
        %1242 = vmatprep.mubr.f32.mxu0 0.0
        %1243 = vmatmul.mubr.f32.gmra.mxu0 %v1039
        %v1244 = vpop.f32.mrf.mxu0
        %v1245 = vadd.f32 0.0, %v1244
        %v1246 = vpop.f32.mrf.mxu0
        %1247 = vmatprep.mubr.f32.mxu0 0.0
        %1248 = vmatmul.mubr.f32.gmra.mxu0 %v1042
        %v1249 = vpop.f32.mrf.mxu0
        %v1250 = vadd.f32 0.0, %v1249
        %v1251 = vpop.f32.mrf.mxu0
        %1252 = vmatprep.mubr.f32.mxu0 0.0
        %1253 = vmatmul.mubr.f32.gmra.mxu0 %v1045
        %v1254 = vpop.f32.mrf.mxu0
        %v1255 = vadd.f32 0.0, %v1254
        %v1256 = vpop.f32.mrf.mxu0
        %1257 = vmatprep.mubr.f32.mxu0 0.0
        %1258 = vmatmul.mubr.f32.gmra.mxu0 %v1048
        %v1259 = vpop.f32.mrf.mxu0
        %v1260 = vadd.f32 0.0, %v1259
        %v1261 = vpop.f32.mrf.mxu0
        %1262 = vmatprep.mubr.f32.mxu0 0.0
        %1263 = vmatmul.mubr.f32.gmra.mxu0 %v1051
        %v1264 = vpop.f32.mrf.mxu0
        %v1265 = vadd.f32 0.0, %v1264
        %v1266 = vpop.f32.mrf.mxu0
        %1267 = vmatprep.mubr.f32.mxu0 0.0
        %1268 = vmatmul.mubr.f32.gmra.mxu0 %v1054
        %v1269 = vpop.f32.mrf.mxu0
        %v1270 = vadd.f32 0.0, %v1269
        %v1271 = vpop.f32.mrf.mxu0
        %1272 = vmatprep.mubr.f32.mxu0 0.0
        %1273 = vmatmul.mubr.f32.gmra.mxu0 %v1057
        %v1274 = vpop.f32.mrf.mxu0
        %v1275 = vadd.f32 0.0, %v1274
        %v1276 = vpop.f32.mrf.mxu0
        %1277 = vmatprep.mubr.f32.mxu0 0.0
        %1278 = vmatmul.mubr.f32.gmra.mxu0 %v1060
        %v1279 = vpop.f32.mrf.mxu0
        %v1280 = vadd.f32 0.0, %v1279
        %v1281 = vpop.f32.mrf.mxu0
        %1282 = vmatprep.mubr.f32.mxu0 0.0
        %1283 = vmatmul.mubr.f32.gmra.mxu0 %v1063
        %v1284 = vpop.f32.mrf.mxu0
        %v1285 = vadd.f32 0.0, %v1284
        %v1286 = vpop.f32.mrf.mxu0
        %1287 = vmatprep.mubr.f32.mxu0 0.0
        %1288 = vmatmul.mubr.f32.gmra.mxu0 %v1066
        %v1289 = vpop.f32.mrf.mxu0
        %v1290 = vadd.f32 0.0, %v1289
        %v1291 = vpop.f32.mrf.mxu0
        %1292 = vdwg.mxu0
        %v1293 = vadd.f32 %v779, %v1135
        %v1294 = vadd.f32 %v784, %v1140
        %v1295 = vadd.f32 %v789, %v1145
        %v1296 = vadd.f32 %v794, %v1150
        %v1297 = vadd.f32 %v799, %v1155
        %v1298 = vadd.f32 %v804, %v1160
        %v1299 = vadd.f32 %v809, %v1165
        %v1300 = vadd.f32 %v814, %v1170
        %v1301 = vadd.f32 %v819, %v1175
        %v1302 = vadd.f32 %v824, %v1180
        %v1303 = vadd.f32 %v829, %v1185
        %v1304 = vadd.f32 %v834, %v1190
        %v1305 = vadd.f32 %v839, %v1195
        %v1306 = vadd.f32 %v844, %v1200
        %v1307 = vadd.f32 %v849, %v1205
        %v1308 = vadd.f32 %v854, %v1210
        %v1309 = vadd.f32 %v859, %v1215
        %v1310 = vadd.f32 %v864, %v1220
        %v1311 = vadd.f32 %v869, %v1225
        %v1312 = vadd.f32 %v874, %v1230
        %v1313 = vadd.f32 %v879, %v1235
        %v1314 = vadd.f32 %v884, %v1240
        %v1315 = vadd.f32 %v889, %v1245
        %v1316 = vadd.f32 %v894, %v1250
        %v1317 = vadd.f32 %v899, %v1255
        %v1318 = vadd.f32 %v904, %v1260
        %v1319 = vadd.f32 %v909, %v1265
        %v1320 = vadd.f32 %v914, %v1270
        %v1321 = vadd.f32 %v919, %v1275
        %v1322 = vadd.f32 %v924, %v1280
        %v1323 = vadd.f32 %v929, %v1285
        %v1324 = vadd.f32 %v934, %v1290
        %s1325 = scalar_lea.vmem %s223, 24
        %v1326 = vld [vmem:[%s1325] sm:$0xff]
        %v1327 = vld [vmem:[%s1325 + $0x8] sm:$0xff]
        %v1328 = vld [vmem:[%s1325 + $0x18] sm:$0xff]
        %v1329 = vld [vmem:[%s1325 + $0x20] sm:$0xff]
        %v1330 = vld [vmem:[%s1325 + $0x30] sm:$0xff]
        %v1331 = vld [vmem:[%s1325 + $0x38] sm:$0xff]
        %v1332 = vld [vmem:[%s1325 + $0x48] sm:$0xff]
        %v1333 = vld [vmem:[%s1325 + $0x50] sm:$0xff]
        %v1334 = vld [vmem:[%s1325 + $0x60] sm:$0xff]
        %v1335 = vld [vmem:[%s1325 + $0x68] sm:$0xff]
        %v1336 = vld [vmem:[%s1325 + $0x78] sm:$0xff]
        %v1337 = vld [vmem:[%s1325 + $0x80] sm:$0xff]
        %v1338 = vld [vmem:[%s1325 + $0x90] sm:$0xff]
        %v1339 = vld [vmem:[%s1325 + $0x98] sm:$0xff]
        %v1340 = vld [vmem:[%s1325 + $0xa8] sm:$0xff]
        %v1341 = vld [vmem:[%s1325 + $0xb0] sm:$0xff]
        %v1342 = vld [vmem:[%s1325 + $0xc0] sm:$0xff]
        %v1343 = vld [vmem:[%s1325 + $0xc8] sm:$0xff]
        %v1344 = vld [vmem:[%s1325 + $0xd8] sm:$0xff]
        %v1345 = vld [vmem:[%s1325 + $0xe0] sm:$0xff]
        %v1346 = vld [vmem:[%s1325 + $0xf0] sm:$0xff]
        %v1347 = vld [vmem:[%s1325 + $0xf8] sm:$0xff]
        %v1348 = vld [vmem:[%s1325 + $0x108] sm:$0xff]
        %v1349 = vld [vmem:[%s1325 + $0x110] sm:$0xff]
        %v1350 = vld [vmem:[%s1325 + $0x120] sm:$0xff]
        %v1351 = vld [vmem:[%s1325 + $0x128] sm:$0xff]
        %v1352 = vld [vmem:[%s1325 + $0x138] sm:$0xff]
        %v1353 = vld [vmem:[%s1325 + $0x140] sm:$0xff]
        %v1354 = vld [vmem:[%s1325 + $0x150] sm:$0xff]
        %v1355 = vld [vmem:[%s1325 + $0x158] sm:$0xff]
        %v1356 = vld [vmem:[%s1325 + $0x168] sm:$0xff]
        %v1357 = vld [vmem:[%s1325 + $0x170] sm:$0xff]
        %s1358 = scalar_lea.vmem %s1, 48
        %v1359 = vld [vmem:[%s1358] sm:$0xff]
        %v1360 = vld [vmem:[%s1358 + $0x8] sm:$0xff]
        %v1362 = vsel %vm294, %v1326, 0
        %v1365 = vsel %vm294, %v1327, 0
        %v1368 = vsel %vm294, %v1328, 0
        %v1371 = vsel %vm294, %v1329, 0
        %v1374 = vsel %vm294, %v1330, 0
        %v1377 = vsel %vm294, %v1331, 0
        %v1380 = vsel %vm294, %v1332, 0
        %v1383 = vsel %vm294, %v1333, 0
        %v1386 = vsel %vm294, %v1334, 0
        %v1389 = vsel %vm294, %v1335, 0
        %v1392 = vsel %vm294, %v1336, 0
        %v1395 = vsel %vm294, %v1337, 0
        %v1398 = vsel %vm294, %v1338, 0
        %v1401 = vsel %vm294, %v1339, 0
        %v1404 = vsel %vm294, %v1340, 0
        %v1407 = vsel %vm294, %v1341, 0
        %v1410 = vsel %vm294, %v1342, 0
        %v1413 = vsel %vm294, %v1343, 0
        %v1416 = vsel %vm294, %v1344, 0
        %v1419 = vsel %vm294, %v1345, 0
        %v1422 = vsel %vm294, %v1346, 0
        %v1425 = vsel %vm294, %v1347, 0
        %v1428 = vsel %vm294, %v1348, 0
        %v1431 = vsel %vm294, %v1349, 0
        %v1434 = vsel %vm294, %v1350, 0
        %v1437 = vsel %vm294, %v1351, 0
        %v1440 = vsel %vm294, %v1352, 0
        %v1443 = vsel %vm294, %v1353, 0
        %v1446 = vsel %vm294, %v1354, 0
        %v1449 = vsel %vm294, %v1355, 0
        %v1452 = vsel %vm294, %v1356, 0
        %v1455 = vsel %vm294, %v1357, 0
        %1457 = vmatprep.subr.mxu0 0.0
        %1458 = vmatpush1.msra.mxu0 0.0
        %1459 = vmatprep.subr.mxu0 0.0
        %1460 = vmatpush1.msra.mxu0 0.0
        %1461 = vmatprep.subr.mxu0 0.0
        %1462 = vmatpush1.msra.mxu0 0.0
        %1463 = vmatprep.subr.mxu0 0.0
        %1464 = vmatpush1.msra.mxu0 0.0
        %1465 = vmatprep.subr.mxu0 0.0
        %1466 = vmatpush1.msra.mxu0 0.0
        %1467 = vmatprep.subr.mxu0 0.0
        %1468 = vmatpush1.msra.mxu0 0.0
        %1469 = vmatprep.subr.mxu0 0.0
        %1470 = vmatpush1.msra.mxu0 0.0
        %1471 = vmatprep.subr.mxu0 0.0
        %1472 = vmatpush1.msra.mxu0 0.0
        %1473 = vmatprep.subr.mxu0 0.0
        %1474 = vmatpush1.msra.mxu0 0.0
        %1475 = vmatprep.subr.mxu0 0.0
        %1476 = vmatpush1.msra.mxu0 0.0
        %1477 = vmatprep.subr.mxu0 0.0
        %1478 = vmatpush1.msra.mxu0 0.0
        %1479 = vmatprep.subr.mxu0 0.0
        %1480 = vmatpush1.msra.mxu0 0.0
        %1481 = vmatprep.subr.mxu0 0.0
        %1482 = vmatpush1.msra.mxu0 0.0
        %1483 = vmatprep.subr.mxu0 0.0
        %1484 = vmatpush1.msra.mxu0 0.0
        %1485 = vmatprep.subr.mxu0 0.0
        %1486 = vmatpush1.msra.mxu0 %v1360
        %1487 = vmatprep.subr.mxu0 0.0
        %1488 = vmatpush1.msra.mxu0 %v1359
        %1489 = vmatprep.subr.mxu0 0.0
        %1490 = vmatpush2.msra.mxu0 0.0
        %1491 = vmatprep.subr.mxu0 0.0
        %1492 = vmatpush2.msra.mxu0 0.0
        %1493 = vmatprep.subr.mxu0 0.0
        %1494 = vmatpush2.msra.mxu0 0.0
        %1495 = vmatprep.subr.mxu0 0.0
        %1496 = vmatpush2.msra.mxu0 0.0
        %1497 = vmatprep.subr.mxu0 0.0
        %1498 = vmatpush2.msra.mxu0 0.0
        %1499 = vmatprep.subr.mxu0 0.0
        %1500 = vmatpush2.msra.mxu0 0.0
        %1501 = vmatprep.subr.mxu0 0.0
        %1502 = vmatpush2.msra.mxu0 0.0
        %1503 = vmatprep.subr.mxu0 0.0
        %1504 = vmatpush2.msra.mxu0 0.0
        %1505 = vmatprep.subr.mxu0 0.0
        %1506 = vmatpush2.msra.mxu0 0.0
        %1507 = vmatprep.subr.mxu0 0.0
        %1508 = vmatpush2.msra.mxu0 0.0
        %1509 = vmatprep.subr.mxu0 0.0
        %1510 = vmatpush2.msra.mxu0 0.0
        %1511 = vmatprep.subr.mxu0 0.0
        %1512 = vmatpush2.msra.mxu0 0.0
        %1513 = vmatprep.subr.mxu0 0.0
        %1514 = vmatpush2.msra.mxu0 0.0
        %1515 = vmatprep.subr.mxu0 0.0
        %1516 = vmatpush2.msra.mxu0 0.0
        %1517 = vmatprep.subr.mxu0 0.0
        %1518 = vmatpush2.msra.mxu0 0.0
        %1519 = vmatprep.subr.mxu0 0.0
        %1520 = vmatpush2.msra.mxu0 0.0
        %1521 = vmatprep.mubr.f32.mxu0 0.0
        %1522 = vmatmul.mubr.f32.gmra.mxu0 %v1362
        %v1523 = vpop.f32.mrf.mxu0
        %v1524 = vadd.f32 0.0, %v1523
        %v1525 = vpop.f32.mrf.mxu0
        %1526 = vmatprep.mubr.f32.mxu0 0.0
        %1527 = vmatmul.mubr.f32.gmra.mxu0 %v1365
        %v1528 = vpop.f32.mrf.mxu0
        %v1529 = vadd.f32 0.0, %v1528
        %v1530 = vpop.f32.mrf.mxu0
        %1531 = vmatprep.mubr.f32.mxu0 0.0
        %1532 = vmatmul.mubr.f32.gmra.mxu0 %v1368
        %v1533 = vpop.f32.mrf.mxu0
        %v1534 = vadd.f32 0.0, %v1533
        %v1535 = vpop.f32.mrf.mxu0
        %1536 = vmatprep.mubr.f32.mxu0 0.0
        %1537 = vmatmul.mubr.f32.gmra.mxu0 %v1371
        %v1538 = vpop.f32.mrf.mxu0
        %v1539 = vadd.f32 0.0, %v1538
        %v1540 = vpop.f32.mrf.mxu0
        %1541 = vmatprep.mubr.f32.mxu0 0.0
        %1542 = vmatmul.mubr.f32.gmra.mxu0 %v1374
        %v1543 = vpop.f32.mrf.mxu0
        %v1544 = vadd.f32 0.0, %v1543
        %v1545 = vpop.f32.mrf.mxu0
        %1546 = vmatprep.mubr.f32.mxu0 0.0
        %1547 = vmatmul.mubr.f32.gmra.mxu0 %v1377
        %v1548 = vpop.f32.mrf.mxu0
        %v1549 = vadd.f32 0.0, %v1548
        %v1550 = vpop.f32.mrf.mxu0
        %1551 = vmatprep.mubr.f32.mxu0 0.0
        %1552 = vmatmul.mubr.f32.gmra.mxu0 %v1380
        %v1553 = vpop.f32.mrf.mxu0
        %v1554 = vadd.f32 0.0, %v1553
        %v1555 = vpop.f32.mrf.mxu0
        %1556 = vmatprep.mubr.f32.mxu0 0.0
        %1557 = vmatmul.mubr.f32.gmra.mxu0 %v1383
        %v1558 = vpop.f32.mrf.mxu0
        %v1559 = vadd.f32 0.0, %v1558
        %v1560 = vpop.f32.mrf.mxu0
        %1561 = vmatprep.mubr.f32.mxu0 0.0
        %1562 = vmatmul.mubr.f32.gmra.mxu0 %v1386
        %v1563 = vpop.f32.mrf.mxu0
        %v1564 = vadd.f32 0.0, %v1563
        %v1565 = vpop.f32.mrf.mxu0
        %1566 = vmatprep.mubr.f32.mxu0 0.0
        %1567 = vmatmul.mubr.f32.gmra.mxu0 %v1389
        %v1568 = vpop.f32.mrf.mxu0
        %v1569 = vadd.f32 0.0, %v1568
        %v1570 = vpop.f32.mrf.mxu0
        %1571 = vmatprep.mubr.f32.mxu0 0.0
        %1572 = vmatmul.mubr.f32.gmra.mxu0 %v1392
        %v1573 = vpop.f32.mrf.mxu0
        %v1574 = vadd.f32 0.0, %v1573
        %v1575 = vpop.f32.mrf.mxu0
        %1576 = vmatprep.mubr.f32.mxu0 0.0
        %1577 = vmatmul.mubr.f32.gmra.mxu0 %v1395
        %v1578 = vpop.f32.mrf.mxu0
        %v1579 = vadd.f32 0.0, %v1578
        %v1580 = vpop.f32.mrf.mxu0
        %1581 = vmatprep.mubr.f32.mxu0 0.0
        %1582 = vmatmul.mubr.f32.gmra.mxu0 %v1398
        %v1583 = vpop.f32.mrf.mxu0
        %v1584 = vadd.f32 0.0, %v1583
        %v1585 = vpop.f32.mrf.mxu0
        %1586 = vmatprep.mubr.f32.mxu0 0.0
        %1587 = vmatmul.mubr.f32.gmra.mxu0 %v1401
        %v1588 = vpop.f32.mrf.mxu0
        %v1589 = vadd.f32 0.0, %v1588
        %v1590 = vpop.f32.mrf.mxu0
        %1591 = vmatprep.mubr.f32.mxu0 0.0
        %1592 = vmatmul.mubr.f32.gmra.mxu0 %v1404
        %v1593 = vpop.f32.mrf.mxu0
        %v1594 = vadd.f32 0.0, %v1593
        %v1595 = vpop.f32.mrf.mxu0
        %1596 = vmatprep.mubr.f32.mxu0 0.0
        %1597 = vmatmul.mubr.f32.gmra.mxu0 %v1407
        %v1598 = vpop.f32.mrf.mxu0
        %v1599 = vadd.f32 0.0, %v1598
        %v1600 = vpop.f32.mrf.mxu0
        %1601 = vmatprep.mubr.f32.mxu0 0.0
        %1602 = vmatmul.mubr.f32.gmra.mxu0 %v1410
        %v1603 = vpop.f32.mrf.mxu0
        %v1604 = vadd.f32 0.0, %v1603
        %v1605 = vpop.f32.mrf.mxu0
        %1606 = vmatprep.mubr.f32.mxu0 0.0
        %1607 = vmatmul.mubr.f32.gmra.mxu0 %v1413
        %v1608 = vpop.f32.mrf.mxu0
        %v1609 = vadd.f32 0.0, %v1608
        %v1610 = vpop.f32.mrf.mxu0
        %1611 = vmatprep.mubr.f32.mxu0 0.0
        %1612 = vmatmul.mubr.f32.gmra.mxu0 %v1416
        %v1613 = vpop.f32.mrf.mxu0
        %v1614 = vadd.f32 0.0, %v1613
        %v1615 = vpop.f32.mrf.mxu0
        %1616 = vmatprep.mubr.f32.mxu0 0.0
        %1617 = vmatmul.mubr.f32.gmra.mxu0 %v1419
        %v1618 = vpop.f32.mrf.mxu0
        %v1619 = vadd.f32 0.0, %v1618
        %v1620 = vpop.f32.mrf.mxu0
        %1621 = vmatprep.mubr.f32.mxu0 0.0
        %1622 = vmatmul.mubr.f32.gmra.mxu0 %v1422
        %v1623 = vpop.f32.mrf.mxu0
        %v1624 = vadd.f32 0.0, %v1623
        %v1625 = vpop.f32.mrf.mxu0
        %1626 = vmatprep.mubr.f32.mxu0 0.0
        %1627 = vmatmul.mubr.f32.gmra.mxu0 %v1425
        %v1628 = vpop.f32.mrf.mxu0
        %v1629 = vadd.f32 0.0, %v1628
        %v1630 = vpop.f32.mrf.mxu0
        %1631 = vmatprep.mubr.f32.mxu0 0.0
        %1632 = vmatmul.mubr.f32.gmra.mxu0 %v1428
        %v1633 = vpop.f32.mrf.mxu0
        %v1634 = vadd.f32 0.0, %v1633
        %v1635 = vpop.f32.mrf.mxu0
        %1636 = vmatprep.mubr.f32.mxu0 0.0
        %1637 = vmatmul.mubr.f32.gmra.mxu0 %v1431
        %v1638 = vpop.f32.mrf.mxu0
        %v1639 = vadd.f32 0.0, %v1638
        %v1640 = vpop.f32.mrf.mxu0
        %1641 = vmatprep.mubr.f32.mxu0 0.0
        %1642 = vmatmul.mubr.f32.gmra.mxu0 %v1434
        %v1643 = vpop.f32.mrf.mxu0
        %v1644 = vadd.f32 0.0, %v1643
        %v1645 = vpop.f32.mrf.mxu0
        %1646 = vmatprep.mubr.f32.mxu0 0.0
        %1647 = vmatmul.mubr.f32.gmra.mxu0 %v1437
        %v1648 = vpop.f32.mrf.mxu0
        %v1649 = vadd.f32 0.0, %v1648
        %v1650 = vpop.f32.mrf.mxu0
        %1651 = vmatprep.mubr.f32.mxu0 0.0
        %1652 = vmatmul.mubr.f32.gmra.mxu0 %v1440
        %v1653 = vpop.f32.mrf.mxu0
        %v1654 = vadd.f32 0.0, %v1653
        %v1655 = vpop.f32.mrf.mxu0
        %1656 = vmatprep.mubr.f32.mxu0 0.0
        %1657 = vmatmul.mubr.f32.gmra.mxu0 %v1443
        %v1658 = vpop.f32.mrf.mxu0
        %v1659 = vadd.f32 0.0, %v1658
        %v1660 = vpop.f32.mrf.mxu0
        %1661 = vmatprep.mubr.f32.mxu0 0.0
        %1662 = vmatmul.mubr.f32.gmra.mxu0 %v1446
        %v1663 = vpop.f32.mrf.mxu0
        %v1664 = vadd.f32 0.0, %v1663
        %v1665 = vpop.f32.mrf.mxu0
        %1666 = vmatprep.mubr.f32.mxu0 0.0
        %1667 = vmatmul.mubr.f32.gmra.mxu0 %v1449
        %v1668 = vpop.f32.mrf.mxu0
        %v1669 = vadd.f32 0.0, %v1668
        %v1670 = vpop.f32.mrf.mxu0
        %1671 = vmatprep.mubr.f32.mxu0 0.0
        %1672 = vmatmul.mubr.f32.gmra.mxu0 %v1452
        %v1673 = vpop.f32.mrf.mxu0
        %v1674 = vadd.f32 0.0, %v1673
        %v1675 = vpop.f32.mrf.mxu0
        %1676 = vmatprep.mubr.f32.mxu0 0.0
        %1677 = vmatmul.mubr.f32.gmra.mxu0 %v1455
        %v1678 = vpop.f32.mrf.mxu0
        %v1679 = vadd.f32 0.0, %v1678
        %v1680 = vpop.f32.mrf.mxu0
        %1681 = vdwg.mxu0
        %v1682 = vadd.f32 %v1293, %v1524
        %v1683 = vadd.f32 %v1294, %v1529
        %v1684 = vadd.f32 %v1295, %v1534
        %v1685 = vadd.f32 %v1296, %v1539
        %v1686 = vadd.f32 %v1297, %v1544
        %v1687 = vadd.f32 %v1298, %v1549
        %v1688 = vadd.f32 %v1299, %v1554
        %v1689 = vadd.f32 %v1300, %v1559
        %v1690 = vadd.f32 %v1301, %v1564
        %v1691 = vadd.f32 %v1302, %v1569
        %v1692 = vadd.f32 %v1303, %v1574
        %v1693 = vadd.f32 %v1304, %v1579
        %v1694 = vadd.f32 %v1305, %v1584
        %v1695 = vadd.f32 %v1306, %v1589
        %v1696 = vadd.f32 %v1307, %v1594
        %v1697 = vadd.f32 %v1308, %v1599
        %v1698 = vadd.f32 %v1309, %v1604
        %v1699 = vadd.f32 %v1310, %v1609
        %v1700 = vadd.f32 %v1311, %v1614
        %v1701 = vadd.f32 %v1312, %v1619
        %v1702 = vadd.f32 %v1313, %v1624
        %v1703 = vadd.f32 %v1314, %v1629
        %v1704 = vadd.f32 %v1315, %v1634
        %v1705 = vadd.f32 %v1316, %v1639
        %v1706 = vadd.f32 %v1317, %v1644
        %v1707 = vadd.f32 %v1318, %v1649
        %v1708 = vadd.f32 %v1319, %v1654
        %v1709 = vadd.f32 %v1320, %v1659
        %v1710 = vadd.f32 %v1321, %v1664
        %v1711 = vadd.f32 %v1322, %v1669
        %v1712 = vadd.f32 %v1323, %v1674
        %v1713 = vadd.f32 %v1324, %v1679
        %v1714 = vld [vmem:[%s1325 + $0x1] sm:$0xff]
        %v1715 = vld [vmem:[%s1325 + $0x9] sm:$0xff]
        %v1716 = vld [vmem:[%s1325 + $0x19] sm:$0xff]
        %v1717 = vld [vmem:[%s1325 + $0x21] sm:$0xff]
        %v1718 = vld [vmem:[%s1325 + $0x31] sm:$0xff]
        %v1719 = vld [vmem:[%s1325 + $0x39] sm:$0xff]
        %v1720 = vld [vmem:[%s1325 + $0x49] sm:$0xff]
        %v1721 = vld [vmem:[%s1325 + $0x51] sm:$0xff]
        %v1722 = vld [vmem:[%s1325 + $0x61] sm:$0xff]
        %v1723 = vld [vmem:[%s1325 + $0x69] sm:$0xff]
        %v1724 = vld [vmem:[%s1325 + $0x79] sm:$0xff]
        %v1725 = vld [vmem:[%s1325 + $0x81] sm:$0xff]
        %v1726 = vld [vmem:[%s1325 + $0x91] sm:$0xff]
        %v1727 = vld [vmem:[%s1325 + $0x99] sm:$0xff]
        %v1728 = vld [vmem:[%s1325 + $0xa9] sm:$0xff]
        %v1729 = vld [vmem:[%s1325 + $0xb1] sm:$0xff]
        %v1730 = vld [vmem:[%s1325 + $0xc1] sm:$0xff]
        %v1731 = vld [vmem:[%s1325 + $0xc9] sm:$0xff]
        %v1732 = vld [vmem:[%s1325 + $0xd9] sm:$0xff]
        %v1733 = vld [vmem:[%s1325 + $0xe1] sm:$0xff]
        %v1734 = vld [vmem:[%s1325 + $0xf1] sm:$0xff]
        %v1735 = vld [vmem:[%s1325 + $0xf9] sm:$0xff]
        %v1736 = vld [vmem:[%s1325 + $0x109] sm:$0xff]
        %v1737 = vld [vmem:[%s1325 + $0x111] sm:$0xff]
        %v1738 = vld [vmem:[%s1325 + $0x121] sm:$0xff]
        %v1739 = vld [vmem:[%s1325 + $0x129] sm:$0xff]
        %v1740 = vld [vmem:[%s1325 + $0x139] sm:$0xff]
        %v1741 = vld [vmem:[%s1325 + $0x141] sm:$0xff]
        %v1742 = vld [vmem:[%s1325 + $0x151] sm:$0xff]
        %v1743 = vld [vmem:[%s1325 + $0x159] sm:$0xff]
        %v1744 = vld [vmem:[%s1325 + $0x169] sm:$0xff]
        %v1745 = vld [vmem:[%s1325 + $0x171] sm:$0xff]
        %s1746 = scalar_lea.vmem %s1, 64
        %v1747 = vld [vmem:[%s1746] sm:$0xff]
        %v1748 = vld [vmem:[%s1746 + $0x8] sm:$0xff]
        %v1750 = vsel %vm294, %v1714, 0
        %v1753 = vsel %vm294, %v1715, 0
        %v1756 = vsel %vm294, %v1716, 0
        %v1759 = vsel %vm294, %v1717, 0
        %v1762 = vsel %vm294, %v1718, 0
        %v1765 = vsel %vm294, %v1719, 0
        %v1768 = vsel %vm294, %v1720, 0
        %v1771 = vsel %vm294, %v1721, 0
        %v1774 = vsel %vm294, %v1722, 0
        %v1777 = vsel %vm294, %v1723, 0
        %v1780 = vsel %vm294, %v1724, 0
        %v1783 = vsel %vm294, %v1725, 0
        %v1786 = vsel %vm294, %v1726, 0
        %v1789 = vsel %vm294, %v1727, 0
        %v1792 = vsel %vm294, %v1728, 0
        %v1795 = vsel %vm294, %v1729, 0
        %v1798 = vsel %vm294, %v1730, 0
        %v1801 = vsel %vm294, %v1731, 0
        %v1804 = vsel %vm294, %v1732, 0
        %v1807 = vsel %vm294, %v1733, 0
        %v1810 = vsel %vm294, %v1734, 0
        %v1813 = vsel %vm294, %v1735, 0
        %v1816 = vsel %vm294, %v1736, 0
        %v1819 = vsel %vm294, %v1737, 0
        %v1822 = vsel %vm294, %v1738, 0
        %v1825 = vsel %vm294, %v1739, 0
        %v1828 = vsel %vm294, %v1740, 0
        %v1831 = vsel %vm294, %v1741, 0
        %v1834 = vsel %vm294, %v1742, 0
        %v1837 = vsel %vm294, %v1743, 0
        %v1840 = vsel %vm294, %v1744, 0
        %v1843 = vsel %vm294, %v1745, 0
        %1845 = vmatprep.subr.mxu0 0.0
        %1846 = vmatpush1.msra.mxu0 0.0
        %1847 = vmatprep.subr.mxu0 0.0
        %1848 = vmatpush1.msra.mxu0 0.0
        %1849 = vmatprep.subr.mxu0 0.0
        %1850 = vmatpush1.msra.mxu0 0.0
        %1851 = vmatprep.subr.mxu0 0.0
        %1852 = vmatpush1.msra.mxu0 0.0
        %1853 = vmatprep.subr.mxu0 0.0
        %1854 = vmatpush1.msra.mxu0 0.0
        %1855 = vmatprep.subr.mxu0 0.0
        %1856 = vmatpush1.msra.mxu0 0.0
        %1857 = vmatprep.subr.mxu0 0.0
        %1858 = vmatpush1.msra.mxu0 0.0
        %1859 = vmatprep.subr.mxu0 0.0
        %1860 = vmatpush1.msra.mxu0 0.0
        %1861 = vmatprep.subr.mxu0 0.0
        %1862 = vmatpush1.msra.mxu0 0.0
        %1863 = vmatprep.subr.mxu0 0.0
        %1864 = vmatpush1.msra.mxu0 0.0
        %1865 = vmatprep.subr.mxu0 0.0
        %1866 = vmatpush1.msra.mxu0 0.0
        %1867 = vmatprep.subr.mxu0 0.0
        %1868 = vmatpush1.msra.mxu0 0.0
        %1869 = vmatprep.subr.mxu0 0.0
        %1870 = vmatpush1.msra.mxu0 0.0
        %1871 = vmatprep.subr.mxu0 0.0
        %1872 = vmatpush1.msra.mxu0 0.0
        %1873 = vmatprep.subr.mxu0 0.0
        %1874 = vmatpush1.msra.mxu0 %v1748
        %1875 = vmatprep.subr.mxu0 0.0
        %1876 = vmatpush1.msra.mxu0 %v1747
        %1877 = vmatprep.subr.mxu0 0.0
        %1878 = vmatpush2.msra.mxu0 0.0
        %1879 = vmatprep.subr.mxu0 0.0
        %1880 = vmatpush2.msra.mxu0 0.0
        %1881 = vmatprep.subr.mxu0 0.0
        %1882 = vmatpush2.msra.mxu0 0.0
        %1883 = vmatprep.subr.mxu0 0.0
        %1884 = vmatpush2.msra.mxu0 0.0
        %1885 = vmatprep.subr.mxu0 0.0
        %1886 = vmatpush2.msra.mxu0 0.0
        %1887 = vmatprep.subr.mxu0 0.0
        %1888 = vmatpush2.msra.mxu0 0.0
        %1889 = vmatprep.subr.mxu0 0.0
        %1890 = vmatpush2.msra.mxu0 0.0
        %1891 = vmatprep.subr.mxu0 0.0
        %1892 = vmatpush2.msra.mxu0 0.0
        %1893 = vmatprep.subr.mxu0 0.0
        %1894 = vmatpush2.msra.mxu0 0.0
        %1895 = vmatprep.subr.mxu0 0.0
        %1896 = vmatpush2.msra.mxu0 0.0
        %1897 = vmatprep.subr.mxu0 0.0
        %1898 = vmatpush2.msra.mxu0 0.0
        %1899 = vmatprep.subr.mxu0 0.0
        %1900 = vmatpush2.msra.mxu0 0.0
        %1901 = vmatprep.subr.mxu0 0.0
        %1902 = vmatpush2.msra.mxu0 0.0
        %1903 = vmatprep.subr.mxu0 0.0
        %1904 = vmatpush2.msra.mxu0 0.0
        %1905 = vmatprep.subr.mxu0 0.0
        %1906 = vmatpush2.msra.mxu0 0.0
        %1907 = vmatprep.subr.mxu0 0.0
        %1908 = vmatpush2.msra.mxu0 0.0
        %1909 = vmatprep.mubr.f32.mxu0 0.0
        %1910 = vmatmul.mubr.f32.gmra.mxu0 %v1750
        %v1911 = vpop.f32.mrf.mxu0
        %v1912 = vadd.f32 0.0, %v1911
        %v1913 = vpop.f32.mrf.mxu0
        %1914 = vmatprep.mubr.f32.mxu0 0.0
        %1915 = vmatmul.mubr.f32.gmra.mxu0 %v1753
        %v1916 = vpop.f32.mrf.mxu0
        %v1917 = vadd.f32 0.0, %v1916
        %v1918 = vpop.f32.mrf.mxu0
        %1919 = vmatprep.mubr.f32.mxu0 0.0
        %1920 = vmatmul.mubr.f32.gmra.mxu0 %v1756
        %v1921 = vpop.f32.mrf.mxu0
        %v1922 = vadd.f32 0.0, %v1921
        %v1923 = vpop.f32.mrf.mxu0
        %1924 = vmatprep.mubr.f32.mxu0 0.0
        %1925 = vmatmul.mubr.f32.gmra.mxu0 %v1759
        %v1926 = vpop.f32.mrf.mxu0
        %v1927 = vadd.f32 0.0, %v1926
        %v1928 = vpop.f32.mrf.mxu0
        %1929 = vmatprep.mubr.f32.mxu0 0.0
        %1930 = vmatmul.mubr.f32.gmra.mxu0 %v1762
        %v1931 = vpop.f32.mrf.mxu0
        %v1932 = vadd.f32 0.0, %v1931
        %v1933 = vpop.f32.mrf.mxu0
        %1934 = vmatprep.mubr.f32.mxu0 0.0
        %1935 = vmatmul.mubr.f32.gmra.mxu0 %v1765
        %v1936 = vpop.f32.mrf.mxu0
        %v1937 = vadd.f32 0.0, %v1936
        %v1938 = vpop.f32.mrf.mxu0
        %1939 = vmatprep.mubr.f32.mxu0 0.0
        %1940 = vmatmul.mubr.f32.gmra.mxu0 %v1768
        %v1941 = vpop.f32.mrf.mxu0
        %v1942 = vadd.f32 0.0, %v1941
        %v1943 = vpop.f32.mrf.mxu0
        %1944 = vmatprep.mubr.f32.mxu0 0.0
        %1945 = vmatmul.mubr.f32.gmra.mxu0 %v1771
        %v1946 = vpop.f32.mrf.mxu0
        %v1947 = vadd.f32 0.0, %v1946
        %v1948 = vpop.f32.mrf.mxu0
        %1949 = vmatprep.mubr.f32.mxu0 0.0
        %1950 = vmatmul.mubr.f32.gmra.mxu0 %v1774
        %v1951 = vpop.f32.mrf.mxu0
        %v1952 = vadd.f32 0.0, %v1951
        %v1953 = vpop.f32.mrf.mxu0
        %1954 = vmatprep.mubr.f32.mxu0 0.0
        %1955 = vmatmul.mubr.f32.gmra.mxu0 %v1777
        %v1956 = vpop.f32.mrf.mxu0
        %v1957 = vadd.f32 0.0, %v1956
        %v1958 = vpop.f32.mrf.mxu0
        %1959 = vmatprep.mubr.f32.mxu0 0.0
        %1960 = vmatmul.mubr.f32.gmra.mxu0 %v1780
        %v1961 = vpop.f32.mrf.mxu0
        %v1962 = vadd.f32 0.0, %v1961
        %v1963 = vpop.f32.mrf.mxu0
        %1964 = vmatprep.mubr.f32.mxu0 0.0
        %1965 = vmatmul.mubr.f32.gmra.mxu0 %v1783
        %v1966 = vpop.f32.mrf.mxu0
        %v1967 = vadd.f32 0.0, %v1966
        %v1968 = vpop.f32.mrf.mxu0
        %1969 = vmatprep.mubr.f32.mxu0 0.0
        %1970 = vmatmul.mubr.f32.gmra.mxu0 %v1786
        %v1971 = vpop.f32.mrf.mxu0
        %v1972 = vadd.f32 0.0, %v1971
        %v1973 = vpop.f32.mrf.mxu0
        %1974 = vmatprep.mubr.f32.mxu0 0.0
        %1975 = vmatmul.mubr.f32.gmra.mxu0 %v1789
        %v1976 = vpop.f32.mrf.mxu0
        %v1977 = vadd.f32 0.0, %v1976
        %v1978 = vpop.f32.mrf.mxu0
        %1979 = vmatprep.mubr.f32.mxu0 0.0
        %1980 = vmatmul.mubr.f32.gmra.mxu0 %v1792
        %v1981 = vpop.f32.mrf.mxu0
        %v1982 = vadd.f32 0.0, %v1981
        %v1983 = vpop.f32.mrf.mxu0
        %1984 = vmatprep.mubr.f32.mxu0 0.0
        %1985 = vmatmul.mubr.f32.gmra.mxu0 %v1795
        %v1986 = vpop.f32.mrf.mxu0
        %v1987 = vadd.f32 0.0, %v1986
        %v1988 = vpop.f32.mrf.mxu0
        %1989 = vmatprep.mubr.f32.mxu0 0.0
        %1990 = vmatmul.mubr.f32.gmra.mxu0 %v1798
        %v1991 = vpop.f32.mrf.mxu0
        %v1992 = vadd.f32 0.0, %v1991
        %v1993 = vpop.f32.mrf.mxu0
        %1994 = vmatprep.mubr.f32.mxu0 0.0
        %1995 = vmatmul.mubr.f32.gmra.mxu0 %v1801
        %v1996 = vpop.f32.mrf.mxu0
        %v1997 = vadd.f32 0.0, %v1996
        %v1998 = vpop.f32.mrf.mxu0
        %1999 = vmatprep.mubr.f32.mxu0 0.0
        %2000 = vmatmul.mubr.f32.gmra.mxu0 %v1804
        %v2001 = vpop.f32.mrf.mxu0
        %v2002 = vadd.f32 0.0, %v2001
        %v2003 = vpop.f32.mrf.mxu0
        %2004 = vmatprep.mubr.f32.mxu0 0.0
        %2005 = vmatmul.mubr.f32.gmra.mxu0 %v1807
        %v2006 = vpop.f32.mrf.mxu0
        %v2007 = vadd.f32 0.0, %v2006
        %v2008 = vpop.f32.mrf.mxu0
        %2009 = vmatprep.mubr.f32.mxu0 0.0
        %2010 = vmatmul.mubr.f32.gmra.mxu0 %v1810
        %v2011 = vpop.f32.mrf.mxu0
        %v2012 = vadd.f32 0.0, %v2011
        %v2013 = vpop.f32.mrf.mxu0
        %2014 = vmatprep.mubr.f32.mxu0 0.0
        %2015 = vmatmul.mubr.f32.gmra.mxu0 %v1813
        %v2016 = vpop.f32.mrf.mxu0
        %v2017 = vadd.f32 0.0, %v2016
        %v2018 = vpop.f32.mrf.mxu0
        %2019 = vmatprep.mubr.f32.mxu0 0.0
        %2020 = vmatmul.mubr.f32.gmra.mxu0 %v1816
        %v2021 = vpop.f32.mrf.mxu0
        %v2022 = vadd.f32 0.0, %v2021
        %v2023 = vpop.f32.mrf.mxu0
        %2024 = vmatprep.mubr.f32.mxu0 0.0
        %2025 = vmatmul.mubr.f32.gmra.mxu0 %v1819
        %v2026 = vpop.f32.mrf.mxu0
        %v2027 = vadd.f32 0.0, %v2026
        %v2028 = vpop.f32.mrf.mxu0
        %2029 = vmatprep.mubr.f32.mxu0 0.0
        %2030 = vmatmul.mubr.f32.gmra.mxu0 %v1822
        %v2031 = vpop.f32.mrf.mxu0
        %v2032 = vadd.f32 0.0, %v2031
        %v2033 = vpop.f32.mrf.mxu0
        %2034 = vmatprep.mubr.f32.mxu0 0.0
        %2035 = vmatmul.mubr.f32.gmra.mxu0 %v1825
        %v2036 = vpop.f32.mrf.mxu0
        %v2037 = vadd.f32 0.0, %v2036
        %v2038 = vpop.f32.mrf.mxu0
        %2039 = vmatprep.mubr.f32.mxu0 0.0
        %2040 = vmatmul.mubr.f32.gmra.mxu0 %v1828
        %v2041 = vpop.f32.mrf.mxu0
        %v2042 = vadd.f32 0.0, %v2041
        %v2043 = vpop.f32.mrf.mxu0
        %2044 = vmatprep.mubr.f32.mxu0 0.0
        %2045 = vmatmul.mubr.f32.gmra.mxu0 %v1831
        %v2046 = vpop.f32.mrf.mxu0
        %v2047 = vadd.f32 0.0, %v2046
        %v2048 = vpop.f32.mrf.mxu0
        %2049 = vmatprep.mubr.f32.mxu0 0.0
        %2050 = vmatmul.mubr.f32.gmra.mxu0 %v1834
        %v2051 = vpop.f32.mrf.mxu0
        %v2052 = vadd.f32 0.0, %v2051
        %v2053 = vpop.f32.mrf.mxu0
        %2054 = vmatprep.mubr.f32.mxu0 0.0
        %2055 = vmatmul.mubr.f32.gmra.mxu0 %v1837
        %v2056 = vpop.f32.mrf.mxu0
        %v2057 = vadd.f32 0.0, %v2056
        %v2058 = vpop.f32.mrf.mxu0
        %2059 = vmatprep.mubr.f32.mxu0 0.0
        %2060 = vmatmul.mubr.f32.gmra.mxu0 %v1840
        %v2061 = vpop.f32.mrf.mxu0
        %v2062 = vadd.f32 0.0, %v2061
        %v2063 = vpop.f32.mrf.mxu0
        %2064 = vmatprep.mubr.f32.mxu0 0.0
        %2065 = vmatmul.mubr.f32.gmra.mxu0 %v1843
        %v2066 = vpop.f32.mrf.mxu0
        %v2067 = vadd.f32 0.0, %v2066
        %v2068 = vpop.f32.mrf.mxu0
        %2069 = vdwg.mxu0
        %v2070 = vadd.f32 %v1682, %v1912
        %v2071 = vadd.f32 %v1683, %v1917
        %v2072 = vadd.f32 %v1684, %v1922
        %v2073 = vadd.f32 %v1685, %v1927
        %v2074 = vadd.f32 %v1686, %v1932
        %v2075 = vadd.f32 %v1687, %v1937
        %v2076 = vadd.f32 %v1688, %v1942
        %v2077 = vadd.f32 %v1689, %v1947
        %v2078 = vadd.f32 %v1690, %v1952
        %v2079 = vadd.f32 %v1691, %v1957
        %v2080 = vadd.f32 %v1692, %v1962
        %v2081 = vadd.f32 %v1693, %v1967
        %v2082 = vadd.f32 %v1694, %v1972
        %v2083 = vadd.f32 %v1695, %v1977
        %v2084 = vadd.f32 %v1696, %v1982
        %v2085 = vadd.f32 %v1697, %v1987
        %v2086 = vadd.f32 %v1698, %v1992
        %v2087 = vadd.f32 %v1699, %v1997
        %v2088 = vadd.f32 %v1700, %v2002
        %v2089 = vadd.f32 %v1701, %v2007
        %v2090 = vadd.f32 %v1702, %v2012
        %v2091 = vadd.f32 %v1703, %v2017
        %v2092 = vadd.f32 %v1704, %v2022
        %v2093 = vadd.f32 %v1705, %v2027
        %v2094 = vadd.f32 %v1706, %v2032
        %v2095 = vadd.f32 %v1707, %v2037
        %v2096 = vadd.f32 %v1708, %v2042
        %v2097 = vadd.f32 %v1709, %v2047
        %v2098 = vadd.f32 %v1710, %v2052
        %v2099 = vadd.f32 %v1711, %v2057
        %v2100 = vadd.f32 %v1712, %v2062
        %v2101 = vadd.f32 %v1713, %v2067
        %v2102 = vld [vmem:[%s1325 + $0x2] sm:$0xff]
        %v2103 = vld [vmem:[%s1325 + $0xa] sm:$0xff]
        %v2104 = vld [vmem:[%s1325 + $0x1a] sm:$0xff]
        %v2105 = vld [vmem:[%s1325 + $0x22] sm:$0xff]
        %v2106 = vld [vmem:[%s1325 + $0x32] sm:$0xff]
        %v2107 = vld [vmem:[%s1325 + $0x3a] sm:$0xff]
        %v2108 = vld [vmem:[%s1325 + $0x4a] sm:$0xff]
        %v2109 = vld [vmem:[%s1325 + $0x52] sm:$0xff]
        %v2110 = vld [vmem:[%s1325 + $0x62] sm:$0xff]
        %v2111 = vld [vmem:[%s1325 + $0x6a] sm:$0xff]
        %v2112 = vld [vmem:[%s1325 + $0x7a] sm:$0xff]
        %v2113 = vld [vmem:[%s1325 + $0x82] sm:$0xff]
        %v2114 = vld [vmem:[%s1325 + $0x92] sm:$0xff]
        %v2115 = vld [vmem:[%s1325 + $0x9a] sm:$0xff]
        %v2116 = vld [vmem:[%s1325 + $0xaa] sm:$0xff]
        %v2117 = vld [vmem:[%s1325 + $0xb2] sm:$0xff]
        %v2118 = vld [vmem:[%s1325 + $0xc2] sm:$0xff]
        %v2119 = vld [vmem:[%s1325 + $0xca] sm:$0xff]
        %v2120 = vld [vmem:[%s1325 + $0xda] sm:$0xff]
        %v2121 = vld [vmem:[%s1325 + $0xe2] sm:$0xff]
        %v2122 = vld [vmem:[%s1325 + $0xf2] sm:$0xff]
        %v2123 = vld [vmem:[%s1325 + $0xfa] sm:$0xff]
        %v2124 = vld [vmem:[%s1325 + $0x10a] sm:$0xff]
        %v2125 = vld [vmem:[%s1325 + $0x112] sm:$0xff]
        %v2126 = vld [vmem:[%s1325 + $0x122] sm:$0xff]
        %v2127 = vld [vmem:[%s1325 + $0x12a] sm:$0xff]
        %v2128 = vld [vmem:[%s1325 + $0x13a] sm:$0xff]
        %v2129 = vld [vmem:[%s1325 + $0x142] sm:$0xff]
        %v2130 = vld [vmem:[%s1325 + $0x152] sm:$0xff]
        %v2131 = vld [vmem:[%s1325 + $0x15a] sm:$0xff]
        %v2132 = vld [vmem:[%s1325 + $0x16a] sm:$0xff]
        %v2133 = vld [vmem:[%s1325 + $0x172] sm:$0xff]
        %s2134 = scalar_lea.vmem %s1, 80
        %v2135 = vld [vmem:[%s2134] sm:$0xff]
        %v2136 = vld [vmem:[%s2134 + $0x8] sm:$0xff]
        %v2138 = vsel %vm294, %v2102, 0
        %v2141 = vsel %vm294, %v2103, 0
        %v2144 = vsel %vm294, %v2104, 0
        %v2147 = vsel %vm294, %v2105, 0
        %v2150 = vsel %vm294, %v2106, 0
        %v2153 = vsel %vm294, %v2107, 0
        %v2156 = vsel %vm294, %v2108, 0
        %v2159 = vsel %vm294, %v2109, 0
        %v2162 = vsel %vm294, %v2110, 0
        %v2165 = vsel %vm294, %v2111, 0
        %v2168 = vsel %vm294, %v2112, 0
        %v2171 = vsel %vm294, %v2113, 0
        %v2174 = vsel %vm294, %v2114, 0
        %v2177 = vsel %vm294, %v2115, 0
        %v2180 = vsel %vm294, %v2116, 0
        %v2183 = vsel %vm294, %v2117, 0
        %v2186 = vsel %vm294, %v2118, 0
        %v2189 = vsel %vm294, %v2119, 0
        %v2192 = vsel %vm294, %v2120, 0
        %v2195 = vsel %vm294, %v2121, 0
        %v2198 = vsel %vm294, %v2122, 0
        %v2201 = vsel %vm294, %v2123, 0
        %v2204 = vsel %vm294, %v2124, 0
        %v2207 = vsel %vm294, %v2125, 0
        %v2210 = vsel %vm294, %v2126, 0
        %v2213 = vsel %vm294, %v2127, 0
        %v2216 = vsel %vm294, %v2128, 0
        %v2219 = vsel %vm294, %v2129, 0
        %v2222 = vsel %vm294, %v2130, 0
        %v2225 = vsel %vm294, %v2131, 0
        %v2228 = vsel %vm294, %v2132, 0
        %v2231 = vsel %vm294, %v2133, 0
        %2233 = vmatprep.subr.mxu0 0.0
        %2234 = vmatpush1.msra.mxu0 0.0
        %2235 = vmatprep.subr.mxu0 0.0
        %2236 = vmatpush1.msra.mxu0 0.0
        %2237 = vmatprep.subr.mxu0 0.0
        %2238 = vmatpush1.msra.mxu0 0.0
        %2239 = vmatprep.subr.mxu0 0.0
        %2240 = vmatpush1.msra.mxu0 0.0
        %2241 = vmatprep.subr.mxu0 0.0
        %2242 = vmatpush1.msra.mxu0 0.0
        %2243 = vmatprep.subr.mxu0 0.0
        %2244 = vmatpush1.msra.mxu0 0.0
        %2245 = vmatprep.subr.mxu0 0.0
        %2246 = vmatpush1.msra.mxu0 0.0
        %2247 = vmatprep.subr.mxu0 0.0
        %2248 = vmatpush1.msra.mxu0 0.0
        %2249 = vmatprep.subr.mxu0 0.0
        %2250 = vmatpush1.msra.mxu0 0.0
        %2251 = vmatprep.subr.mxu0 0.0
        %2252 = vmatpush1.msra.mxu0 0.0
        %2253 = vmatprep.subr.mxu0 0.0
        %2254 = vmatpush1.msra.mxu0 0.0
        %2255 = vmatprep.subr.mxu0 0.0
        %2256 = vmatpush1.msra.mxu0 0.0
        %2257 = vmatprep.subr.mxu0 0.0
        %2258 = vmatpush1.msra.mxu0 0.0
        %2259 = vmatprep.subr.mxu0 0.0
        %2260 = vmatpush1.msra.mxu0 0.0
        %2261 = vmatprep.subr.mxu0 0.0
        %2262 = vmatpush1.msra.mxu0 %v2136
        %2263 = vmatprep.subr.mxu0 0.0
        %2264 = vmatpush1.msra.mxu0 %v2135
        %2265 = vmatprep.subr.mxu0 0.0
        %2266 = vmatpush2.msra.mxu0 0.0
        %2267 = vmatprep.subr.mxu0 0.0
        %2268 = vmatpush2.msra.mxu0 0.0
        %2269 = vmatprep.subr.mxu0 0.0
        %2270 = vmatpush2.msra.mxu0 0.0
        %2271 = vmatprep.subr.mxu0 0.0
        %2272 = vmatpush2.msra.mxu0 0.0
        %2273 = vmatprep.subr.mxu0 0.0
        %2274 = vmatpush2.msra.mxu0 0.0
        %2275 = vmatprep.subr.mxu0 0.0
        %2276 = vmatpush2.msra.mxu0 0.0
        %2277 = vmatprep.subr.mxu0 0.0
        %2278 = vmatpush2.msra.mxu0 0.0
        %2279 = vmatprep.subr.mxu0 0.0
        %2280 = vmatpush2.msra.mxu0 0.0
        %2281 = vmatprep.subr.mxu0 0.0
        %2282 = vmatpush2.msra.mxu0 0.0
        %2283 = vmatprep.subr.mxu0 0.0
        %2284 = vmatpush2.msra.mxu0 0.0
        %2285 = vmatprep.subr.mxu0 0.0
        %2286 = vmatpush2.msra.mxu0 0.0
        %2287 = vmatprep.subr.mxu0 0.0
        %2288 = vmatpush2.msra.mxu0 0.0
        %2289 = vmatprep.subr.mxu0 0.0
        %2290 = vmatpush2.msra.mxu0 0.0
        %2291 = vmatprep.subr.mxu0 0.0
        %2292 = vmatpush2.msra.mxu0 0.0
        %2293 = vmatprep.subr.mxu0 0.0
        %2294 = vmatpush2.msra.mxu0 0.0
        %2295 = vmatprep.subr.mxu0 0.0
        %2296 = vmatpush2.msra.mxu0 0.0
        %2297 = vmatprep.mubr.f32.mxu0 0.0
        %2298 = vmatmul.mubr.f32.gmra.mxu0 %v2138
        %v2299 = vpop.f32.mrf.mxu0
        %v2300 = vadd.f32 0.0, %v2299
        %v2301 = vpop.f32.mrf.mxu0
        %2302 = vmatprep.mubr.f32.mxu0 0.0
        %2303 = vmatmul.mubr.f32.gmra.mxu0 %v2141
        %v2304 = vpop.f32.mrf.mxu0
        %v2305 = vadd.f32 0.0, %v2304
        %v2306 = vpop.f32.mrf.mxu0
        %2307 = vmatprep.mubr.f32.mxu0 0.0
        %2308 = vmatmul.mubr.f32.gmra.mxu0 %v2144
        %v2309 = vpop.f32.mrf.mxu0
        %v2310 = vadd.f32 0.0, %v2309
        %v2311 = vpop.f32.mrf.mxu0
        %2312 = vmatprep.mubr.f32.mxu0 0.0
        %2313 = vmatmul.mubr.f32.gmra.mxu0 %v2147
        %v2314 = vpop.f32.mrf.mxu0
        %v2315 = vadd.f32 0.0, %v2314
        %v2316 = vpop.f32.mrf.mxu0
        %2317 = vmatprep.mubr.f32.mxu0 0.0
        %2318 = vmatmul.mubr.f32.gmra.mxu0 %v2150
        %v2319 = vpop.f32.mrf.mxu0
        %v2320 = vadd.f32 0.0, %v2319
        %v2321 = vpop.f32.mrf.mxu0
        %2322 = vmatprep.mubr.f32.mxu0 0.0
        %2323 = vmatmul.mubr.f32.gmra.mxu0 %v2153
        %v2324 = vpop.f32.mrf.mxu0
        %v2325 = vadd.f32 0.0, %v2324
        %v2326 = vpop.f32.mrf.mxu0
        %2327 = vmatprep.mubr.f32.mxu0 0.0
        %2328 = vmatmul.mubr.f32.gmra.mxu0 %v2156
        %v2329 = vpop.f32.mrf.mxu0
        %v2330 = vadd.f32 0.0, %v2329
        %v2331 = vpop.f32.mrf.mxu0
        %2332 = vmatprep.mubr.f32.mxu0 0.0
        %2333 = vmatmul.mubr.f32.gmra.mxu0 %v2159
        %v2334 = vpop.f32.mrf.mxu0
        %v2335 = vadd.f32 0.0, %v2334
        %v2336 = vpop.f32.mrf.mxu0
        %2337 = vmatprep.mubr.f32.mxu0 0.0
        %2338 = vmatmul.mubr.f32.gmra.mxu0 %v2162
        %v2339 = vpop.f32.mrf.mxu0
        %v2340 = vadd.f32 0.0, %v2339
        %v2341 = vpop.f32.mrf.mxu0
        %2342 = vmatprep.mubr.f32.mxu0 0.0
        %2343 = vmatmul.mubr.f32.gmra.mxu0 %v2165
        %v2344 = vpop.f32.mrf.mxu0
        %v2345 = vadd.f32 0.0, %v2344
        %v2346 = vpop.f32.mrf.mxu0
        %2347 = vmatprep.mubr.f32.mxu0 0.0
        %2348 = vmatmul.mubr.f32.gmra.mxu0 %v2168
        %v2349 = vpop.f32.mrf.mxu0
        %v2350 = vadd.f32 0.0, %v2349
        %v2351 = vpop.f32.mrf.mxu0
        %2352 = vmatprep.mubr.f32.mxu0 0.0
        %2353 = vmatmul.mubr.f32.gmra.mxu0 %v2171
        %v2354 = vpop.f32.mrf.mxu0
        %v2355 = vadd.f32 0.0, %v2354
        %v2356 = vpop.f32.mrf.mxu0
        %2357 = vmatprep.mubr.f32.mxu0 0.0
        %2358 = vmatmul.mubr.f32.gmra.mxu0 %v2174
        %v2359 = vpop.f32.mrf.mxu0
        %v2360 = vadd.f32 0.0, %v2359
        %v2361 = vpop.f32.mrf.mxu0
        %2362 = vmatprep.mubr.f32.mxu0 0.0
        %2363 = vmatmul.mubr.f32.gmra.mxu0 %v2177
        %v2364 = vpop.f32.mrf.mxu0
        %v2365 = vadd.f32 0.0, %v2364
        %v2366 = vpop.f32.mrf.mxu0
        %2367 = vmatprep.mubr.f32.mxu0 0.0
        %2368 = vmatmul.mubr.f32.gmra.mxu0 %v2180
        %v2369 = vpop.f32.mrf.mxu0
        %v2370 = vadd.f32 0.0, %v2369
        %v2371 = vpop.f32.mrf.mxu0
        %2372 = vmatprep.mubr.f32.mxu0 0.0
        %2373 = vmatmul.mubr.f32.gmra.mxu0 %v2183
        %v2374 = vpop.f32.mrf.mxu0
        %v2375 = vadd.f32 0.0, %v2374
        %v2376 = vpop.f32.mrf.mxu0
        %2377 = vmatprep.mubr.f32.mxu0 0.0
        %2378 = vmatmul.mubr.f32.gmra.mxu0 %v2186
        %v2379 = vpop.f32.mrf.mxu0
        %v2380 = vadd.f32 0.0, %v2379
        %v2381 = vpop.f32.mrf.mxu0
        %2382 = vmatprep.mubr.f32.mxu0 0.0
        %2383 = vmatmul.mubr.f32.gmra.mxu0 %v2189
        %v2384 = vpop.f32.mrf.mxu0
        %v2385 = vadd.f32 0.0, %v2384
        %v2386 = vpop.f32.mrf.mxu0
        %2387 = vmatprep.mubr.f32.mxu0 0.0
        %2388 = vmatmul.mubr.f32.gmra.mxu0 %v2192
        %v2389 = vpop.f32.mrf.mxu0
        %v2390 = vadd.f32 0.0, %v2389
        %v2391 = vpop.f32.mrf.mxu0
        %2392 = vmatprep.mubr.f32.mxu0 0.0
        %2393 = vmatmul.mubr.f32.gmra.mxu0 %v2195
        %v2394 = vpop.f32.mrf.mxu0
        %v2395 = vadd.f32 0.0, %v2394
        %v2396 = vpop.f32.mrf.mxu0
        %2397 = vmatprep.mubr.f32.mxu0 0.0
        %2398 = vmatmul.mubr.f32.gmra.mxu0 %v2198
        %v2399 = vpop.f32.mrf.mxu0
        %v2400 = vadd.f32 0.0, %v2399
        %v2401 = vpop.f32.mrf.mxu0
        %2402 = vmatprep.mubr.f32.mxu0 0.0
        %2403 = vmatmul.mubr.f32.gmra.mxu0 %v2201
        %v2404 = vpop.f32.mrf.mxu0
        %v2405 = vadd.f32 0.0, %v2404
        %v2406 = vpop.f32.mrf.mxu0
        %2407 = vmatprep.mubr.f32.mxu0 0.0
        %2408 = vmatmul.mubr.f32.gmra.mxu0 %v2204
        %v2409 = vpop.f32.mrf.mxu0
        %v2410 = vadd.f32 0.0, %v2409
        %v2411 = vpop.f32.mrf.mxu0
        %2412 = vmatprep.mubr.f32.mxu0 0.0
        %2413 = vmatmul.mubr.f32.gmra.mxu0 %v2207
        %v2414 = vpop.f32.mrf.mxu0
        %v2415 = vadd.f32 0.0, %v2414
        %v2416 = vpop.f32.mrf.mxu0
        %2417 = vmatprep.mubr.f32.mxu0 0.0
        %2418 = vmatmul.mubr.f32.gmra.mxu0 %v2210
        %v2419 = vpop.f32.mrf.mxu0
        %v2420 = vadd.f32 0.0, %v2419
        %v2421 = vpop.f32.mrf.mxu0
        %2422 = vmatprep.mubr.f32.mxu0 0.0
        %2423 = vmatmul.mubr.f32.gmra.mxu0 %v2213
        %v2424 = vpop.f32.mrf.mxu0
        %v2425 = vadd.f32 0.0, %v2424
        %v2426 = vpop.f32.mrf.mxu0
        %2427 = vmatprep.mubr.f32.mxu0 0.0
        %2428 = vmatmul.mubr.f32.gmra.mxu0 %v2216
        %v2429 = vpop.f32.mrf.mxu0
        %v2430 = vadd.f32 0.0, %v2429
        %v2431 = vpop.f32.mrf.mxu0
        %2432 = vmatprep.mubr.f32.mxu0 0.0
        %2433 = vmatmul.mubr.f32.gmra.mxu0 %v2219
        %v2434 = vpop.f32.mrf.mxu0
        %v2435 = vadd.f32 0.0, %v2434
        %v2436 = vpop.f32.mrf.mxu0
        %2437 = vmatprep.mubr.f32.mxu0 0.0
        %2438 = vmatmul.mubr.f32.gmra.mxu0 %v2222
        %v2439 = vpop.f32.mrf.mxu0
        %v2440 = vadd.f32 0.0, %v2439
        %v2441 = vpop.f32.mrf.mxu0
        %2442 = vmatprep.mubr.f32.mxu0 0.0
        %2443 = vmatmul.mubr.f32.gmra.mxu0 %v2225
        %v2444 = vpop.f32.mrf.mxu0
        %v2445 = vadd.f32 0.0, %v2444
        %v2446 = vpop.f32.mrf.mxu0
        %2447 = vmatprep.mubr.f32.mxu0 0.0
        %2448 = vmatmul.mubr.f32.gmra.mxu0 %v2228
        %v2449 = vpop.f32.mrf.mxu0
        %v2450 = vadd.f32 0.0, %v2449
        %v2451 = vpop.f32.mrf.mxu0
        %2452 = vmatprep.mubr.f32.mxu0 0.0
        %2453 = vmatmul.mubr.f32.gmra.mxu0 %v2231
        %v2454 = vpop.f32.mrf.mxu0
        %v2455 = vadd.f32 0.0, %v2454
        %v2456 = vpop.f32.mrf.mxu0
        %2457 = vdwg.mxu0
        %v2458 = vadd.f32 %v2070, %v2300
        %v2459 = vadd.f32 %v2071, %v2305
        %v2460 = vadd.f32 %v2072, %v2310
        %v2461 = vadd.f32 %v2073, %v2315
        %v2462 = vadd.f32 %v2074, %v2320
        %v2463 = vadd.f32 %v2075, %v2325
        %v2464 = vadd.f32 %v2076, %v2330
        %v2465 = vadd.f32 %v2077, %v2335
        %v2466 = vadd.f32 %v2078, %v2340
        %v2467 = vadd.f32 %v2079, %v2345
        %v2468 = vadd.f32 %v2080, %v2350
        %v2469 = vadd.f32 %v2081, %v2355
        %v2470 = vadd.f32 %v2082, %v2360
        %v2471 = vadd.f32 %v2083, %v2365
        %v2472 = vadd.f32 %v2084, %v2370
        %v2473 = vadd.f32 %v2085, %v2375
        %v2474 = vadd.f32 %v2086, %v2380
        %v2475 = vadd.f32 %v2087, %v2385
        %v2476 = vadd.f32 %v2088, %v2390
        %v2477 = vadd.f32 %v2089, %v2395
        %v2478 = vadd.f32 %v2090, %v2400
        %v2479 = vadd.f32 %v2091, %v2405
        %v2480 = vadd.f32 %v2092, %v2410
        %v2481 = vadd.f32 %v2093, %v2415
        %v2482 = vadd.f32 %v2094, %v2420
        %v2483 = vadd.f32 %v2095, %v2425
        %v2484 = vadd.f32 %v2096, %v2430
        %v2485 = vadd.f32 %v2097, %v2435
        %v2486 = vadd.f32 %v2098, %v2440
        %v2487 = vadd.f32 %v2099, %v2445
        %v2488 = vadd.f32 %v2100, %v2450
        %v2489 = vadd.f32 %v2101, %v2455
        %s2490 = scalar_lea.vmem %s223, 48
        %v2491 = vld [vmem:[%s2490] sm:$0xff]
        %v2492 = vld [vmem:[%s2490 + $0x8] sm:$0xff]
        %v2493 = vld [vmem:[%s2490 + $0x18] sm:$0xff]
        %v2494 = vld [vmem:[%s2490 + $0x20] sm:$0xff]
        %v2495 = vld [vmem:[%s2490 + $0x30] sm:$0xff]
        %v2496 = vld [vmem:[%s2490 + $0x38] sm:$0xff]
        %v2497 = vld [vmem:[%s2490 + $0x48] sm:$0xff]
        %v2498 = vld [vmem:[%s2490 + $0x50] sm:$0xff]
        %v2499 = vld [vmem:[%s2490 + $0x60] sm:$0xff]
        %v2500 = vld [vmem:[%s2490 + $0x68] sm:$0xff]
        %v2501 = vld [vmem:[%s2490 + $0x78] sm:$0xff]
        %v2502 = vld [vmem:[%s2490 + $0x80] sm:$0xff]
        %v2503 = vld [vmem:[%s2490 + $0x90] sm:$0xff]
        %v2504 = vld [vmem:[%s2490 + $0x98] sm:$0xff]
        %v2505 = vld [vmem:[%s2490 + $0xa8] sm:$0xff]
        %v2506 = vld [vmem:[%s2490 + $0xb0] sm:$0xff]
        %v2507 = vld [vmem:[%s2490 + $0xc0] sm:$0xff]
        %v2508 = vld [vmem:[%s2490 + $0xc8] sm:$0xff]
        %v2509 = vld [vmem:[%s2490 + $0xd8] sm:$0xff]
        %v2510 = vld [vmem:[%s2490 + $0xe0] sm:$0xff]
        %v2511 = vld [vmem:[%s2490 + $0xf0] sm:$0xff]
        %v2512 = vld [vmem:[%s2490 + $0xf8] sm:$0xff]
        %v2513 = vld [vmem:[%s2490 + $0x108] sm:$0xff]
        %v2514 = vld [vmem:[%s2490 + $0x110] sm:$0xff]
        %v2515 = vld [vmem:[%s2490 + $0x120] sm:$0xff]
        %v2516 = vld [vmem:[%s2490 + $0x128] sm:$0xff]
        %v2517 = vld [vmem:[%s2490 + $0x138] sm:$0xff]
        %v2518 = vld [vmem:[%s2490 + $0x140] sm:$0xff]
        %v2519 = vld [vmem:[%s2490 + $0x150] sm:$0xff]
        %v2520 = vld [vmem:[%s2490 + $0x158] sm:$0xff]
        %v2521 = vld [vmem:[%s2490 + $0x168] sm:$0xff]
        %v2522 = vld [vmem:[%s2490 + $0x170] sm:$0xff]
        %s2523 = scalar_lea.vmem %s1, 96
        %v2524 = vld [vmem:[%s2523] sm:$0xff]
        %v2525 = vld [vmem:[%s2523 + $0x8] sm:$0xff]
        %v2527 = vsel %vm294, %v2491, 0
        %v2530 = vsel %vm294, %v2492, 0
        %v2533 = vsel %vm294, %v2493, 0
        %v2536 = vsel %vm294, %v2494, 0
        %v2539 = vsel %vm294, %v2495, 0
        %v2542 = vsel %vm294, %v2496, 0
        %v2545 = vsel %vm294, %v2497, 0
        %v2548 = vsel %vm294, %v2498, 0
        %v2551 = vsel %vm294, %v2499, 0
        %v2554 = vsel %vm294, %v2500, 0
        %v2557 = vsel %vm294, %v2501, 0
        %v2560 = vsel %vm294, %v2502, 0
        %v2563 = vsel %vm294, %v2503, 0
        %v2566 = vsel %vm294, %v2504, 0
        %v2569 = vsel %vm294, %v2505, 0
        %v2572 = vsel %vm294, %v2506, 0
        %v2575 = vsel %vm294, %v2507, 0
        %v2578 = vsel %vm294, %v2508, 0
        %v2581 = vsel %vm294, %v2509, 0
        %v2584 = vsel %vm294, %v2510, 0
        %v2587 = vsel %vm294, %v2511, 0
        %v2590 = vsel %vm294, %v2512, 0
        %v2593 = vsel %vm294, %v2513, 0
        %v2596 = vsel %vm294, %v2514, 0
        %v2599 = vsel %vm294, %v2515, 0
        %v2602 = vsel %vm294, %v2516, 0
        %v2605 = vsel %vm294, %v2517, 0
        %v2608 = vsel %vm294, %v2518, 0
        %v2611 = vsel %vm294, %v2519, 0
        %v2614 = vsel %vm294, %v2520, 0
        %v2617 = vsel %vm294, %v2521, 0
        %v2620 = vsel %vm294, %v2522, 0
        %2622 = vmatprep.subr.mxu0 0.0
        %2623 = vmatpush1.msra.mxu0 0.0
        %2624 = vmatprep.subr.mxu0 0.0
        %2625 = vmatpush1.msra.mxu0 0.0
        %2626 = vmatprep.subr.mxu0 0.0
        %2627 = vmatpush1.msra.mxu0 0.0
        %2628 = vmatprep.subr.mxu0 0.0
        %2629 = vmatpush1.msra.mxu0 0.0
        %2630 = vmatprep.subr.mxu0 0.0
        %2631 = vmatpush1.msra.mxu0 0.0
        %2632 = vmatprep.subr.mxu0 0.0
        %2633 = vmatpush1.msra.mxu0 0.0
        %2634 = vmatprep.subr.mxu0 0.0
        %2635 = vmatpush1.msra.mxu0 0.0
        %2636 = vmatprep.subr.mxu0 0.0
        %2637 = vmatpush1.msra.mxu0 0.0
        %2638 = vmatprep.subr.mxu0 0.0
        %2639 = vmatpush1.msra.mxu0 0.0
        %2640 = vmatprep.subr.mxu0 0.0
        %2641 = vmatpush1.msra.mxu0 0.0
        %2642 = vmatprep.subr.mxu0 0.0
        %2643 = vmatpush1.msra.mxu0 0.0
        %2644 = vmatprep.subr.mxu0 0.0
        %2645 = vmatpush1.msra.mxu0 0.0
        %2646 = vmatprep.subr.mxu0 0.0
        %2647 = vmatpush1.msra.mxu0 0.0
        %2648 = vmatprep.subr.mxu0 0.0
        %2649 = vmatpush1.msra.mxu0 0.0
        %2650 = vmatprep.subr.mxu0 0.0
        %2651 = vmatpush1.msra.mxu0 %v2525
        %2652 = vmatprep.subr.mxu0 0.0
        %2653 = vmatpush1.msra.mxu0 %v2524
        %2654 = vmatprep.subr.mxu0 0.0
        %2655 = vmatpush2.msra.mxu0 0.0
        %2656 = vmatprep.subr.mxu0 0.0
        %2657 = vmatpush2.msra.mxu0 0.0
        %2658 = vmatprep.subr.mxu0 0.0
        %2659 = vmatpush2.msra.mxu0 0.0
        %2660 = vmatprep.subr.mxu0 0.0
        %2661 = vmatpush2.msra.mxu0 0.0
        %2662 = vmatprep.subr.mxu0 0.0
        %2663 = vmatpush2.msra.mxu0 0.0
        %2664 = vmatprep.subr.mxu0 0.0
        %2665 = vmatpush2.msra.mxu0 0.0
        %2666 = vmatprep.subr.mxu0 0.0
        %2667 = vmatpush2.msra.mxu0 0.0
        %2668 = vmatprep.subr.mxu0 0.0
        %2669 = vmatpush2.msra.mxu0 0.0
        %2670 = vmatprep.subr.mxu0 0.0
        %2671 = vmatpush2.msra.mxu0 0.0
        %2672 = vmatprep.subr.mxu0 0.0
        %2673 = vmatpush2.msra.mxu0 0.0
        %2674 = vmatprep.subr.mxu0 0.0
        %2675 = vmatpush2.msra.mxu0 0.0
        %2676 = vmatprep.subr.mxu0 0.0
        %2677 = vmatpush2.msra.mxu0 0.0
        %2678 = vmatprep.subr.mxu0 0.0
        %2679 = vmatpush2.msra.mxu0 0.0
        %2680 = vmatprep.subr.mxu0 0.0
        %2681 = vmatpush2.msra.mxu0 0.0
        %2682 = vmatprep.subr.mxu0 0.0
        %2683 = vmatpush2.msra.mxu0 0.0
        %2684 = vmatprep.subr.mxu0 0.0
        %2685 = vmatpush2.msra.mxu0 0.0
        %2686 = vmatprep.mubr.f32.mxu0 0.0
        %2687 = vmatmul.mubr.f32.gmra.mxu0 %v2527
        %v2688 = vpop.f32.mrf.mxu0
        %v2689 = vadd.f32 0.0, %v2688
        %v2690 = vpop.f32.mrf.mxu0
        %2691 = vmatprep.mubr.f32.mxu0 0.0
        %2692 = vmatmul.mubr.f32.gmra.mxu0 %v2530
        %v2693 = vpop.f32.mrf.mxu0
        %v2694 = vadd.f32 0.0, %v2693
        %v2695 = vpop.f32.mrf.mxu0
        %2696 = vmatprep.mubr.f32.mxu0 0.0
        %2697 = vmatmul.mubr.f32.gmra.mxu0 %v2533
        %v2698 = vpop.f32.mrf.mxu0
        %v2699 = vadd.f32 0.0, %v2698
        %v2700 = vpop.f32.mrf.mxu0
        %2701 = vmatprep.mubr.f32.mxu0 0.0
        %2702 = vmatmul.mubr.f32.gmra.mxu0 %v2536
        %v2703 = vpop.f32.mrf.mxu0
        %v2704 = vadd.f32 0.0, %v2703
        %v2705 = vpop.f32.mrf.mxu0
        %2706 = vmatprep.mubr.f32.mxu0 0.0
        %2707 = vmatmul.mubr.f32.gmra.mxu0 %v2539
        %v2708 = vpop.f32.mrf.mxu0
        %v2709 = vadd.f32 0.0, %v2708
        %v2710 = vpop.f32.mrf.mxu0
        %2711 = vmatprep.mubr.f32.mxu0 0.0
        %2712 = vmatmul.mubr.f32.gmra.mxu0 %v2542
        %v2713 = vpop.f32.mrf.mxu0
        %v2714 = vadd.f32 0.0, %v2713
        %v2715 = vpop.f32.mrf.mxu0
        %2716 = vmatprep.mubr.f32.mxu0 0.0
        %2717 = vmatmul.mubr.f32.gmra.mxu0 %v2545
        %v2718 = vpop.f32.mrf.mxu0
        %v2719 = vadd.f32 0.0, %v2718
        %v2720 = vpop.f32.mrf.mxu0
        %2721 = vmatprep.mubr.f32.mxu0 0.0
        %2722 = vmatmul.mubr.f32.gmra.mxu0 %v2548
        %v2723 = vpop.f32.mrf.mxu0
        %v2724 = vadd.f32 0.0, %v2723
        %v2725 = vpop.f32.mrf.mxu0
        %2726 = vmatprep.mubr.f32.mxu0 0.0
        %2727 = vmatmul.mubr.f32.gmra.mxu0 %v2551
        %v2728 = vpop.f32.mrf.mxu0
        %v2729 = vadd.f32 0.0, %v2728
        %v2730 = vpop.f32.mrf.mxu0
        %2731 = vmatprep.mubr.f32.mxu0 0.0
        %2732 = vmatmul.mubr.f32.gmra.mxu0 %v2554
        %v2733 = vpop.f32.mrf.mxu0
        %v2734 = vadd.f32 0.0, %v2733
        %v2735 = vpop.f32.mrf.mxu0
        %2736 = vmatprep.mubr.f32.mxu0 0.0
        %2737 = vmatmul.mubr.f32.gmra.mxu0 %v2557
        %v2738 = vpop.f32.mrf.mxu0
        %v2739 = vadd.f32 0.0, %v2738
        %v2740 = vpop.f32.mrf.mxu0
        %2741 = vmatprep.mubr.f32.mxu0 0.0
        %2742 = vmatmul.mubr.f32.gmra.mxu0 %v2560
        %v2743 = vpop.f32.mrf.mxu0
        %v2744 = vadd.f32 0.0, %v2743
        %v2745 = vpop.f32.mrf.mxu0
        %2746 = vmatprep.mubr.f32.mxu0 0.0
        %2747 = vmatmul.mubr.f32.gmra.mxu0 %v2563
        %v2748 = vpop.f32.mrf.mxu0
        %v2749 = vadd.f32 0.0, %v2748
        %v2750 = vpop.f32.mrf.mxu0
        %2751 = vmatprep.mubr.f32.mxu0 0.0
        %2752 = vmatmul.mubr.f32.gmra.mxu0 %v2566
        %v2753 = vpop.f32.mrf.mxu0
        %v2754 = vadd.f32 0.0, %v2753
        %v2755 = vpop.f32.mrf.mxu0
        %2756 = vmatprep.mubr.f32.mxu0 0.0
        %2757 = vmatmul.mubr.f32.gmra.mxu0 %v2569
        %v2758 = vpop.f32.mrf.mxu0
        %v2759 = vadd.f32 0.0, %v2758
        %v2760 = vpop.f32.mrf.mxu0
        %2761 = vmatprep.mubr.f32.mxu0 0.0
        %2762 = vmatmul.mubr.f32.gmra.mxu0 %v2572
        %v2763 = vpop.f32.mrf.mxu0
        %v2764 = vadd.f32 0.0, %v2763
        %v2765 = vpop.f32.mrf.mxu0
        %2766 = vmatprep.mubr.f32.mxu0 0.0
        %2767 = vmatmul.mubr.f32.gmra.mxu0 %v2575
        %v2768 = vpop.f32.mrf.mxu0
        %v2769 = vadd.f32 0.0, %v2768
        %v2770 = vpop.f32.mrf.mxu0
        %2771 = vmatprep.mubr.f32.mxu0 0.0
        %2772 = vmatmul.mubr.f32.gmra.mxu0 %v2578
        %v2773 = vpop.f32.mrf.mxu0
        %v2774 = vadd.f32 0.0, %v2773
        %v2775 = vpop.f32.mrf.mxu0
        %2776 = vmatprep.mubr.f32.mxu0 0.0
        %2777 = vmatmul.mubr.f32.gmra.mxu0 %v2581
        %v2778 = vpop.f32.mrf.mxu0
        %v2779 = vadd.f32 0.0, %v2778
        %v2780 = vpop.f32.mrf.mxu0
        %2781 = vmatprep.mubr.f32.mxu0 0.0
        %2782 = vmatmul.mubr.f32.gmra.mxu0 %v2584
        %v2783 = vpop.f32.mrf.mxu0
        %v2784 = vadd.f32 0.0, %v2783
        %v2785 = vpop.f32.mrf.mxu0
        %2786 = vmatprep.mubr.f32.mxu0 0.0
        %2787 = vmatmul.mubr.f32.gmra.mxu0 %v2587
        %v2788 = vpop.f32.mrf.mxu0
        %v2789 = vadd.f32 0.0, %v2788
        %v2790 = vpop.f32.mrf.mxu0
        %2791 = vmatprep.mubr.f32.mxu0 0.0
        %2792 = vmatmul.mubr.f32.gmra.mxu0 %v2590
        %v2793 = vpop.f32.mrf.mxu0
        %v2794 = vadd.f32 0.0, %v2793
        %v2795 = vpop.f32.mrf.mxu0
        %2796 = vmatprep.mubr.f32.mxu0 0.0
        %2797 = vmatmul.mubr.f32.gmra.mxu0 %v2593
        %v2798 = vpop.f32.mrf.mxu0
        %v2799 = vadd.f32 0.0, %v2798
        %v2800 = vpop.f32.mrf.mxu0
        %2801 = vmatprep.mubr.f32.mxu0 0.0
        %2802 = vmatmul.mubr.f32.gmra.mxu0 %v2596
        %v2803 = vpop.f32.mrf.mxu0
        %v2804 = vadd.f32 0.0, %v2803
        %v2805 = vpop.f32.mrf.mxu0
        %2806 = vmatprep.mubr.f32.mxu0 0.0
        %2807 = vmatmul.mubr.f32.gmra.mxu0 %v2599
        %v2808 = vpop.f32.mrf.mxu0
        %v2809 = vadd.f32 0.0, %v2808
        %v2810 = vpop.f32.mrf.mxu0
        %2811 = vmatprep.mubr.f32.mxu0 0.0
        %2812 = vmatmul.mubr.f32.gmra.mxu0 %v2602
        %v2813 = vpop.f32.mrf.mxu0
        %v2814 = vadd.f32 0.0, %v2813
        %v2815 = vpop.f32.mrf.mxu0
        %2816 = vmatprep.mubr.f32.mxu0 0.0
        %2817 = vmatmul.mubr.f32.gmra.mxu0 %v2605
        %v2818 = vpop.f32.mrf.mxu0
        %v2819 = vadd.f32 0.0, %v2818
        %v2820 = vpop.f32.mrf.mxu0
        %2821 = vmatprep.mubr.f32.mxu0 0.0
        %2822 = vmatmul.mubr.f32.gmra.mxu0 %v2608
        %v2823 = vpop.f32.mrf.mxu0
        %v2824 = vadd.f32 0.0, %v2823
        %v2825 = vpop.f32.mrf.mxu0
        %2826 = vmatprep.mubr.f32.mxu0 0.0
        %2827 = vmatmul.mubr.f32.gmra.mxu0 %v2611
        %v2828 = vpop.f32.mrf.mxu0
        %v2829 = vadd.f32 0.0, %v2828
        %v2830 = vpop.f32.mrf.mxu0
        %2831 = vmatprep.mubr.f32.mxu0 0.0
        %2832 = vmatmul.mubr.f32.gmra.mxu0 %v2614
        %v2833 = vpop.f32.mrf.mxu0
        %v2834 = vadd.f32 0.0, %v2833
        %v2835 = vpop.f32.mrf.mxu0
        %2836 = vmatprep.mubr.f32.mxu0 0.0
        %2837 = vmatmul.mubr.f32.gmra.mxu0 %v2617
        %v2838 = vpop.f32.mrf.mxu0
        %v2839 = vadd.f32 0.0, %v2838
        %v2840 = vpop.f32.mrf.mxu0
        %2841 = vmatprep.mubr.f32.mxu0 0.0
        %2842 = vmatmul.mubr.f32.gmra.mxu0 %v2620
        %v2843 = vpop.f32.mrf.mxu0
        %v2844 = vadd.f32 0.0, %v2843
        %v2845 = vpop.f32.mrf.mxu0
        %2846 = vdwg.mxu0
        %v2847 = vadd.f32 %v2458, %v2689
        %v2848 = vadd.f32 %v2459, %v2694
        %v2849 = vadd.f32 %v2460, %v2699
        %v2850 = vadd.f32 %v2461, %v2704
        %v2851 = vadd.f32 %v2462, %v2709
        %v2852 = vadd.f32 %v2463, %v2714
        %v2853 = vadd.f32 %v2464, %v2719
        %v2854 = vadd.f32 %v2465, %v2724
        %v2855 = vadd.f32 %v2466, %v2729
        %v2856 = vadd.f32 %v2467, %v2734
        %v2857 = vadd.f32 %v2468, %v2739
        %v2858 = vadd.f32 %v2469, %v2744
        %v2859 = vadd.f32 %v2470, %v2749
        %v2860 = vadd.f32 %v2471, %v2754
        %v2861 = vadd.f32 %v2472, %v2759
        %v2862 = vadd.f32 %v2473, %v2764
        %v2863 = vadd.f32 %v2474, %v2769
        %v2864 = vadd.f32 %v2475, %v2774
        %v2865 = vadd.f32 %v2476, %v2779
        %v2866 = vadd.f32 %v2477, %v2784
        %v2867 = vadd.f32 %v2478, %v2789
        %v2868 = vadd.f32 %v2479, %v2794
        %v2869 = vadd.f32 %v2480, %v2799
        %v2870 = vadd.f32 %v2481, %v2804
        %v2871 = vadd.f32 %v2482, %v2809
        %v2872 = vadd.f32 %v2483, %v2814
        %v2873 = vadd.f32 %v2484, %v2819
        %v2874 = vadd.f32 %v2485, %v2824
        %v2875 = vadd.f32 %v2486, %v2829
        %v2876 = vadd.f32 %v2487, %v2834
        %v2877 = vadd.f32 %v2488, %v2839
        %v2878 = vadd.f32 %v2489, %v2844
        %v2879 = vld [vmem:[%s2490 + $0x1] sm:$0xff]
        %v2880 = vld [vmem:[%s2490 + $0x9] sm:$0xff]
        %v2881 = vld [vmem:[%s2490 + $0x19] sm:$0xff]
        %v2882 = vld [vmem:[%s2490 + $0x21] sm:$0xff]
        %v2883 = vld [vmem:[%s2490 + $0x31] sm:$0xff]
        %v2884 = vld [vmem:[%s2490 + $0x39] sm:$0xff]
        %v2885 = vld [vmem:[%s2490 + $0x49] sm:$0xff]
        %v2886 = vld [vmem:[%s2490 + $0x51] sm:$0xff]
        %v2887 = vld [vmem:[%s2490 + $0x61] sm:$0xff]
        %v2888 = vld [vmem:[%s2490 + $0x69] sm:$0xff]
        %v2889 = vld [vmem:[%s2490 + $0x79] sm:$0xff]
        %v2890 = vld [vmem:[%s2490 + $0x81] sm:$0xff]
        %v2891 = vld [vmem:[%s2490 + $0x91] sm:$0xff]
        %v2892 = vld [vmem:[%s2490 + $0x99] sm:$0xff]
        %v2893 = vld [vmem:[%s2490 + $0xa9] sm:$0xff]
        %v2894 = vld [vmem:[%s2490 + $0xb1] sm:$0xff]
        %v2895 = vld [vmem:[%s2490 + $0xc1] sm:$0xff]
        %v2896 = vld [vmem:[%s2490 + $0xc9] sm:$0xff]
        %v2897 = vld [vmem:[%s2490 + $0xd9] sm:$0xff]
        %v2898 = vld [vmem:[%s2490 + $0xe1] sm:$0xff]
        %v2899 = vld [vmem:[%s2490 + $0xf1] sm:$0xff]
        %v2900 = vld [vmem:[%s2490 + $0xf9] sm:$0xff]
        %v2901 = vld [vmem:[%s2490 + $0x109] sm:$0xff]
        %v2902 = vld [vmem:[%s2490 + $0x111] sm:$0xff]
        %v2903 = vld [vmem:[%s2490 + $0x121] sm:$0xff]
        %v2904 = vld [vmem:[%s2490 + $0x129] sm:$0xff]
        %v2905 = vld [vmem:[%s2490 + $0x139] sm:$0xff]
        %v2906 = vld [vmem:[%s2490 + $0x141] sm:$0xff]
        %v2907 = vld [vmem:[%s2490 + $0x151] sm:$0xff]
        %v2908 = vld [vmem:[%s2490 + $0x159] sm:$0xff]
        %v2909 = vld [vmem:[%s2490 + $0x169] sm:$0xff]
        %v2910 = vld [vmem:[%s2490 + $0x171] sm:$0xff]
        %s2911 = scalar_lea.vmem %s1, 112
        %v2912 = vld [vmem:[%s2911] sm:$0xff]
        %v2913 = vld [vmem:[%s2911 + $0x8] sm:$0xff]
        %v2915 = vsel %vm294, %v2879, 0
        %v2918 = vsel %vm294, %v2880, 0
        %v2921 = vsel %vm294, %v2881, 0
        %v2924 = vsel %vm294, %v2882, 0
        %v2927 = vsel %vm294, %v2883, 0
        %v2930 = vsel %vm294, %v2884, 0
        %v2933 = vsel %vm294, %v2885, 0
        %v2936 = vsel %vm294, %v2886, 0
        %v2939 = vsel %vm294, %v2887, 0
        %v2942 = vsel %vm294, %v2888, 0
        %v2945 = vsel %vm294, %v2889, 0
        %v2948 = vsel %vm294, %v2890, 0
        %v2951 = vsel %vm294, %v2891, 0
        %v2954 = vsel %vm294, %v2892, 0
        %v2957 = vsel %vm294, %v2893, 0
        %v2960 = vsel %vm294, %v2894, 0
        %v2963 = vsel %vm294, %v2895, 0
        %v2966 = vsel %vm294, %v2896, 0
        %v2969 = vsel %vm294, %v2897, 0
        %v2972 = vsel %vm294, %v2898, 0
        %v2975 = vsel %vm294, %v2899, 0
        %v2978 = vsel %vm294, %v2900, 0
        %v2981 = vsel %vm294, %v2901, 0
        %v2984 = vsel %vm294, %v2902, 0
        %v2987 = vsel %vm294, %v2903, 0
        %v2990 = vsel %vm294, %v2904, 0
        %v2993 = vsel %vm294, %v2905, 0
        %v2996 = vsel %vm294, %v2906, 0
        %v2999 = vsel %vm294, %v2907, 0
        %v3002 = vsel %vm294, %v2908, 0
        %v3005 = vsel %vm294, %v2909, 0
        %v3008 = vsel %vm294, %v2910, 0
        %3010 = vmatprep.subr.mxu0 0.0
        %3011 = vmatpush1.msra.mxu0 0.0
        %3012 = vmatprep.subr.mxu0 0.0
        %3013 = vmatpush1.msra.mxu0 0.0
        %3014 = vmatprep.subr.mxu0 0.0
        %3015 = vmatpush1.msra.mxu0 0.0
        %3016 = vmatprep.subr.mxu0 0.0
        %3017 = vmatpush1.msra.mxu0 0.0
        %3018 = vmatprep.subr.mxu0 0.0
        %3019 = vmatpush1.msra.mxu0 0.0
        %3020 = vmatprep.subr.mxu0 0.0
        %3021 = vmatpush1.msra.mxu0 0.0
        %3022 = vmatprep.subr.mxu0 0.0
        %3023 = vmatpush1.msra.mxu0 0.0
        %3024 = vmatprep.subr.mxu0 0.0
        %3025 = vmatpush1.msra.mxu0 0.0
        %3026 = vmatprep.subr.mxu0 0.0
        %3027 = vmatpush1.msra.mxu0 0.0
        %3028 = vmatprep.subr.mxu0 0.0
        %3029 = vmatpush1.msra.mxu0 0.0
        %3030 = vmatprep.subr.mxu0 0.0
        %3031 = vmatpush1.msra.mxu0 0.0
        %3032 = vmatprep.subr.mxu0 0.0
        %3033 = vmatpush1.msra.mxu0 0.0
        %3034 = vmatprep.subr.mxu0 0.0
        %3035 = vmatpush1.msra.mxu0 0.0
        %3036 = vmatprep.subr.mxu0 0.0
        %3037 = vmatpush1.msra.mxu0 0.0
        %3038 = vmatprep.subr.mxu0 0.0
        %3039 = vmatpush1.msra.mxu0 %v2913
        %3040 = vmatprep.subr.mxu0 0.0
        %3041 = vmatpush1.msra.mxu0 %v2912
        %3042 = vmatprep.subr.mxu0 0.0
        %3043 = vmatpush2.msra.mxu0 0.0
        %3044 = vmatprep.subr.mxu0 0.0
        %3045 = vmatpush2.msra.mxu0 0.0
        %3046 = vmatprep.subr.mxu0 0.0
        %3047 = vmatpush2.msra.mxu0 0.0
        %3048 = vmatprep.subr.mxu0 0.0
        %3049 = vmatpush2.msra.mxu0 0.0
        %3050 = vmatprep.subr.mxu0 0.0
        %3051 = vmatpush2.msra.mxu0 0.0
        %3052 = vmatprep.subr.mxu0 0.0
        %3053 = vmatpush2.msra.mxu0 0.0
        %3054 = vmatprep.subr.mxu0 0.0
        %3055 = vmatpush2.msra.mxu0 0.0
        %3056 = vmatprep.subr.mxu0 0.0
        %3057 = vmatpush2.msra.mxu0 0.0
        %3058 = vmatprep.subr.mxu0 0.0
        %3059 = vmatpush2.msra.mxu0 0.0
        %3060 = vmatprep.subr.mxu0 0.0
        %3061 = vmatpush2.msra.mxu0 0.0
        %3062 = vmatprep.subr.mxu0 0.0
        %3063 = vmatpush2.msra.mxu0 0.0
        %3064 = vmatprep.subr.mxu0 0.0
        %3065 = vmatpush2.msra.mxu0 0.0
        %3066 = vmatprep.subr.mxu0 0.0
        %3067 = vmatpush2.msra.mxu0 0.0
        %3068 = vmatprep.subr.mxu0 0.0
        %3069 = vmatpush2.msra.mxu0 0.0
        %3070 = vmatprep.subr.mxu0 0.0
        %3071 = vmatpush2.msra.mxu0 0.0
        %3072 = vmatprep.subr.mxu0 0.0
        %3073 = vmatpush2.msra.mxu0 0.0
        %3074 = vmatprep.mubr.f32.mxu0 0.0
        %3075 = vmatmul.mubr.f32.gmra.mxu0 %v2915
        %v3076 = vpop.f32.mrf.mxu0
        %v3077 = vadd.f32 0.0, %v3076
        %v3078 = vpop.f32.mrf.mxu0
        %3079 = vmatprep.mubr.f32.mxu0 0.0
        %3080 = vmatmul.mubr.f32.gmra.mxu0 %v2918
        %v3081 = vpop.f32.mrf.mxu0
        %v3082 = vadd.f32 0.0, %v3081
        %v3083 = vpop.f32.mrf.mxu0
        %3084 = vmatprep.mubr.f32.mxu0 0.0
        %3085 = vmatmul.mubr.f32.gmra.mxu0 %v2921
        %v3086 = vpop.f32.mrf.mxu0
        %v3087 = vadd.f32 0.0, %v3086
        %v3088 = vpop.f32.mrf.mxu0
        %3089 = vmatprep.mubr.f32.mxu0 0.0
        %3090 = vmatmul.mubr.f32.gmra.mxu0 %v2924
        %v3091 = vpop.f32.mrf.mxu0
        %v3092 = vadd.f32 0.0, %v3091
        %v3093 = vpop.f32.mrf.mxu0
        %3094 = vmatprep.mubr.f32.mxu0 0.0
        %3095 = vmatmul.mubr.f32.gmra.mxu0 %v2927
        %v3096 = vpop.f32.mrf.mxu0
        %v3097 = vadd.f32 0.0, %v3096
        %v3098 = vpop.f32.mrf.mxu0
        %3099 = vmatprep.mubr.f32.mxu0 0.0
        %3100 = vmatmul.mubr.f32.gmra.mxu0 %v2930
        %v3101 = vpop.f32.mrf.mxu0
        %v3102 = vadd.f32 0.0, %v3101
        %v3103 = vpop.f32.mrf.mxu0
        %3104 = vmatprep.mubr.f32.mxu0 0.0
        %3105 = vmatmul.mubr.f32.gmra.mxu0 %v2933
        %v3106 = vpop.f32.mrf.mxu0
        %v3107 = vadd.f32 0.0, %v3106
        %v3108 = vpop.f32.mrf.mxu0
        %3109 = vmatprep.mubr.f32.mxu0 0.0
        %3110 = vmatmul.mubr.f32.gmra.mxu0 %v2936
        %v3111 = vpop.f32.mrf.mxu0
        %v3112 = vadd.f32 0.0, %v3111
        %v3113 = vpop.f32.mrf.mxu0
        %3114 = vmatprep.mubr.f32.mxu0 0.0
        %3115 = vmatmul.mubr.f32.gmra.mxu0 %v2939
        %v3116 = vpop.f32.mrf.mxu0
        %v3117 = vadd.f32 0.0, %v3116
        %v3118 = vpop.f32.mrf.mxu0
        %3119 = vmatprep.mubr.f32.mxu0 0.0
        %3120 = vmatmul.mubr.f32.gmra.mxu0 %v2942
        %v3121 = vpop.f32.mrf.mxu0
        %v3122 = vadd.f32 0.0, %v3121
        %v3123 = vpop.f32.mrf.mxu0
        %3124 = vmatprep.mubr.f32.mxu0 0.0
        %3125 = vmatmul.mubr.f32.gmra.mxu0 %v2945
        %v3126 = vpop.f32.mrf.mxu0
        %v3127 = vadd.f32 0.0, %v3126
        %v3128 = vpop.f32.mrf.mxu0
        %3129 = vmatprep.mubr.f32.mxu0 0.0
        %3130 = vmatmul.mubr.f32.gmra.mxu0 %v2948
        %v3131 = vpop.f32.mrf.mxu0
        %v3132 = vadd.f32 0.0, %v3131
        %v3133 = vpop.f32.mrf.mxu0
        %3134 = vmatprep.mubr.f32.mxu0 0.0
        %3135 = vmatmul.mubr.f32.gmra.mxu0 %v2951
        %v3136 = vpop.f32.mrf.mxu0
        %v3137 = vadd.f32 0.0, %v3136
        %v3138 = vpop.f32.mrf.mxu0
        %3139 = vmatprep.mubr.f32.mxu0 0.0
        %3140 = vmatmul.mubr.f32.gmra.mxu0 %v2954
        %v3141 = vpop.f32.mrf.mxu0
        %v3142 = vadd.f32 0.0, %v3141
        %v3143 = vpop.f32.mrf.mxu0
        %3144 = vmatprep.mubr.f32.mxu0 0.0
        %3145 = vmatmul.mubr.f32.gmra.mxu0 %v2957
        %v3146 = vpop.f32.mrf.mxu0
        %v3147 = vadd.f32 0.0, %v3146
        %v3148 = vpop.f32.mrf.mxu0
        %3149 = vmatprep.mubr.f32.mxu0 0.0
        %3150 = vmatmul.mubr.f32.gmra.mxu0 %v2960
        %v3151 = vpop.f32.mrf.mxu0
        %v3152 = vadd.f32 0.0, %v3151
        %v3153 = vpop.f32.mrf.mxu0
        %3154 = vmatprep.mubr.f32.mxu0 0.0
        %3155 = vmatmul.mubr.f32.gmra.mxu0 %v2963
        %v3156 = vpop.f32.mrf.mxu0
        %v3157 = vadd.f32 0.0, %v3156
        %v3158 = vpop.f32.mrf.mxu0
        %3159 = vmatprep.mubr.f32.mxu0 0.0
        %3160 = vmatmul.mubr.f32.gmra.mxu0 %v2966
        %v3161 = vpop.f32.mrf.mxu0
        %v3162 = vadd.f32 0.0, %v3161
        %v3163 = vpop.f32.mrf.mxu0
        %3164 = vmatprep.mubr.f32.mxu0 0.0
        %3165 = vmatmul.mubr.f32.gmra.mxu0 %v2969
        %v3166 = vpop.f32.mrf.mxu0
        %v3167 = vadd.f32 0.0, %v3166
        %v3168 = vpop.f32.mrf.mxu0
        %3169 = vmatprep.mubr.f32.mxu0 0.0
        %3170 = vmatmul.mubr.f32.gmra.mxu0 %v2972
        %v3171 = vpop.f32.mrf.mxu0
        %v3172 = vadd.f32 0.0, %v3171
        %v3173 = vpop.f32.mrf.mxu0
        %3174 = vmatprep.mubr.f32.mxu0 0.0
        %3175 = vmatmul.mubr.f32.gmra.mxu0 %v2975
        %v3176 = vpop.f32.mrf.mxu0
        %v3177 = vadd.f32 0.0, %v3176
        %v3178 = vpop.f32.mrf.mxu0
        %3179 = vmatprep.mubr.f32.mxu0 0.0
        %3180 = vmatmul.mubr.f32.gmra.mxu0 %v2978
        %v3181 = vpop.f32.mrf.mxu0
        %v3182 = vadd.f32 0.0, %v3181
        %v3183 = vpop.f32.mrf.mxu0
        %3184 = vmatprep.mubr.f32.mxu0 0.0
        %3185 = vmatmul.mubr.f32.gmra.mxu0 %v2981
        %v3186 = vpop.f32.mrf.mxu0
        %v3187 = vadd.f32 0.0, %v3186
        %v3188 = vpop.f32.mrf.mxu0
        %3189 = vmatprep.mubr.f32.mxu0 0.0
        %3190 = vmatmul.mubr.f32.gmra.mxu0 %v2984
        %v3191 = vpop.f32.mrf.mxu0
        %v3192 = vadd.f32 0.0, %v3191
        %v3193 = vpop.f32.mrf.mxu0
        %3194 = vmatprep.mubr.f32.mxu0 0.0
        %3195 = vmatmul.mubr.f32.gmra.mxu0 %v2987
        %v3196 = vpop.f32.mrf.mxu0
        %v3197 = vadd.f32 0.0, %v3196
        %v3198 = vpop.f32.mrf.mxu0
        %3199 = vmatprep.mubr.f32.mxu0 0.0
        %3200 = vmatmul.mubr.f32.gmra.mxu0 %v2990
        %v3201 = vpop.f32.mrf.mxu0
        %v3202 = vadd.f32 0.0, %v3201
        %v3203 = vpop.f32.mrf.mxu0
        %3204 = vmatprep.mubr.f32.mxu0 0.0
        %3205 = vmatmul.mubr.f32.gmra.mxu0 %v2993
        %v3206 = vpop.f32.mrf.mxu0
        %v3207 = vadd.f32 0.0, %v3206
        %v3208 = vpop.f32.mrf.mxu0
        %3209 = vmatprep.mubr.f32.mxu0 0.0
        %3210 = vmatmul.mubr.f32.gmra.mxu0 %v2996
        %v3211 = vpop.f32.mrf.mxu0
        %v3212 = vadd.f32 0.0, %v3211
        %v3213 = vpop.f32.mrf.mxu0
        %3214 = vmatprep.mubr.f32.mxu0 0.0
        %3215 = vmatmul.mubr.f32.gmra.mxu0 %v2999
        %v3216 = vpop.f32.mrf.mxu0
        %v3217 = vadd.f32 0.0, %v3216
        %v3218 = vpop.f32.mrf.mxu0
        %3219 = vmatprep.mubr.f32.mxu0 0.0
        %3220 = vmatmul.mubr.f32.gmra.mxu0 %v3002
        %v3221 = vpop.f32.mrf.mxu0
        %v3222 = vadd.f32 0.0, %v3221
        %v3223 = vpop.f32.mrf.mxu0
        %3224 = vmatprep.mubr.f32.mxu0 0.0
        %3225 = vmatmul.mubr.f32.gmra.mxu0 %v3005
        %v3226 = vpop.f32.mrf.mxu0
        %v3227 = vadd.f32 0.0, %v3226
        %v3228 = vpop.f32.mrf.mxu0
        %3229 = vmatprep.mubr.f32.mxu0 0.0
        %3230 = vmatmul.mubr.f32.gmra.mxu0 %v3008
        %v3231 = vpop.f32.mrf.mxu0
        %v3232 = vadd.f32 0.0, %v3231
        %v3233 = vpop.f32.mrf.mxu0
        %3234 = vdwg.mxu0
        %v3235 = vadd.f32 %v2847, %v3077
        %v3236 = vadd.f32 %v2848, %v3082
        %v3237 = vadd.f32 %v2849, %v3087
        %v3238 = vadd.f32 %v2850, %v3092
        %v3239 = vadd.f32 %v2851, %v3097
        %v3240 = vadd.f32 %v2852, %v3102
        %v3241 = vadd.f32 %v2853, %v3107
        %v3242 = vadd.f32 %v2854, %v3112
        %v3243 = vadd.f32 %v2855, %v3117
        %v3244 = vadd.f32 %v2856, %v3122
        %v3245 = vadd.f32 %v2857, %v3127
        %v3246 = vadd.f32 %v2858, %v3132
        %v3247 = vadd.f32 %v2859, %v3137
        %v3248 = vadd.f32 %v2860, %v3142
        %v3249 = vadd.f32 %v2861, %v3147
        %v3250 = vadd.f32 %v2862, %v3152
        %v3251 = vadd.f32 %v2863, %v3157
        %v3252 = vadd.f32 %v2864, %v3162
        %v3253 = vadd.f32 %v2865, %v3167
        %v3254 = vadd.f32 %v2866, %v3172
        %v3255 = vadd.f32 %v2867, %v3177
        %v3256 = vadd.f32 %v2868, %v3182
        %v3257 = vadd.f32 %v2869, %v3187
        %v3258 = vadd.f32 %v2870, %v3192
        %v3259 = vadd.f32 %v2871, %v3197
        %v3260 = vadd.f32 %v2872, %v3202
        %v3261 = vadd.f32 %v2873, %v3207
        %v3262 = vadd.f32 %v2874, %v3212
        %v3263 = vadd.f32 %v2875, %v3217
        %v3264 = vadd.f32 %v2876, %v3222
        %v3265 = vadd.f32 %v2877, %v3227
        %v3266 = vadd.f32 %v2878, %v3232
        %v3267 = vld [vmem:[%s2490 + $0x2] sm:$0xff]
        %v3268 = vld [vmem:[%s2490 + $0xa] sm:$0xff]
        %v3269 = vld [vmem:[%s2490 + $0x1a] sm:$0xff]
        %v3270 = vld [vmem:[%s2490 + $0x22] sm:$0xff]
        %v3271 = vld [vmem:[%s2490 + $0x32] sm:$0xff]
        %v3272 = vld [vmem:[%s2490 + $0x3a] sm:$0xff]
        %v3273 = vld [vmem:[%s2490 + $0x4a] sm:$0xff]
        %v3274 = vld [vmem:[%s2490 + $0x52] sm:$0xff]
        %v3275 = vld [vmem:[%s2490 + $0x62] sm:$0xff]
        %v3276 = vld [vmem:[%s2490 + $0x6a] sm:$0xff]
        %v3277 = vld [vmem:[%s2490 + $0x7a] sm:$0xff]
        %v3278 = vld [vmem:[%s2490 + $0x82] sm:$0xff]
        %v3279 = vld [vmem:[%s2490 + $0x92] sm:$0xff]
        %v3280 = vld [vmem:[%s2490 + $0x9a] sm:$0xff]
        %v3281 = vld [vmem:[%s2490 + $0xaa] sm:$0xff]
        %v3282 = vld [vmem:[%s2490 + $0xb2] sm:$0xff]
        %v3283 = vld [vmem:[%s2490 + $0xc2] sm:$0xff]
        %v3284 = vld [vmem:[%s2490 + $0xca] sm:$0xff]
        %v3285 = vld [vmem:[%s2490 + $0xda] sm:$0xff]
        %v3286 = vld [vmem:[%s2490 + $0xe2] sm:$0xff]
        %v3287 = vld [vmem:[%s2490 + $0xf2] sm:$0xff]
        %v3288 = vld [vmem:[%s2490 + $0xfa] sm:$0xff]
        %v3289 = vld [vmem:[%s2490 + $0x10a] sm:$0xff]
        %v3290 = vld [vmem:[%s2490 + $0x112] sm:$0xff]
        %v3291 = vld [vmem:[%s2490 + $0x122] sm:$0xff]
        %v3292 = vld [vmem:[%s2490 + $0x12a] sm:$0xff]
        %v3293 = vld [vmem:[%s2490 + $0x13a] sm:$0xff]
        %v3294 = vld [vmem:[%s2490 + $0x142] sm:$0xff]
        %v3295 = vld [vmem:[%s2490 + $0x152] sm:$0xff]
        %v3296 = vld [vmem:[%s2490 + $0x15a] sm:$0xff]
        %v3297 = vld [vmem:[%s2490 + $0x16a] sm:$0xff]
        %v3298 = vld [vmem:[%s2490 + $0x172] sm:$0xff]
        %s3299 = scalar_lea.vmem %s1, 128
        %v3300 = vld [vmem:[%s3299] sm:$0xff]
        %v3301 = vld [vmem:[%s3299 + $0x8] sm:$0xff]
        %v3303 = vsel %vm294, %v3267, 0
        %v3306 = vsel %vm294, %v3268, 0
        %v3309 = vsel %vm294, %v3269, 0
        %v3312 = vsel %vm294, %v3270, 0
        %v3315 = vsel %vm294, %v3271, 0
        %v3318 = vsel %vm294, %v3272, 0
        %v3321 = vsel %vm294, %v3273, 0
        %v3324 = vsel %vm294, %v3274, 0
        %v3327 = vsel %vm294, %v3275, 0
        %v3330 = vsel %vm294, %v3276, 0
        %v3333 = vsel %vm294, %v3277, 0
        %v3336 = vsel %vm294, %v3278, 0
        %v3339 = vsel %vm294, %v3279, 0
        %v3342 = vsel %vm294, %v3280, 0
        %v3345 = vsel %vm294, %v3281, 0
        %v3348 = vsel %vm294, %v3282, 0
        %v3351 = vsel %vm294, %v3283, 0
        %v3354 = vsel %vm294, %v3284, 0
        %v3357 = vsel %vm294, %v3285, 0
        %v3360 = vsel %vm294, %v3286, 0
        %v3363 = vsel %vm294, %v3287, 0
        %v3366 = vsel %vm294, %v3288, 0
        %v3369 = vsel %vm294, %v3289, 0
        %v3372 = vsel %vm294, %v3290, 0
        %v3375 = vsel %vm294, %v3291, 0
        %v3378 = vsel %vm294, %v3292, 0
        %v3381 = vsel %vm294, %v3293, 0
        %v3384 = vsel %vm294, %v3294, 0
        %v3387 = vsel %vm294, %v3295, 0
        %v3390 = vsel %vm294, %v3296, 0
        %v3393 = vsel %vm294, %v3297, 0
        %v3396 = vsel %vm294, %v3298, 0
        %3398 = vmatprep.subr.mxu0 0.0
        %3399 = vmatpush1.msra.mxu0 0.0
        %3400 = vmatprep.subr.mxu0 0.0
        %3401 = vmatpush1.msra.mxu0 0.0
        %3402 = vmatprep.subr.mxu0 0.0
        %3403 = vmatpush1.msra.mxu0 0.0
        %3404 = vmatprep.subr.mxu0 0.0
        %3405 = vmatpush1.msra.mxu0 0.0
        %3406 = vmatprep.subr.mxu0 0.0
        %3407 = vmatpush1.msra.mxu0 0.0
        %3408 = vmatprep.subr.mxu0 0.0
        %3409 = vmatpush1.msra.mxu0 0.0
        %3410 = vmatprep.subr.mxu0 0.0
        %3411 = vmatpush1.msra.mxu0 0.0
        %3412 = vmatprep.subr.mxu0 0.0
        %3413 = vmatpush1.msra.mxu0 0.0
        %3414 = vmatprep.subr.mxu0 0.0
        %3415 = vmatpush1.msra.mxu0 0.0
        %3416 = vmatprep.subr.mxu0 0.0
        %3417 = vmatpush1.msra.mxu0 0.0
        %3418 = vmatprep.subr.mxu0 0.0
        %3419 = vmatpush1.msra.mxu0 0.0
        %3420 = vmatprep.subr.mxu0 0.0
        %3421 = vmatpush1.msra.mxu0 0.0
        %3422 = vmatprep.subr.mxu0 0.0
        %3423 = vmatpush1.msra.mxu0 0.0
        %3424 = vmatprep.subr.mxu0 0.0
        %3425 = vmatpush1.msra.mxu0 0.0
        %3426 = vmatprep.subr.mxu0 0.0
        %3427 = vmatpush1.msra.mxu0 %v3301
        %3428 = vmatprep.subr.mxu0 0.0
        %3429 = vmatpush1.msra.mxu0 %v3300
        %3430 = vmatprep.subr.mxu0 0.0
        %3431 = vmatpush2.msra.mxu0 0.0
        %3432 = vmatprep.subr.mxu0 0.0
        %3433 = vmatpush2.msra.mxu0 0.0
        %3434 = vmatprep.subr.mxu0 0.0
        %3435 = vmatpush2.msra.mxu0 0.0
        %3436 = vmatprep.subr.mxu0 0.0
        %3437 = vmatpush2.msra.mxu0 0.0
        %3438 = vmatprep.subr.mxu0 0.0
        %3439 = vmatpush2.msra.mxu0 0.0
        %3440 = vmatprep.subr.mxu0 0.0
        %3441 = vmatpush2.msra.mxu0 0.0
        %3442 = vmatprep.subr.mxu0 0.0
        %3443 = vmatpush2.msra.mxu0 0.0
        %3444 = vmatprep.subr.mxu0 0.0
        %3445 = vmatpush2.msra.mxu0 0.0
        %3446 = vmatprep.subr.mxu0 0.0
        %3447 = vmatpush2.msra.mxu0 0.0
        %3448 = vmatprep.subr.mxu0 0.0
        %3449 = vmatpush2.msra.mxu0 0.0
        %3450 = vmatprep.subr.mxu0 0.0
        %3451 = vmatpush2.msra.mxu0 0.0
        %3452 = vmatprep.subr.mxu0 0.0
        %3453 = vmatpush2.msra.mxu0 0.0
        %3454 = vmatprep.subr.mxu0 0.0
        %3455 = vmatpush2.msra.mxu0 0.0
        %3456 = vmatprep.subr.mxu0 0.0
        %3457 = vmatpush2.msra.mxu0 0.0
        %3458 = vmatprep.subr.mxu0 0.0
        %3459 = vmatpush2.msra.mxu0 0.0
        %3460 = vmatprep.subr.mxu0 0.0
        %3461 = vmatpush2.msra.mxu0 0.0
        %3462 = vmatprep.mubr.f32.mxu0 0.0
        %3463 = vmatmul.mubr.f32.gmra.mxu0 %v3303
        %v3464 = vpop.f32.mrf.mxu0
        %v3465 = vadd.f32 0.0, %v3464
        %v3466 = vpop.f32.mrf.mxu0
        %3467 = vmatprep.mubr.f32.mxu0 0.0
        %3468 = vmatmul.mubr.f32.gmra.mxu0 %v3306
        %v3469 = vpop.f32.mrf.mxu0
        %v3470 = vadd.f32 0.0, %v3469
        %v3471 = vpop.f32.mrf.mxu0
        %3472 = vmatprep.mubr.f32.mxu0 0.0
        %3473 = vmatmul.mubr.f32.gmra.mxu0 %v3309
        %v3474 = vpop.f32.mrf.mxu0
        %v3475 = vadd.f32 0.0, %v3474
        %v3476 = vpop.f32.mrf.mxu0
        %3477 = vmatprep.mubr.f32.mxu0 0.0
        %3478 = vmatmul.mubr.f32.gmra.mxu0 %v3312
        %v3479 = vpop.f32.mrf.mxu0
        %v3480 = vadd.f32 0.0, %v3479
        %v3481 = vpop.f32.mrf.mxu0
        %3482 = vmatprep.mubr.f32.mxu0 0.0
        %3483 = vmatmul.mubr.f32.gmra.mxu0 %v3315
        %v3484 = vpop.f32.mrf.mxu0
        %v3485 = vadd.f32 0.0, %v3484
        %v3486 = vpop.f32.mrf.mxu0
        %3487 = vmatprep.mubr.f32.mxu0 0.0
        %3488 = vmatmul.mubr.f32.gmra.mxu0 %v3318
        %v3489 = vpop.f32.mrf.mxu0
        %v3490 = vadd.f32 0.0, %v3489
        %v3491 = vpop.f32.mrf.mxu0
        %3492 = vmatprep.mubr.f32.mxu0 0.0
        %3493 = vmatmul.mubr.f32.gmra.mxu0 %v3321
        %v3494 = vpop.f32.mrf.mxu0
        %v3495 = vadd.f32 0.0, %v3494
        %v3496 = vpop.f32.mrf.mxu0
        %3497 = vmatprep.mubr.f32.mxu0 0.0
        %3498 = vmatmul.mubr.f32.gmra.mxu0 %v3324
        %v3499 = vpop.f32.mrf.mxu0
        %v3500 = vadd.f32 0.0, %v3499
        %v3501 = vpop.f32.mrf.mxu0
        %3502 = vmatprep.mubr.f32.mxu0 0.0
        %3503 = vmatmul.mubr.f32.gmra.mxu0 %v3327
        %v3504 = vpop.f32.mrf.mxu0
        %v3505 = vadd.f32 0.0, %v3504
        %v3506 = vpop.f32.mrf.mxu0
        %3507 = vmatprep.mubr.f32.mxu0 0.0
        %3508 = vmatmul.mubr.f32.gmra.mxu0 %v3330
        %v3509 = vpop.f32.mrf.mxu0
        %v3510 = vadd.f32 0.0, %v3509
        %v3511 = vpop.f32.mrf.mxu0
        %3512 = vmatprep.mubr.f32.mxu0 0.0
        %3513 = vmatmul.mubr.f32.gmra.mxu0 %v3333
        %v3514 = vpop.f32.mrf.mxu0
        %v3515 = vadd.f32 0.0, %v3514
        %v3516 = vpop.f32.mrf.mxu0
        %3517 = vmatprep.mubr.f32.mxu0 0.0
        %3518 = vmatmul.mubr.f32.gmra.mxu0 %v3336
        %v3519 = vpop.f32.mrf.mxu0
        %v3520 = vadd.f32 0.0, %v3519
        %v3521 = vpop.f32.mrf.mxu0
        %3522 = vmatprep.mubr.f32.mxu0 0.0
        %3523 = vmatmul.mubr.f32.gmra.mxu0 %v3339
        %v3524 = vpop.f32.mrf.mxu0
        %v3525 = vadd.f32 0.0, %v3524
        %v3526 = vpop.f32.mrf.mxu0
        %3527 = vmatprep.mubr.f32.mxu0 0.0
        %3528 = vmatmul.mubr.f32.gmra.mxu0 %v3342
        %v3529 = vpop.f32.mrf.mxu0
        %v3530 = vadd.f32 0.0, %v3529
        %v3531 = vpop.f32.mrf.mxu0
        %3532 = vmatprep.mubr.f32.mxu0 0.0
        %3533 = vmatmul.mubr.f32.gmra.mxu0 %v3345
        %v3534 = vpop.f32.mrf.mxu0
        %v3535 = vadd.f32 0.0, %v3534
        %v3536 = vpop.f32.mrf.mxu0
        %3537 = vmatprep.mubr.f32.mxu0 0.0
        %3538 = vmatmul.mubr.f32.gmra.mxu0 %v3348
        %v3539 = vpop.f32.mrf.mxu0
        %v3540 = vadd.f32 0.0, %v3539
        %v3541 = vpop.f32.mrf.mxu0
        %3542 = vmatprep.mubr.f32.mxu0 0.0
        %3543 = vmatmul.mubr.f32.gmra.mxu0 %v3351
        %v3544 = vpop.f32.mrf.mxu0
        %v3545 = vadd.f32 0.0, %v3544
        %v3546 = vpop.f32.mrf.mxu0
        %3547 = vmatprep.mubr.f32.mxu0 0.0
        %3548 = vmatmul.mubr.f32.gmra.mxu0 %v3354
        %v3549 = vpop.f32.mrf.mxu0
        %v3550 = vadd.f32 0.0, %v3549
        %v3551 = vpop.f32.mrf.mxu0
        %3552 = vmatprep.mubr.f32.mxu0 0.0
        %3553 = vmatmul.mubr.f32.gmra.mxu0 %v3357
        %v3554 = vpop.f32.mrf.mxu0
        %v3555 = vadd.f32 0.0, %v3554
        %v3556 = vpop.f32.mrf.mxu0
        %3557 = vmatprep.mubr.f32.mxu0 0.0
        %3558 = vmatmul.mubr.f32.gmra.mxu0 %v3360
        %v3559 = vpop.f32.mrf.mxu0
        %v3560 = vadd.f32 0.0, %v3559
        %v3561 = vpop.f32.mrf.mxu0
        %3562 = vmatprep.mubr.f32.mxu0 0.0
        %3563 = vmatmul.mubr.f32.gmra.mxu0 %v3363
        %v3564 = vpop.f32.mrf.mxu0
        %v3565 = vadd.f32 0.0, %v3564
        %v3566 = vpop.f32.mrf.mxu0
        %3567 = vmatprep.mubr.f32.mxu0 0.0
        %3568 = vmatmul.mubr.f32.gmra.mxu0 %v3366
        %v3569 = vpop.f32.mrf.mxu0
        %v3570 = vadd.f32 0.0, %v3569
        %v3571 = vpop.f32.mrf.mxu0
        %3572 = vmatprep.mubr.f32.mxu0 0.0
        %3573 = vmatmul.mubr.f32.gmra.mxu0 %v3369
        %v3574 = vpop.f32.mrf.mxu0
        %v3575 = vadd.f32 0.0, %v3574
        %v3576 = vpop.f32.mrf.mxu0
        %3577 = vmatprep.mubr.f32.mxu0 0.0
        %3578 = vmatmul.mubr.f32.gmra.mxu0 %v3372
        %v3579 = vpop.f32.mrf.mxu0
        %v3580 = vadd.f32 0.0, %v3579
        %v3581 = vpop.f32.mrf.mxu0
        %3582 = vmatprep.mubr.f32.mxu0 0.0
        %3583 = vmatmul.mubr.f32.gmra.mxu0 %v3375
        %v3584 = vpop.f32.mrf.mxu0
        %v3585 = vadd.f32 0.0, %v3584
        %v3586 = vpop.f32.mrf.mxu0
        %3587 = vmatprep.mubr.f32.mxu0 0.0
        %3588 = vmatmul.mubr.f32.gmra.mxu0 %v3378
        %v3589 = vpop.f32.mrf.mxu0
        %v3590 = vadd.f32 0.0, %v3589
        %v3591 = vpop.f32.mrf.mxu0
        %3592 = vmatprep.mubr.f32.mxu0 0.0
        %3593 = vmatmul.mubr.f32.gmra.mxu0 %v3381
        %v3594 = vpop.f32.mrf.mxu0
        %v3595 = vadd.f32 0.0, %v3594
        %v3596 = vpop.f32.mrf.mxu0
        %3597 = vmatprep.mubr.f32.mxu0 0.0
        %3598 = vmatmul.mubr.f32.gmra.mxu0 %v3384
        %v3599 = vpop.f32.mrf.mxu0
        %v3600 = vadd.f32 0.0, %v3599
        %v3601 = vpop.f32.mrf.mxu0
        %3602 = vmatprep.mubr.f32.mxu0 0.0
        %3603 = vmatmul.mubr.f32.gmra.mxu0 %v3387
        %v3604 = vpop.f32.mrf.mxu0
        %v3605 = vadd.f32 0.0, %v3604
        %v3606 = vpop.f32.mrf.mxu0
        %3607 = vmatprep.mubr.f32.mxu0 0.0
        %3608 = vmatmul.mubr.f32.gmra.mxu0 %v3390
        %v3609 = vpop.f32.mrf.mxu0
        %v3610 = vadd.f32 0.0, %v3609
        %v3611 = vpop.f32.mrf.mxu0
        %3612 = vmatprep.mubr.f32.mxu0 0.0
        %3613 = vmatmul.mubr.f32.gmra.mxu0 %v3393
        %v3614 = vpop.f32.mrf.mxu0
        %v3615 = vadd.f32 0.0, %v3614
        %v3616 = vpop.f32.mrf.mxu0
        %3617 = vmatprep.mubr.f32.mxu0 0.0
        %3618 = vmatmul.mubr.f32.gmra.mxu0 %v3396
        %v3619 = vpop.f32.mrf.mxu0
        %v3620 = vadd.f32 0.0, %v3619
        %v3621 = vpop.f32.mrf.mxu0
        %3622 = vdwg.mxu0
        %v3623 = vadd.f32 %v3235, %v3465
        %v3624 = vadd.f32 %v3236, %v3470
        %v3625 = vadd.f32 %v3237, %v3475
        %v3626 = vadd.f32 %v3238, %v3480
        %v3627 = vadd.f32 %v3239, %v3485
        %v3628 = vadd.f32 %v3240, %v3490
        %v3629 = vadd.f32 %v3241, %v3495
        %v3630 = vadd.f32 %v3242, %v3500
        %v3631 = vadd.f32 %v3243, %v3505
        %v3632 = vadd.f32 %v3244, %v3510
        %v3633 = vadd.f32 %v3245, %v3515
        %v3634 = vadd.f32 %v3246, %v3520
        %v3635 = vadd.f32 %v3247, %v3525
        %v3636 = vadd.f32 %v3248, %v3530
        %v3637 = vadd.f32 %v3249, %v3535
        %v3638 = vadd.f32 %v3250, %v3540
        %v3639 = vadd.f32 %v3251, %v3545
        %v3640 = vadd.f32 %v3252, %v3550
        %v3641 = vadd.f32 %v3253, %v3555
        %v3642 = vadd.f32 %v3254, %v3560
        %v3643 = vadd.f32 %v3255, %v3565
        %v3644 = vadd.f32 %v3256, %v3570
        %v3645 = vadd.f32 %v3257, %v3575
        %v3646 = vadd.f32 %v3258, %v3580
        %v3647 = vadd.f32 %v3259, %v3585
        %v3648 = vadd.f32 %v3260, %v3590
        %v3649 = vadd.f32 %v3261, %v3595
        %v3650 = vadd.f32 %v3262, %v3600
        %v3651 = vadd.f32 %v3263, %v3605
        %v3652 = vadd.f32 %v3264, %v3610
        %v3653 = vadd.f32 %v3265, %v3615
        %v3654 = vadd.f32 %v3266, %v3620
        %v3655 = vld [vmem:[%s2] sm:$0x1]
        %v3657 = vlaneseq
        %v3658 = vshrl.u32 %v3657, 7
        %v3659 = vsub.s32 0, %v3658
        %v3660 = vrot.slane %v3655, %v3659
        %v3662 = vmul.f32 %v3623, %v3660
        %v3663 = vmul.f32 %v3624, %v3660
        %v3664 = vmul.f32 %v3625, %v3660
        %v3665 = vmul.f32 %v3626, %v3660
        %v3666 = vmul.f32 %v3627, %v3660
        %v3667 = vmul.f32 %v3628, %v3660
        %v3668 = vmul.f32 %v3629, %v3660
        %v3669 = vmul.f32 %v3630, %v3660
        %v3670 = vmul.f32 %v3631, %v3660
        %v3671 = vmul.f32 %v3632, %v3660
        %v3672 = vmul.f32 %v3633, %v3660
        %v3673 = vmul.f32 %v3634, %v3660
        %v3674 = vmul.f32 %v3635, %v3660
        %v3675 = vmul.f32 %v3636, %v3660
        %v3676 = vmul.f32 %v3637, %v3660
        %v3677 = vmul.f32 %v3638, %v3660
        %v3678 = vmul.f32 %v3639, %v3660
        %v3679 = vmul.f32 %v3640, %v3660
        %v3680 = vmul.f32 %v3641, %v3660
        %v3681 = vmul.f32 %v3642, %v3660
        %v3682 = vmul.f32 %v3643, %v3660
        %v3683 = vmul.f32 %v3644, %v3660
        %v3684 = vmul.f32 %v3645, %v3660
        %v3685 = vmul.f32 %v3646, %v3660
        %v3686 = vmul.f32 %v3647, %v3660
        %v3687 = vmul.f32 %v3648, %v3660
        %v3688 = vmul.f32 %v3649, %v3660
        %v3689 = vmul.f32 %v3650, %v3660
        %v3690 = vmul.f32 %v3651, %v3660
        %v3691 = vmul.f32 %v3652, %v3660
        %v3692 = vmul.f32 %v3653, %v3660
        %v3693 = vmul.f32 %v3654, %v3660
        %v3694 = vld [vmem:[%s3] sm:$0x1]
        %v3696 = vlaneseq
        %v3697 = vshrl.u32 %v3696, 7
        %v3698 = vsub.s32 0, %v3697
        %v3699 = vrot.slane %v3694, %v3698
        %v3701 = vadd.f32 %v3662, %v3699
        %v3702 = vadd.f32 %v3663, %v3699
        %v3703 = vadd.f32 %v3664, %v3699
        %v3704 = vadd.f32 %v3665, %v3699
        %v3705 = vadd.f32 %v3666, %v3699
        %v3706 = vadd.f32 %v3667, %v3699
        %v3707 = vadd.f32 %v3668, %v3699
        %v3708 = vadd.f32 %v3669, %v3699
        %v3709 = vadd.f32 %v3670, %v3699
        %v3710 = vadd.f32 %v3671, %v3699
        %v3711 = vadd.f32 %v3672, %v3699
        %v3712 = vadd.f32 %v3673, %v3699
        %v3713 = vadd.f32 %v3674, %v3699
        %v3714 = vadd.f32 %v3675, %v3699
        %v3715 = vadd.f32 %v3676, %v3699
        %v3716 = vadd.f32 %v3677, %v3699
        %v3717 = vadd.f32 %v3678, %v3699
        %v3718 = vadd.f32 %v3679, %v3699
        %v3719 = vadd.f32 %v3680, %v3699
        %v3720 = vadd.f32 %v3681, %v3699
        %v3721 = vadd.f32 %v3682, %v3699
        %v3722 = vadd.f32 %v3683, %v3699
        %v3723 = vadd.f32 %v3684, %v3699
        %v3724 = vadd.f32 %v3685, %v3699
        %v3725 = vadd.f32 %v3686, %v3699
        %v3726 = vadd.f32 %v3687, %v3699
        %v3727 = vadd.f32 %v3688, %v3699
        %v3728 = vadd.f32 %v3689, %v3699
        %v3729 = vadd.f32 %v3690, %v3699
        %v3730 = vadd.f32 %v3691, %v3699
        %v3731 = vadd.f32 %v3692, %v3699
        %v3732 = vadd.f32 %v3693, %v3699
        %vm3733 = vcmask 261120
        %3734 = vst.msk [vmem:[%s214] sm:$0xff] %vm3733, %v3701
        %3735 = vst.msk [vmem:[%s214 + $0x8] sm:$0xff] %vm3733, %v3702
        %3736 = vst.msk [vmem:[%s214 + $0x10] sm:$0xff] %vm3733, %v3703
        %3737 = vst.msk [vmem:[%s214 + $0x18] sm:$0xff] %vm3733, %v3704
        %3738 = vst.msk [vmem:[%s214 + $0x20] sm:$0xff] %vm3733, %v3705
        %3739 = vst.msk [vmem:[%s214 + $0x28] sm:$0xff] %vm3733, %v3706
        %3740 = vst.msk [vmem:[%s214 + $0x30] sm:$0xff] %vm3733, %v3707
        %3741 = vst.msk [vmem:[%s214 + $0x38] sm:$0xff] %vm3733, %v3708
        %3742 = vst.msk [vmem:[%s214 + $0x40] sm:$0xff] %vm3733, %v3709
        %3743 = vst.msk [vmem:[%s214 + $0x48] sm:$0xff] %vm3733, %v3710
        %3744 = vst.msk [vmem:[%s214 + $0x50] sm:$0xff] %vm3733, %v3711
        %3745 = vst.msk [vmem:[%s214 + $0x58] sm:$0xff] %vm3733, %v3712
        %3746 = vst.msk [vmem:[%s214 + $0x60] sm:$0xff] %vm3733, %v3713
        %3747 = vst.msk [vmem:[%s214 + $0x68] sm:$0xff] %vm3733, %v3714
        %3748 = vst.msk [vmem:[%s214 + $0x70] sm:$0xff] %vm3733, %v3715
        %3749 = vst.msk [vmem:[%s214 + $0x78] sm:$0xff] %vm3733, %v3716
        %3750 = vst.msk [vmem:[%s214 + $0x80] sm:$0xff] %vm3733, %v3717
        %3751 = vst.msk [vmem:[%s214 + $0x88] sm:$0xff] %vm3733, %v3718
        %3752 = vst.msk [vmem:[%s214 + $0x90] sm:$0xff] %vm3733, %v3719
        %3753 = vst.msk [vmem:[%s214 + $0x98] sm:$0xff] %vm3733, %v3720
        %3754 = vst.msk [vmem:[%s214 + $0xa0] sm:$0xff] %vm3733, %v3721
        %3755 = vst.msk [vmem:[%s214 + $0xa8] sm:$0xff] %vm3733, %v3722
        %3756 = vst.msk [vmem:[%s214 + $0xb0] sm:$0xff] %vm3733, %v3723
        %3757 = vst.msk [vmem:[%s214 + $0xb8] sm:$0xff] %vm3733, %v3724
        %3758 = vst.msk [vmem:[%s214 + $0xc0] sm:$0xff] %vm3733, %v3725
        %3759 = vst.msk [vmem:[%s214 + $0xc8] sm:$0xff] %vm3733, %v3726
        %3760 = vst.msk [vmem:[%s214 + $0xd0] sm:$0xff] %vm3733, %v3727
        %3761 = vst.msk [vmem:[%s214 + $0xd8] sm:$0xff] %vm3733, %v3728
        %3762 = vst.msk [vmem:[%s214 + $0xe0] sm:$0xff] %vm3733, %v3729
        %3763 = vst.msk [vmem:[%s214 + $0xe8] sm:$0xff] %vm3733, %v3730
        %3764 = vst.msk [vmem:[%s214 + $0xf0] sm:$0xff] %vm3733, %v3731
        %3765 = vst.msk [vmem:[%s214 + $0xf8] sm:$0xff] %vm3733, %v3732
        %s3766 = sand.u32 %s131, 1
        %s3767 = scalar_lea.sflag [#allocation3], %s3766
        %s3768 = sand.u32 %s131, 1
        %s3769 = smul.addr %s3768, 256
        %s3770 = scalar_lea.vmem [#allocation2], %s3769
        // Predicated region
        $region37: #{basic_conv2d_forward.1} parent=35 // pred_check
          %p3771 = pneg %p141
        $region38: #{basic_conv2d_forward.1} parent=35 // pred_check_branch
          %3773 = sbr.rel (%p3771) target = $region40
        $region39: #{basic_conv2d_forward.1} parent=35 // pred_region
          %s3774 = smul.u32 16, %s23
          %s3776 = ssub.s32 4096, 4096
          %3777 = vsyncadd %s3767, %s3776
          %s3778 = smul.addr %s3774, 2
          %s3779 = smul.addr %s22, 32
          %s3780 = sadd.s32 %s3778, %s3779
          %s3781 = smul.addr %s3780, 128
          %s3782 = scalar_lea.hbm %s4, %s3781
          %s3783 = sshll.u32 %s3770, 4
          %s3784 = int_to_ptr.vmem [resolvable:$true] %s3783
          %3789 = dma.vmem_to_hbm [thread:$0]  %s3784, 4096, %s3782, %s3767, 128, 128, 8
        $region40: #{basic_conv2d_forward.1} parent=35 // pred_fallthru
          _
      $region36: #{basic_conv2d_forward.1} parent=5 // pred_fallthru
        _
      %p3790 = scmp.le.s32.totalorder 2, %s13
      // Predicated region
      $region41: #{basic_conv2d_forward.1} parent=5 // pred_check
        %p3791 = pneg %p3790
      $region42: #{basic_conv2d_forward.1} parent=5 // pred_check_branch
        %3793 = sbr.rel (%p3791) target = $region44
      $region43: #{basic_conv2d_forward.1} parent=5 // pred_region
        %s3794 = ssub.s32 %s13, 2
        // Predicated region
        $region45: #{basic_conv2d_forward.1} parent=43 // pred_check
          %p3795 = pneg %p147
        $region46: #{basic_conv2d_forward.1} parent=43 // pred_check_branch
          %3797 = sbr.rel (%p3795) target = $region48
        $region47: #{basic_conv2d_forward.1} parent=43 // pred_region
          %s3798 = sand.u32 %s132, 1
          %s3799 = scalar_lea.sflag [#allocation3], %s3798
          %s3800 = sand.u32 %s132, 1
          %s3801 = smul.addr %s3800, 256
          %s3802 = scalar_lea.vmem [#allocation2], %s3801
          %3803 = dma.done %s3799, 4096
        $region48: #{basic_conv2d_forward.1} parent=43 // pred_fallthru
          _
      $region44: #{basic_conv2d_forward.1} parent=5 // pred_fallthru
        _
    $region6: #{basic_conv2d_forward.1} parent=1 // loop_footer
      %s17 = sadd.s32 1, %s13
    $region7: #{basic_conv2d_forward.1} parent=1 // loop_footer_branch
      %12 = sbr.rel target = $region3
    $region8: #{basic_conv2d_forward.1} parent=1 // loop_exit
      _
    %3804 = vsyncpa [#allocation3], 1
    %s3805 = scalar_lea.sflag [#allocation3], 1
    %3806 = vsyncpa %s3805, 1

</llo_original>
